<compile_context>
chip_gen: v7x
topology: tpu7x:2x2x1
jax: 0.10.0
libtpu: 0.0.40
codegen_flags: <defaults>
</compile_context>

<pallas_src>
import functools
import math
import numpy as np
import jax
import jax.numpy as jnp
from jax.experimental import pallas as pl
from jax.experimental.pallas import tpu as pltpu

F32 = jnp.float32
BF16 = jnp.bfloat16
ROW_ALIGN = 16                      # sublane alignment for bf16 activations
VMEM_LIMIT = 48 * 1024 * 1024       # > v5e 16MiB / v6e-v7x 32MiB scoped defaults


# --------------------------- small helpers ----------------------------------

def _round_up(x, m):
    return ((x + m - 1) // m) * m


def _row_tiles(M, block_rows):
    """Padded row count + row-tile size (tile == whole aligned array if small)."""
    if M <= block_rows:
        Mp = _round_up(M, ROW_ALIGN)
        return Mp, Mp
    Mp = _round_up(M, block_rows)
    return Mp, block_rows


def _pad_rows(x, Mp):
    M = x.shape[0]
    if Mp == M:
        return x
    return jnp.pad(x, ((0, Mp - M), (0, 0)))


def _params(vmem_limit=None):
    # 1-D grids everywhere; "parallel" lets megacore / multi-TC chips shard the grid.
    return pltpu.CompilerParams(dimension_semantics=("parallel",),
                                vmem_limit_bytes=vmem_limit)


def _ln(x, g, b, eps):
    """fp32 LayerNorm over the last axis (matches the module's fp32 LayerNorm)."""
    mean = jnp.mean(x, axis=-1, keepdims=True)
    xc = x - mean
    var = jnp.mean(xc * xc, axis=-1, keepdims=True)
    return xc * jax.lax.rsqrt(var + eps) * g + b


# --------------------------- standalone kernels ------------------------------

def _linear_kernel(x_ref, w_ref, b_ref, o_ref):
    acc = jnp.dot(x_ref[...].astype(BF16), w_ref[...],
                  preferred_element_type=jnp.float32)
    o_ref[...] = (acc + b_ref[...]).astype(o_ref.dtype)


def linear(x, w, b, *, out_dtype=None, block_rows=512):
    """x:(M,K) @ w:(K,N) + b. Row-tiled grid, resident bf16 weight, fp32 accum."""
    M, K = x.shape
    N = w.shape[1]
    out_dtype = out_dtype or x.dtype
    Mp, tm = _row_tiles(M, block_rows)
    out = pl.pallas_call(
        _linear_kernel,
        out_shape=jax.ShapeDtypeStruct((Mp, N), out_dtype),
        grid_spec=pltpu.PrefetchScalarGridSpec(
            num_scalar_prefetch=0, grid=(Mp // tm,),
            in_specs=[pl.BlockSpec((tm, K), lambda i: (i, 0)),
                      pl.BlockSpec((K, N), lambda i: (0, 0)),
                      pl.BlockSpec((1, N), lambda i: (0, 0))],
            out_specs=pl.BlockSpec((tm, N), lambda i: (i, 0))),
        compiler_params=_params(),
    )(_pad_rows(x, Mp), w.astype(BF16), b.reshape(1, N).astype(F32))
    return out[:M] if Mp != M else out


def _layernorm_kernel(eps, x_ref, g_ref, b_ref, o_ref):
    x = x_ref[...].astype(jnp.float32)
    o_ref[...] = _ln(x, g_ref[...], b_ref[...], eps).astype(o_ref.dtype)


def layernorm(x, g, b, eps, *, out_dtype=None, block_rows=1024):
    # TODO(synk): this standalone LN (v_ln_pre / t_emb_ln) is a pure-bandwidth
    # kernel; folding it into the following fused block would remove one
    # (B*S, D) HBM round trip.
    M, D = x.shape
    out_dtype = out_dtype or x.dtype
    Mp, tm = _row_tiles(M, block_rows)
    out = pl.pallas_call(
        functools.partial(_layernorm_kernel, eps),
        out_shape=jax.ShapeDtypeStruct((Mp, D), out_dtype),
        grid_spec=pltpu.PrefetchScalarGridSpec(
            num_scalar_prefetch=0, grid=(Mp // tm,),
            in_specs=[pl.BlockSpec((tm, D), lambda i: (i, 0)),
                      pl.BlockSpec((1, D), lambda i: (0, 0)),
                      pl.BlockSpec((1, D), lambda i: (0, 0))],
            out_specs=pl.BlockSpec((tm, D), lambda i: (i, 0))),
        compiler_params=_params(),
    )(_pad_rows(x, Mp), g.reshape(1, D).astype(F32), b.reshape(1, D).astype(F32))
    return out[:M] if Mp != M else out


# --------------------------- fused attention block ---------------------------

def _attn_block_kernel(heads, scale, pre_ln, post_ln, has_mask, eps, *refs):
    if has_mask:
        (x_ref, m_ref, g_ref, b_ref, wqkv_ref, bqkv_ref, wo_ref, bo_ref, o_ref) = refs
    else:
        (x_ref, g_ref, b_ref, wqkv_ref, bqkv_ref, wo_ref, bo_ref, o_ref) = refs
        m_ref = None

    x = x_ref[0].astype(jnp.float32)                      # (S, D) fp32 residual
    D = x.shape[-1]
    Dh = D // heads

    h = _ln(x, g_ref[...], b_ref[...], eps) if pre_ln else x
    # Fused QKV projection: one big MXU matmul, bf16 operands, fp32 accumulation.
    qkv = jnp.dot(h.astype(BF16), wqkv_ref[...],
                  preferred_element_type=jnp.float32) + bqkv_ref[...]   # (S, 3D) f32

    # Fold the 1/sqrt(Dh) softmax scale into q; cast to bf16 MXU operands right
    # away so the fp32 (S, 3D) intermediate does not stay live across the loop.
    q = (qkv[:, :D] * scale).astype(BF16)                 # (S, D)
    k = qkv[:, D:2 * D].astype(BF16)
    v = qkv[:, 2 * D:].astype(BF16)

    ctx_parts = []
    for hi in range(heads):                               # unrolled, heads is small
        sl = slice(hi * Dh, (hi + 1) * Dh)
        # q_h @ k_h^T without an explicit transpose; bf16 operands, fp32 accum.
        s = jax.lax.dot_general(q[:, sl], k[:, sl], (((1,), (1,)), ((), ())),
                                preferred_element_type=jnp.float32)     # (S, S) f32
        if m_ref is not None:
            s = s + m_ref[0]                              # (1, S) additive key mask
        s = s - jnp.max(s, axis=-1, keepdims=True)
        p = jnp.exp(s)
        p = p * pl.reciprocal(jnp.sum(p, axis=-1, keepdims=True), approx=True)
        ctx = jnp.dot(p.astype(BF16), v[:, sl],
                      preferred_element_type=jnp.float32)               # (S, Dh) f32
        ctx_parts.append(ctx.astype(BF16))

    # Single full-depth out-projection on concatenated head contexts.
    ctx_all = ctx_parts[0] if heads == 1 else jnp.concatenate(ctx_parts, axis=-1)
    attn_out = jnp.dot(ctx_all, wo_ref[...],
                       preferred_element_type=jnp.float32)              # (S, D) f32

    y = x + attn_out + bo_ref[...]
    if post_ln:
        y = _ln(y, g_ref[...], b_ref[...], eps)
    o_ref[0] = y.astype(o_ref.dtype)


def attn_block(x, wqkv, bqkv, wo, bo, g, b, heads, *,
               pre_ln, post_ln, eps, mask_add=None):
    """Fused (LN +) QKV + attention + out-proj + residual (+ LN). x: (B, S, D)."""
    B, S, D = x.shape
    Dh = D // heads
    scale = 1.0 / math.sqrt(Dh)
    has_mask = mask_add is not None

    in_specs = [pl.BlockSpec((1, S, D), lambda i: (i, 0, 0))]
    args = [x]
    if has_mask:
        in_specs.append(pl.BlockSpec((1, 1, S), lambda i: (i, 0, 0)))
        args.append(mask_add.reshape(B, 1, S).astype(F32))
    in_specs += [
        pl.BlockSpec((1, D), lambda i: (0, 0)),           # LN gamma
        pl.BlockSpec((1, D), lambda i: (0, 0)),           # LN beta
        pl.BlockSpec((D, 3 * D), lambda i: (0, 0)),       # fused QKV weight (bf16)
        pl.BlockSpec((1, 3 * D), lambda i: (0, 0)),       # fused QKV bias
        pl.BlockSpec((D, D), lambda i: (0, 0)),           # out-proj weight (bf16)
        pl.BlockSpec((1, D), lambda i: (0, 0)),           # out-proj bias
    ]
    args += [g.reshape(1, D).astype(F32), b.reshape(1, D).astype(F32),
             wqkv.astype(BF16), bqkv.reshape(1, 3 * D).astype(F32),
             wo.astype(BF16), bo.reshape(1, D).astype(F32)]

    # TODO(synk): on v7x (2 TensorCores) a second query-tile grid axis would give
    # more parallelism at tiny batch; kept grid=(B,) for simplicity.
    return pl.pallas_call(
        functools.partial(_attn_block_kernel, heads, scale,
                          pre_ln, post_ln, has_mask, eps),
        out_shape=jax.ShapeDtypeStruct((B, S, D), x.dtype),
        grid_spec=pltpu.PrefetchScalarGridSpec(
            num_scalar_prefetch=0, grid=(B,),
            in_specs=in_specs,
            out_specs=pl.BlockSpec((1, S, D), lambda i: (i, 0, 0))),
        compiler_params=_params(VMEM_LIMIT),
    )(*args)


# --------------------------- fused MLP block ---------------------------------

def _mlp_block_kernel(act, pre_ln, post_ln, eps, x_ref, g_ref, b_ref,
                      w1_ref, b1_ref, w2_ref, b2_ref, o_ref):
    x = x_ref[...].astype(jnp.float32)                    # (tm, D)
    g = g_ref[...]
    b = b_ref[...]
    h_in = _ln(x, g, b, eps) if pre_ln else x
    h = jnp.dot(h_in.astype(BF16), w1_ref[...],
                preferred_element_type=jnp.float32) + b1_ref[...]
    if act == 'quick_gelu':
        h = h * jax.nn.sigmoid(1.702 * h)                 # QuickGELU (CLIP ViT)
    else:
        # TODO(synk): BERT reference uses exact erf-GELU; tanh-approximate GELU used here.
        h = jax.nn.gelu(h, approximate=True)
    m = jnp.dot(h.astype(BF16), w2_ref[...],
                preferred_element_type=jnp.float32) + b2_ref[...]
    y = x + m
    if post_ln:
        y = _ln(y, g, b, eps)
    o_ref[...] = y.astype(o_ref.dtype)


def mlp_block(x2d, g, b, w1, b1, w2, b2, act, *, pre_ln, post_ln, eps,
              block_rows=512):
    """Fused (LN +) MLP + residual (+ LN) over rows of x2d = (B*S, D)."""
    M, D = x2d.shape
    Fm = w1.shape[1]
    Mp, tm = _row_tiles(M, block_rows)
    out = pl.pallas_call(
        functools.partial(_mlp_block_kernel, act, pre_ln, post_ln, eps),
        out_shape=jax.ShapeDtypeStruct((Mp, D), x2d.dtype),
        grid_spec=pltpu.PrefetchScalarGridSpec(
            num_scalar_prefetch=0, grid=(Mp // tm,),
            in_specs=[pl.BlockSpec((tm, D), lambda i: (i, 0)),
                      pl.BlockSpec((1, D), lambda i: (0, 0)),
                      pl.BlockSpec((1, D), lambda i: (0, 0)),
                      pl.BlockSpec((D, Fm), lambda i: (0, 0)),
                      pl.BlockSpec((1, Fm), lambda i: (0, 0)),
                      pl.BlockSpec((Fm, D), lambda i: (0, 0)),
                      pl.BlockSpec((1, D), lambda i: (0, 0))],
            out_specs=pl.BlockSpec((tm, D), lambda i: (i, 0))),
        compiler_params=_params(VMEM_LIMIT),
    )(_pad_rows(x2d, Mp), g.reshape(1, D).astype(F32), b.reshape(1, D).astype(F32),
      w1.astype(BF16), b1.reshape(1, Fm).astype(F32),
      w2.astype(BF16), b2.reshape(1, D).astype(F32))
    return out[:M] if Mp != M else out


# --------------------------- fused feature head -------------------------------

def _head_kernel(use_ln, eps, x_ref, g_ref, b_ref, w_ref, o_ref):
    x = x_ref[...].astype(jnp.float32)
    if use_ln:
        x = _ln(x, g_ref[...], b_ref[...], eps)
    f = jnp.dot(x.astype(BF16), w_ref[...], preferred_element_type=jnp.float32)
    # L2 normalize (forward() semantics: features / features.norm()).
    nrm2 = jnp.maximum(jnp.sum(f * f, axis=-1, keepdims=True), 1e-30)
    o_ref[...] = (f * jax.lax.rsqrt(nrm2)).astype(o_ref.dtype)


def project_and_normalize(x, proj, g=None, b=None, *, use_ln, eps):
    """Fused [LayerNorm +] projection + L2 normalization. x: (B, D) -> (B, E)."""
    B, D = x.shape
    E = proj.shape[1]
    if g is None:
        g = jnp.ones((D,), F32)
        b = jnp.zeros((D,), F32)
    Mp, tm = _row_tiles(B, 256)
    out = pl.pallas_call(
        functools.partial(_head_kernel, use_ln, eps),
        out_shape=jax.ShapeDtypeStruct((Mp, E), F32),
        grid_spec=pltpu.PrefetchScalarGridSpec(
            num_scalar_prefetch=0, grid=(Mp // tm,),
            in_specs=[pl.BlockSpec((tm, D), lambda i: (i, 0)),
                      pl.BlockSpec((1, D), lambda i: (0, 0)),
                      pl.BlockSpec((1, D), lambda i: (0, 0)),
                      pl.BlockSpec((D, E), lambda i: (0, 0))],
            out_specs=pl.BlockSpec((tm, E), lambda i: (i, 0))),
        compiler_params=_params(),
    )(_pad_rows(x, Mp), g.reshape(1, D).astype(F32), b.reshape(1, D).astype(F32),
      proj.astype(BF16))
    return out[:B] if Mp != B else out


# --------------------------- encoders -----------------------------------------

def encode_image(image, P, cfg):
    """VisualTransformer image tower -> L2-normalized image features."""
    B = image.shape[0]
    p = cfg['patch']
    width = cfg['vision_width']
    gh = cfg['image_resolution'] // p
    heads = cfg['vision_heads']

    # Patch conv (kernel=stride=patch, no bias) == patch extraction + matmul.
    x = image.reshape(B, 3, gh, p, gh, p).transpose(0, 2, 4, 1, 3, 5)
    x = x.reshape(B * gh * gh, 3 * p * p)
    x = linear(x, P['v_patch_w'], jnp.zeros((width,), F32), out_dtype=F32)
    x = x.reshape(B, gh * gh, width)

    cls = jnp.broadcast_to(P['v_cls'].reshape(1, 1, width), (B, 1, width))
    x = jnp.concatenate([cls, x], axis=1) + P['v_pos'][None]    # (B, S, width) fp32
    S = x.shape[1]

    # Pad S to a sublane-aligned length; padded keys are masked out of attention.
    Sp = _round_up(S, ROW_ALIGN)
    if Sp != S:
        x = jnp.pad(x, ((0, 0), (0, Sp - S), (0, 0)))
        key_mask = jnp.concatenate(
            [jnp.zeros((1, 1, S), F32), jnp.full((1, 1, Sp - S), -1e9, F32)],
            axis=-1)
        mask_add = jnp.broadcast_to(key_mask, (B, 1, Sp))
    else:
        mask_add = None

    x = layernorm(x.reshape(B * Sp, width), P['v_ln_pre_g'], P['v_ln_pre_b'],
                  1e-5, out_dtype=BF16).reshape(B, Sp, width)

    for lp in P['v_blocks']:
        # Pre-LN ResidualAttentionBlock: x += attn(ln1(x)); x += mlp(ln2(x)).
        x = attn_block(x, lp['in_w'], lp['in_b'], lp['out_w'], lp['out_b'],
                       lp['ln1_g'], lp['ln1_b'], heads,
                       pre_ln=True, post_ln=False, eps=1e-5, mask_add=mask_add)
        x = mlp_block(x.reshape(B * Sp, width), lp['ln2_g'], lp['ln2_b'],
                      lp['fc_w'], lp['fc_b'], lp['proj_w'], lp['proj_b'],
                      'quick_gelu', pre_ln=True, post_ln=False, eps=1e-5
                      ).reshape(B, Sp, width)

    # ln_post([CLS]) @ proj, then L2-normalize (CLIP.forward() semantics).
    return project_and_normalize(x[:, 0, :], P['v_proj'],
                                 P['v_ln_post_g'], P['v_ln_post_b'],
                                 use_ln=True, eps=1e-5)


def encode_text(text, P, cfg):
    """BERT encoder + [CLS] projection -> L2-normalized text features."""
    B, S = text.shape
    H = cfg['text_hidden_size']
    heads = cfg['text_heads']

    # Pad the sequence with [PAD] tokens to a sublane-aligned length; the
    # additive key mask (built from padded text) hides them from attention.
    Sp = _round_up(S, ROW_ALIGN)
    if Sp != S:
        text = jnp.pad(text, ((0, 0), (0, Sp - S)),
                       constant_values=cfg['pad_index'])

    attn_mask = (text != cfg['pad_index']).astype(F32)
    mask_add = ((1.0 - attn_mask) * -10000.0).reshape(B, 1, Sp)  # additive key mask

    # TODO(synk): embedding lookups (word/pos/type) are XLA gathers, not Pallas.
    pos_ids = jnp.arange(Sp)
    emb = (P['t_word_emb'][text]
           + P['t_pos_emb'][pos_ids][None]
           + P['t_type_emb'][0][None, None])
    x = layernorm(emb.reshape(B * Sp, H), P['t_emb_ln_g'], P['t_emb_ln_b'],
                  1e-12, out_dtype=BF16).reshape(B, Sp, H)

    for lp in P['t_blocks']:
        # Post-LN BERT layer: x = LN(x + attn(x)); x = LN(x + mlp(x)).
        x = attn_block(x, lp['qkv_w'], lp['qkv_b'], lp['ao_w'], lp['ao_b'],
                       lp['aln_g'], lp['aln_b'], heads,
                       pre_ln=False, post_ln=True, eps=1e-12, mask_add=mask_add)
        x = mlp_block(x.reshape(B * Sp, H), lp['oln_g'], lp['oln_b'],
                      lp['i_w'], lp['i_b'], lp['o_w'], lp['o_b'], 'gelu',
                      pre_ln=False, post_ln=True, eps=1e-12).reshape(B, Sp, H)

    return project_and_normalize(x[:, 0, :], P['text_projection'],
                                 use_ln=False, eps=1e-12)


def clip_forward(image, text, P, cfg):
    img_f = encode_image(image.astype(F32), P, cfg)
    txt_f = encode_text(text, P, cfg)
    return img_f, txt_f, jnp.exp(P['logit_scale'])


# --------------------------- deterministic parameter init --------------------

def init_params(cfg, key):
    keys = iter(jax.random.split(key, 512))

    def nrm(shape, std=0.02, dtype=F32):
        return (jax.random.normal(next(keys), shape, F32) * std).astype(dtype)

    width = cfg['vision_width']
    D = width
    embed_dim = cfg['embed_dim']
    patch = cfg['patch']
    gh = cfg['image_resolution'] // patch
    H = cfg['text_hidden_size']
    I = cfg['text_intermediate']

    P = {}
    # ---- visual (VisualTransformer); matmul weights stored bf16 once here ----
    P['v_patch_w'] = nrm((3 * patch * patch, width), std=0.05, dtype=BF16)
    scale = width ** -0.5
    P['v_cls'] = nrm((width,), std=scale)
    P['v_pos'] = nrm((gh * gh + 1, width), std=scale)
    P['v_ln_pre_g'] = jnp.ones((width,), F32)
    P['v_ln_pre_b'] = jnp.zeros((width,), F32)
    P['v_blocks'] = []
    for _ in range(cfg['vision_layers']):
        P['v_blocks'].append(dict(
            ln1_g=jnp.ones((D,), F32), ln1_b=jnp.zeros((D,), F32),
            in_w=nrm((D, 3 * D), std=D ** -0.5, dtype=BF16),
            in_b=jnp.zeros((3 * D,), F32),
            out_w=nrm((D, D), std=D ** -0.5, dtype=BF16),
            out_b=jnp.zeros((D,), F32),
            ln2_g=jnp.ones((D,), F32), ln2_b=jnp.zeros((D,), F32),
            fc_w=nrm((D, 4 * D), std=D ** -0.5, dtype=BF16),
            fc_b=jnp.zeros((4 * D,), F32),
            proj_w=nrm((4 * D, D), std=(4 * D) ** -0.5, dtype=BF16),
            proj_b=jnp.zeros((D,), F32),
        ))
    P['v_ln_post_g'] = jnp.ones((width,), F32)
    P['v_ln_post_b'] = jnp.zeros((width,), F32)
    P['v_proj'] = nrm((width, embed_dim), std=scale, dtype=BF16)

    # ---- text (BERT) ----
    P['t_word_emb'] = nrm((cfg['vocab_size'], H))
    P['t_pos_emb'] = nrm((cfg['text_max_pos'], H))
    P['t_type_emb'] = nrm((cfg['text_type_vocab'], H))
    P['t_emb_ln_g'] = jnp.ones((H,), F32)
    P['t_emb_ln_b'] = jnp.zeros((H,), F32)
    P['t_blocks'] = []
    for _ in range(cfg['text_layers']):
        P['t_blocks'].append(dict(
            # qkv_w == concat([Wq^T, Wk^T, Wv^T], axis=1) of BertSelfAttention.
            qkv_w=nrm((H, 3 * H), dtype=BF16), qkv_b=jnp.zeros((3 * H,), F32),
            ao_w=nrm((H, H), dtype=BF16), ao_b=jnp.zeros((H,), F32),
            aln_g=jnp.ones((H,), F32), aln_b=jnp.zeros((H,), F32),
            i_w=nrm((H, I), dtype=BF16), i_b=jnp.zeros((I,), F32),
            o_w=nrm((I, H), dtype=BF16), o_b=jnp.zeros((H,), F32),
            oln_g=jnp.ones((H,), F32), oln_b=jnp.zeros((H,), F32),
        ))
    P['text_projection'] = nrm((H, embed_dim), std=H ** -0.5, dtype=BF16)
    P['logit_scale'] = jnp.asarray(np.log(1.0 / 0.07), F32)
    return P


# --------------------------- main --------------------------------------------

if __name__ == "__main__":
    cfg = dict(
        embed_dim=32,
        image_resolution=16,
        patch=8,
        vision_width=32,
        vision_layers=2,          # int -> VisualTransformer branch of CLIP
        vision_heads=2,           # vision_width // vision_head_width(=16)
        vocab_size=64,
        text_hidden_size=32,
        text_layers=2,
        text_heads=2,
        text_intermediate=64,
        text_max_pos=16,
        text_type_vocab=2,
        pad_index=0,              # tokenizer.vocab['[PAD]']
    )

    root = jax.random.PRNGKey(0)
    k_params, k_img, k_txt = jax.random.split(root, 3)
    P = init_params(cfg, k_params)

    image = jax.random.normal(k_img, (2, 3, 16, 16), F32)            # NCHW
    text = jax.random.randint(k_txt, (2, 8), 1, cfg['vocab_size'], dtype=jnp.int32)
    text = text.at[:, 6:].set(cfg['pad_index'])                      # some padding

    fwd = jax.jit(lambda im, tx: clip_forward(im, tx, P, cfg))
    img_f, txt_f, logit_scale = fwd(image, text)
    jax.block_until_ready((img_f, txt_f, logit_scale))

    assert img_f.shape == (2, cfg['embed_dim'])
    assert txt_f.shape == (2, cfg['embed_dim'])
    assert bool(jnp.all(jnp.isfinite(img_f))) and bool(jnp.all(jnp.isfinite(txt_f)))
    print("KERNEL_OK")
</pallas_src>

<mosaic_0001>
module attributes {stable_mosaic.version = 11 : i64} {
  func.func @_linear_kernel(%arg0: i32, %arg1: memref<16x192xf32, #tpu.memory_space<vmem>>, %arg2: memref<192x32xbf16, #tpu.memory_space<vmem>>, %arg3: memref<1x32xf32, #tpu.memory_space<vmem>>, %arg4: memref<16x32xf32, #tpu.memory_space<vmem>>) attributes {dimension_semantics = [#tpu.dimension_semantics<parallel>], iteration_bounds = array<i64: 1>, scalar_prefetch = 0 : i64, scratch_operands = 0 : i64, tpu.core_type = #tpu.core_type<tc>, window_params = [{transform_indices = @transform_0, window_bounds = array<i64: 16, 192>}, {pipeline_mode = #tpu.pipeline_mode<synchronous>, transform_indices = @transform_1, window_bounds = array<i64: 192, 32>}, {pipeline_mode = #tpu.pipeline_mode<synchronous>, transform_indices = @transform_2, window_bounds = array<i64: 1, 32>}, {transform_indices = @transform_3, window_bounds = array<i64: 16, 32>}]} {
    %c0 = arith.constant 0 : index
    %c0_0 = arith.constant 0 : index
    %0 = vector.load %arg1[%c0, %c0_0] : memref<16x192xf32, #tpu.memory_space<vmem>>, vector<16x192xf32>
    %1 = arith.truncf %0 : vector<16x192xf32> to vector<16x192xbf16>
    %c0_1 = arith.constant 0 : index
    %c0_2 = arith.constant 0 : index
    %2 = vector.load %arg2[%c0_1, %c0_2] : memref<192x32xbf16, #tpu.memory_space<vmem>>, vector<192x32xbf16>
    %cst = arith.constant dense<0.000000e+00> : vector<16x32xf32>
    %3 = tpu.matmul %1, %2, %cst {dimension_numbers = #tpu.dot_dimension_numbers<[1], [0], [0], [1], [0, 0, 1, 1], [], []>} : vector<16x192xbf16>, vector<192x32xbf16>, vector<16x32xf32> -> vector<16x32xf32>
    %c0_3 = arith.constant 0 : index
    %c0_4 = arith.constant 0 : index
    %4 = vector.load %arg3[%c0_3, %c0_4] : memref<1x32xf32, #tpu.memory_space<vmem>>, vector<1x32xf32>
    %5 = vector.broadcast %4 : vector<1x32xf32> to vector<16x32xf32>
    %6 = arith.addf %3, %5 : vector<16x32xf32>
    %c0_5 = arith.constant 0 : index
    %c0_6 = arith.constant 0 : index
    %7 = vector.load %arg4[%c0_5, %c0_6] : memref<16x32xf32, #tpu.memory_space<vmem>>, vector<16x32xf32>
    tpu.vector_store %arg4[%c0_5, %c0_6], %6 {strides = array<i32>} : memref<16x32xf32, #tpu.memory_space<vmem>>, vector<16x32xf32>,
    return
  }
  func.func @transform_0(%arg0: i32) -> (i32, i32) {
    %c0_i32 = arith.constant 0 : i32
    %c0_i32_0 = arith.constant 0 : i32
    return %arg0, %c0_i32 : i32, i32
  }
  func.func @transform_1(%arg0: i32) -> (i32, i32) {
    %c0_i32 = arith.constant 0 : i32
    %c0_i32_0 = arith.constant 0 : i32
    %c0_i32_1 = arith.constant 0 : i32
    return %c0_i32, %c0_i32_0 : i32, i32
  }
  func.func @transform_2(%arg0: i32) -> (i32, i32) {
    %c0_i32 = arith.constant 0 : i32
    %c0_i32_0 = arith.constant 0 : i32
    %c0_i32_1 = arith.constant 0 : i32
    return %c0_i32, %c0_i32_0 : i32, i32
  }
  func.func @transform_3(%arg0: i32) -> (i32, i32) {
    %c0_i32 = arith.constant 0 : i32
    %c0_i32_0 = arith.constant 0 : i32
    return %arg0, %c0_i32 : i32, i32
  }
}

module attributes {stable_mosaic.version = 11 : i64} {
  func.func @_layernorm_kernel(%arg0: i32, %arg1: memref<32x32xf32, #tpu.memory_space<vmem>>, %arg2: memref<1x32xf32, #tpu.memory_space<vmem>>, %arg3: memref<1x32xf32, #tpu.memory_space<vmem>>, %arg4: memref<32x32xbf16, #tpu.memory_space<vmem>>) attributes {dimension_semantics = [#tpu.dimension_semantics<parallel>], iteration_bounds = array<i64: 1>, scalar_prefetch = 0 : i64, scratch_operands = 0 : i64, tpu.core_type = #tpu.core_type<tc>, window_params = [{transform_indices = @transform_0, window_bounds = array<i64: 32, 32>}, {pipeline_mode = #tpu.pipeline_mode<synchronous>, transform_indices = @transform_1, window_bounds = array<i64: 1, 32>}, {pipeline_mode = #tpu.pipeline_mode<synchronous>, transform_indices = @transform_2, window_bounds = array<i64: 1, 32>}, {transform_indices = @transform_3, window_bounds = array<i64: 32, 32>}]} {
    %c0 = arith.constant 0 : index
    %c0_0 = arith.constant 0 : index
    %0 = vector.load %arg1[%c0, %c0_0] : memref<32x32xf32, #tpu.memory_space<vmem>>, vector<32x32xf32>
    %c0_1 = arith.constant 0 : index
    %c0_2 = arith.constant 0 : index
    %1 = vector.load %arg2[%c0_1, %c0_2] : memref<1x32xf32, #tpu.memory_space<vmem>>, vector<1x32xf32>
    %c0_3 = arith.constant 0 : index
    %c0_4 = arith.constant 0 : index
    %2 = vector.load %arg3[%c0_3, %c0_4] : memref<1x32xf32, #tpu.memory_space<vmem>>, vector<1x32xf32>
    %cst = arith.constant dense<0.000000e+00> : vector<32xf32>
    %3 = vector.multi_reduction <add>, %0, %cst [1] : vector<32x32xf32> to vector<32xf32>
    %4 = vector.shape_cast %3 : vector<32xf32> to vector<32x1xf32>
    %cst_5 = arith.constant 3.200000e+01 : f32
    %5 = vector.broadcast %cst_5 : f32 to vector<32x1xf32>
    %6 = arith.divf %4, %5 : vector<32x1xf32>
    %7 = vector.broadcast %6 : vector<32x1xf32> to vector<32x32xf32>
    %8 = arith.subf %0, %7 : vector<32x32xf32>
    %9 = arith.mulf %8, %8 : vector<32x32xf32>
    %cst_6 = arith.constant dense<0.000000e+00> : vector<32xf32>
    %10 = vector.multi_reduction <add>, %9, %cst_6 [1] : vector<32x32xf32> to vector<32xf32>
    %11 = vector.shape_cast %10 : vector<32xf32> to vector<32x1xf32>
    %cst_7 = arith.constant 3.200000e+01 : f32
    %12 = vector.broadcast %cst_7 : f32 to vector<32x1xf32>
    %13 = arith.divf %11, %12 : vector<32x1xf32>
    %cst_8 = arith.constant 9.99999974E-6 : f32
    %14 = vector.broadcast %cst_8 : f32 to vector<32x1xf32>
    %15 = arith.addf %13, %14 : vector<32x1xf32>
    %16 = math.rsqrt %15 : vector<32x1xf32>
    %17 = vector.broadcast %16 : vector<32x1xf32> to vector<32x32xf32>
    %18 = arith.mulf %8, %17 : vector<32x32xf32>
    %19 = vector.broadcast %1 : vector<1x32xf32> to vector<32x32xf32>
    %20 = arith.mulf %18, %19 : vector<32x32xf32>
    %21 = vector.broadcast %2 : vector<1x32xf32> to vector<32x32xf32>
    %22 = arith.addf %20, %21 : vector<32x32xf32>
    %23 = arith.truncf %22 : vector<32x32xf32> to vector<32x32xbf16>
    %c0_9 = arith.constant 0 : index
    %c0_10 = arith.constant 0 : index
    %24 = vector.load %arg4[%c0_9, %c0_10] : memref<32x32xbf16, #tpu.memory_space<vmem>>, vector<32x32xbf16>
    tpu.vector_store %arg4[%c0_9, %c0_10], %23 {strides = array<i32>} : memref<32x32xbf16, #tpu.memory_space<vmem>>, vector<32x32xbf16>,
    return
  }
  func.func @transform_0(%arg0: i32) -> (i32, i32) {
    %c0_i32 = arith.constant 0 : i32
    %c0_i32_0 = arith.constant 0 : i32
    return %arg0, %c0_i32 : i32, i32
  }
  func.func @transform_1(%arg0: i32) -> (i32, i32) {
    %c0_i32 = arith.constant 0 : i32
    %c0_i32_0 = arith.constant 0 : i32
    %c0_i32_1 = arith.constant 0 : i32
    return %c0_i32, %c0_i32_0 : i32, i32
  }
  func.func @transform_2(%arg0: i32) -> (i32, i32) {
    %c0_i32 = arith.constant 0 : i32
    %c0_i32_0 = arith.constant 0 : i32
    %c0_i32_1 = arith.constant 0 : i32
    return %c0_i32, %c0_i32_0 : i32, i32
  }
  func.func @transform_3(%arg0: i32) -> (i32, i32) {
    %c0_i32 = arith.constant 0 : i32
    %c0_i32_0 = arith.constant 0 : i32
    return %arg0, %c0_i32 : i32, i32
  }
}

module attributes {stable_mosaic.version = 11 : i64} {
  func.func @_attn_block_kernel(%arg0: i32, %arg1: memref<1x16x32xbf16, #tpu.memory_space<vmem>>, %arg2: memref<1x1x16xf32, #tpu.memory_space<vmem>>, %arg3: memref<1x32xf32, #tpu.memory_space<vmem>>, %arg4: memref<1x32xf32, #tpu.memory_space<vmem>>, %arg5: memref<32x96xbf16, #tpu.memory_space<vmem>>, %arg6: memref<1x96xf32, #tpu.memory_space<vmem>>, %arg7: memref<32x32xbf16, #tpu.memory_space<vmem>>, %arg8: memref<1x32xf32, #tpu.memory_space<vmem>>, %arg9: memref<1x16x32xbf16, #tpu.memory_space<vmem>>) attributes {dimension_semantics = [#tpu.dimension_semantics<parallel>], iteration_bounds = array<i64: 2>, scalar_prefetch = 0 : i64, scratch_operands = 0 : i64, tpu.core_type = #tpu.core_type<tc>, window_params = [{transform_indices = @transform_0, window_bounds = array<i64: 1, 16, 32>}, {transform_indices = @transform_1, window_bounds = array<i64: 1, 1, 16>}, {pipeline_mode = #tpu.pipeline_mode<synchronous>, transform_indices = @transform_2, window_bounds = array<i64: 1, 32>}, {pipeline_mode = #tpu.pipeline_mode<synchronous>, transform_indices = @transform_3, window_bounds = array<i64: 1, 32>}, {pipeline_mode = #tpu.pipeline_mode<synchronous>, transform_indices = @transform_4, window_bounds = array<i64: 32, 96>}, {pipeline_mode = #tpu.pipeline_mode<synchronous>, transform_indices = @transform_5, window_bounds = array<i64: 1, 96>}, {pipeline_mode = #tpu.pipeline_mode<synchronous>, transform_indices = @transform_6, window_bounds = array<i64: 32, 32>}, {pipeline_mode = #tpu.pipeline_mode<synchronous>, transform_indices = @transform_7, window_bounds = array<i64: 1, 32>}, {transform_indices = @transform_8, window_bounds = array<i64: 1, 16, 32>}]} {
    %c0 = arith.constant 0 : index
    %c0_0 = arith.constant 0 : index
    %c0_1 = arith.constant 0 : index
    %0 = vector.load %arg1[%c0, %c0_0, %c0_1] : memref<1x16x32xbf16, #tpu.memory_space<vmem>>, vector<1x16x32xbf16>
    %1 = vector.shape_cast %0 : vector<1x16x32xbf16> to vector<16x32xbf16>
    %2 = arith.extf %1 : vector<16x32xbf16> to vector<16x32xf32>
    %c0_2 = arith.constant 0 : index
    %c0_3 = arith.constant 0 : index
    %3 = vector.load %arg3[%c0_2, %c0_3] : memref<1x32xf32, #tpu.memory_space<vmem>>, vector<1x32xf32>
    %c0_4 = arith.constant 0 : index
    %c0_5 = arith.constant 0 : index
    %4 = vector.load %arg4[%c0_4, %c0_5] : memref<1x32xf32, #tpu.memory_space<vmem>>, vector<1x32xf32>
    %cst = arith.constant dense<0.000000e+00> : vector<16xf32>
    %5 = vector.multi_reduction <add>, %2, %cst [1] : vector<16x32xf32> to vector<16xf32>
    %6 = vector.shape_cast %5 : vector<16xf32> to vector<16x1xf32>
    %cst_6 = arith.constant 3.200000e+01 : f32
    %7 = vector.broadcast %cst_6 : f32 to vector<16x1xf32>
    %8 = arith.divf %6, %7 : vector<16x1xf32>
    %9 = vector.broadcast %8 : vector<16x1xf32> to vector<16x32xf32>
    %10 = arith.subf %2, %9 : vector<16x32xf32>
    %11 = arith.mulf %10, %10 : vector<16x32xf32>
    %cst_7 = arith.constant dense<0.000000e+00> : vector<16xf32>
    %12 = vector.multi_reduction <add>, %11, %cst_7 [1] : vector<16x32xf32> to vector<16xf32>
    %13 = vector.shape_cast %12 : vector<16xf32> to vector<16x1xf32>
    %cst_8 = arith.constant 3.200000e+01 : f32
    %14 = vector.broadcast %cst_8 : f32 to vector<16x1xf32>
    %15 = arith.divf %13, %14 : vector<16x1xf32>
    %cst_9 = arith.constant 9.99999974E-6 : f32
    %16 = vector.broadcast %cst_9 : f32 to vector<16x1xf32>
    %17 = arith.addf %15, %16 : vector<16x1xf32>
    %18 = math.rsqrt %17 : vector<16x1xf32>
    %19 = vector.broadcast %18 : vector<16x1xf32> to vector<16x32xf32>
    %20 = arith.mulf %10, %19 : vector<16x32xf32>
    %21 = vector.broadcast %3 : vector<1x32xf32> to vector<16x32xf32>
    %22 = arith.mulf %20, %21 : vector<16x32xf32>
    %23 = vector.broadcast %4 : vector<1x32xf32> to vector<16x32xf32>
    %24 = arith.addf %22, %23 : vector<16x32xf32>
    %25 = arith.truncf %24 : vector<16x32xf32> to vector<16x32xbf16>
    %c0_10 = arith.constant 0 : index
    %c0_11 = arith.constant 0 : index
    %26 = vector.load %arg5[%c0_10, %c0_11] : memref<32x96xbf16, #tpu.memory_space<vmem>>, vector<32x96xbf16>
    %cst_12 = arith.constant dense<0.000000e+00> : vector<16x96xf32>
    %27 = tpu.matmul %25, %26, %cst_12 {dimension_numbers = #tpu.dot_dimension_numbers<[1], [0], [0], [1], [0, 0, 1, 1], [], []>} : vector<16x32xbf16>, vector<32x96xbf16>, vector<16x96xf32> -> vector<16x96xf32>
    %c0_13 = arith.constant 0 : index
    %c0_14 = arith.constant 0 : index
    %28 = vector.load %arg6[%c0_13, %c0_14] : memref<1x96xf32, #tpu.memory_space<vmem>>, vector<1x96xf32>
    %29 = vector.broadcast %28 : vector<1x96xf32> to vector<16x96xf32>
    %30 = arith.addf %27, %29 : vector<16x96xf32>
    %31 = vector.extract_strided_slice %30 {offsets = [0, 0], sizes = [16, 32], strides = [1, 1]} : vector<16x96xf32> to vector<16x32xf32>
    %cst_15 = arith.constant 2.500000e-01 : f32
    %32 = vector.broadcast %cst_15 : f32 to vector<16x32xf32>
    %33 = arith.mulf %31, %32 : vector<16x32xf32>
    %34 = arith.truncf %33 : vector<16x32xf32> to vector<16x32xbf16>
    %35 = vector.extract_strided_slice %30 {offsets = [0, 32], sizes = [16, 32], strides = [1, 1]} : vector<16x96xf32> to vector<16x32xf32>
    %36 = arith.truncf %35 : vector<16x32xf32> to vector<16x32xbf16>
    %37 = vector.extract_strided_slice %30 {offsets = [0, 64], sizes = [16, 32], strides = [1, 1]} : vector<16x96xf32> to vector<16x32xf32>
    %38 = arith.truncf %37 : vector<16x32xf32> to vector<16x32xbf16>
    %39 = vector.extract_strided_slice %34 {offsets = [0, 0], sizes = [16, 16], strides = [1, 1]} : vector<16x32xbf16> to vector<16x16xbf16>
    %40 = vector.extract_strided_slice %36 {offsets = [0, 0], sizes = [16, 16], strides = [1, 1]} : vector<16x32xbf16> to vector<16x16xbf16>
    %cst_16 = arith.constant dense<0.000000e+00> : vector<16x16xf32>
    %41 = tpu.matmul %39, %40, %cst_16 {dimension_numbers = #tpu.dot_dimension_numbers<[1], [1], [0], [0], [0, 0, 1, 0], [], []>} : vector<16x16xbf16>, vector<16x16xbf16>, vector<16x16xf32> -> vector<16x16xf32>
    %c0_17 = arith.constant 0 : index
    %c0_18 = arith.constant 0 : index
    %c0_19 = arith.constant 0 : index
    %42 = vector.load %arg2[%c0_17, %c0_18, %c0_19] : memref<1x1x16xf32, #tpu.memory_space<vmem>>, vector<1x1x16xf32>
    %43 = vector.shape_cast %42 : vector<1x1x16xf32> to vector<1x16xf32>
    %44 = vector.broadcast %43 : vector<1x16xf32> to vector<16x16xf32>
    %45 = arith.addf %41, %44 : vector<16x16xf32>
    %cst_20 = arith.constant dense<0xFF800000> : vector<16xf32>
    %46 = vector.multi_reduction <maximumf>, %45, %cst_20 [1] : vector<16x16xf32> to vector<16xf32>
    %47 = vector.shape_cast %46 : vector<16xf32> to vector<16x1xf32>
    %48 = vector.broadcast %47 : vector<16x1xf32> to vector<16x16xf32>
    %49 = arith.subf %45, %48 : vector<16x16xf32>
    %50 = math.exp %49 : vector<16x16xf32>
    %cst_21 = arith.constant dense<0.000000e+00> : vector<16xf32>
    %51 = vector.multi_reduction <add>, %50, %cst_21 [1] : vector<16x16xf32> to vector<16xf32>
    %52 = vector.shape_cast %51 : vector<16xf32> to vector<16x1xf32>
    %53 = tpu.reciprocal %52 {approx = true} : vector<16x1xf32> -> vector<16x1xf32>
    %54 = vector.broadcast %53 : vector<16x1xf32> to vector<16x16xf32>
    %55 = arith.mulf %50, %54 : vector<16x16xf32>
    %56 = arith.truncf %55 : vector<16x16xf32> to vector<16x16xbf16>
    %57 = vector.extract_strided_slice %38 {offsets = [0, 0], sizes = [16, 16], strides = [1, 1]} : vector<16x32xbf16> to vector<16x16xbf16>
    %cst_22 = arith.constant dense<0.000000e+00> : vector<16x16xf32>
    %58 = tpu.matmul %56, %57, %cst_22 {dimension_numbers = #tpu.dot_dimension_numbers<[1], [0], [0], [1], [0, 0, 1, 1], [], []>} : vector<16x16xbf16>, vector<16x16xbf16>, vector<16x16xf32> -> vector<16x16xf32>
    %59 = arith.truncf %58 : vector<16x16xf32> to vector<16x16xbf16>
    %60 = vector.extract_strided_slice %34 {offsets = [0, 16], sizes = [16, 16], strides = [1, 1]} : vector<16x32xbf16> to vector<16x16xbf16>
    %61 = vector.extract_strided_slice %36 {offsets = [0, 16], sizes = [16, 16], strides = [1, 1]} : vector<16x32xbf16> to vector<16x16xbf16>
    %cst_23 = arith.constant dense<0.000000e+00> : vector<16x16xf32>
    %62 = tpu.matmul %60, %61, %cst_23 {dimension_numbers = #tpu.dot_dimension_numbers<[1], [1], [0], [0], [0, 0, 1, 0], [], []>} : vector<16x16xbf16>, vector<16x16xbf16>, vector<16x16xf32> -> vector<16x16xf32>
    %c0_24 = arith.constant 0 : index
    %c0_25 = arith.constant 0 : index
    %c0_26 = arith.constant 0 : index
    %63 = vector.load %arg2[%c0_24, %c0_25, %c0_26] : memref<1x1x16xf32, #tpu.memory_space<vmem>>, vector<1x1x16xf32>
    %64 = vector.shape_cast %63 : vector<1x1x16xf32> to vector<1x16xf32>
    %65 = vector.broadcast %64 : vector<1x16xf32> to vector<16x16xf32>
    %66 = arith.addf %62, %65 : vector<16x16xf32>
    %cst_27 = arith.constant dense<0xFF800000> : vector<16xf32>
    %67 = vector.multi_reduction <maximumf>, %66, %cst_27 [1] : vector<16x16xf32> to vector<16xf32>
    %68 = vector.shape_cast %67 : vector<16xf32> to vector<16x1xf32>
    %69 = vector.broadcast %68 : vector<16x1xf32> to vector<16x16xf32>
    %70 = arith.subf %66, %69 : vector<16x16xf32>
    %71 = math.exp %70 : vector<16x16xf32>
    %cst_28 = arith.constant dense<0.000000e+00> : vector<16xf32>
    %72 = vector.multi_reduction <add>, %71, %cst_28 [1] : vector<16x16xf32> to vector<16xf32>
    %73 = vector.shape_cast %72 : vector<16xf32> to vector<16x1xf32>
    %74 = tpu.reciprocal %73 {approx = true} : vector<16x1xf32> -> vector<16x1xf32>
    %75 = vector.broadcast %74 : vector<16x1xf32> to vector<16x16xf32>
    %76 = arith.mulf %71, %75 : vector<16x16xf32>
    %77 = arith.truncf %76 : vector<16x16xf32> to vector<16x16xbf16>
    %78 = vector.extract_strided_slice %38 {offsets = [0, 16], sizes = [16, 16], strides = [1, 1]} : vector<16x32xbf16> to vector<16x16xbf16>
    %cst_29 = arith.constant dense<0.000000e+00> : vector<16x16xf32>
    %79 = tpu.matmul %77, %78, %cst_29 {dimension_numbers = #tpu.dot_dimension_numbers<[1], [0], [0], [1], [0, 0, 1, 1], [], []>} : vector<16x16xbf16>, vector<16x16xbf16>, vector<16x16xf32> -> vector<16x16xf32>
    %80 = arith.truncf %79 : vector<16x16xf32> to vector<16x16xbf16>
    %81 = tpu.concatenate %59, %80 in 1 : vector<16x16xbf16>, vector<16x16xbf16> -> vector<16x32xbf16>
    %c0_30 = arith.constant 0 : index
    %c0_31 = arith.constant 0 : index
    %82 = vector.load %arg7[%c0_30, %c0_31] : memref<32x32xbf16, #tpu.memory_space<vmem>>, vector<32x32xbf16>
    %cst_32 = arith.constant dense<0.000000e+00> : vector<16x32xf32>
    %83 = tpu.matmul %81, %82, %cst_32 {dimension_numbers = #tpu.dot_dimension_numbers<[1], [0], [0], [1], [0, 0, 1, 1], [], []>} : vector<16x32xbf16>, vector<32x32xbf16>, vector<16x32xf32> -> vector<16x32xf32>
    %84 = arith.addf %2, %83 : vector<16x32xf32>
    %c0_33 = arith.constant 0 : index
    %c0_34 = arith.constant 0 : index
    %85 = vector.load %arg8[%c0_33, %c0_34] : memref<1x32xf32, #tpu.memory_space<vmem>>, vector<1x32xf32>
    %86 = vector.broadcast %85 : vector<1x32xf32> to vector<16x32xf32>
    %87 = arith.addf %84, %86 : vector<16x32xf32>
    %88 = arith.truncf %87 : vector<16x32xf32> to vector<16x32xbf16>
    %c0_35 = arith.constant 0 : index
    %c0_36 = arith.constant 0 : index
    %c0_37 = arith.constant 0 : index
    %89 = vector.load %arg9[%c0_35, %c0_36, %c0_37] : memref<1x16x32xbf16, #tpu.memory_space<vmem>>, vector<1x16x32xbf16>
    %90 = vector.shape_cast %89 : vector<1x16x32xbf16> to vector<16x32xbf16>
    %91 = vector.shape_cast %88 : vector<16x32xbf16> to vector<1x16x32xbf16>
    tpu.vector_store %arg9[%c0_35, %c0_36, %c0_37], %91 {strides = array<i32>} : memref<1x16x32xbf16, #tpu.memory_space<vmem>>, vector<1x16x32xbf16>,
    return
  }
  func.func @transform_0(%arg0: i32) -> (i32, i32, i32) {
    %c0_i32 = arith.constant 0 : i32
    %c0_i32_0 = arith.constant 0 : i32
    %c0_i32_1 = arith.constant 0 : i32
    return %arg0, %c0_i32, %c0_i32_0 : i32, i32, i32
  }
  func.func @transform_1(%arg0: i32) -> (i32, i32, i32) {
    %c0_i32 = arith.constant 0 : i32
    %c0_i32_0 = arith.constant 0 : i32
    %c0_i32_1 = arith.constant 0 : i32
    return %arg0, %c0_i32, %c0_i32_0 : i32, i32, i32
  }
  func.func @transform_2(%arg0: i32) -> (i32, i32) {
    %c0_i32 = arith.constant 0 : i32
    %c0_i32_0 = arith.constant 0 : i32
    %c0_i32_1 = arith.constant 0 : i32
    return %c0_i32, %c0_i32_0 : i32, i32
  }
  func.func @transform_3(%arg0: i32) -> (i32, i32) {
    %c0_i32 = arith.constant 0 : i32
    %c0_i32_0 = arith.constant 0 : i32
    %c0_i32_1 = arith.constant 0 : i32
    return %c0_i32, %c0_i32_0 : i32, i32
  }
  func.func @transform_4(%arg0: i32) -> (i32, i32) {
    %c0_i32 = arith.constant 0 : i32
    %c0_i32_0 = arith.constant 0 : i32
    %c0_i32_1 = arith.constant 0 : i32
    return %c0_i32, %c0_i32_0 : i32, i32
  }
  func.func @transform_5(%arg0: i32) -> (i32, i32) {
    %c0_i32 = arith.constant 0 : i32
    %c0_i32_0 = arith.constant 0 : i32
    %c0_i32_1 = arith.constant 0 : i32
    return %c0_i32, %c0_i32_0 : i32, i32
  }
  func.func @transform_6(%arg0: i32) -> (i32, i32) {
    %c0_i32 = arith.constant 0 : i32
    %c0_i32_0 = arith.constant 0 : i32
    %c0_i32_1 = arith.constant 0 : i32
    return %c0_i32, %c0_i32_0 : i32, i32
  }
  func.func @transform_7(%arg0: i32) -> (i32, i32) {
    %c0_i32 = arith.constant 0 : i32
    %c0_i32_0 = arith.constant 0 : i32
    %c0_i32_1 = arith.constant 0 : i32
    return %c0_i32, %c0_i32_0 : i32, i32
  }
  func.func @transform_8(%arg0: i32) -> (i32, i32, i32) {
    %c0_i32 = arith.constant 0 : i32
    %c0_i32_0 = arith.constant 0 : i32
    %c0_i32_1 = arith.constant 0 : i32
    return %arg0, %c0_i32, %c0_i32_0 : i32, i32, i32
  }
}

module attributes {stable_mosaic.version = 11 : i64} {
  func.func @_mlp_block_kernel(%arg0: i32, %arg1: memref<32x32xbf16, #tpu.memory_space<vmem>>, %arg2: memref<1x32xf32, #tpu.memory_space<vmem>>, %arg3: memref<1x32xf32, #tpu.memory_space<vmem>>, %arg4: memref<32x128xbf16, #tpu.memory_space<vmem>>, %arg5: memref<1x128xf32, #tpu.memory_space<vmem>>, %arg6: memref<128x32xbf16, #tpu.memory_space<vmem>>, %arg7: memref<1x32xf32, #tpu.memory_space<vmem>>, %arg8: memref<32x32xbf16, #tpu.memory_space<vmem>>) attributes {dimension_semantics = [#tpu.dimension_semantics<parallel>], iteration_bounds = array<i64: 1>, scalar_prefetch = 0 : i64, scratch_operands = 0 : i64, tpu.core_type = #tpu.core_type<tc>, window_params = [{transform_indices = @transform_0, window_bounds = array<i64: 32, 32>}, {pipeline_mode = #tpu.pipeline_mode<synchronous>, transform_indices = @transform_1, window_bounds = array<i64: 1, 32>}, {pipeline_mode = #tpu.pipeline_mode<synchronous>, transform_indices = @transform_2, window_bounds = array<i64: 1, 32>}, {pipeline_mode = #tpu.pipeline_mode<synchronous>, transform_indices = @transform_3, window_bounds = array<i64: 32, 128>}, {pipeline_mode = #tpu.pipeline_mode<synchronous>, transform_indices = @transform_4, window_bounds = array<i64: 1, 128>}, {pipeline_mode = #tpu.pipeline_mode<synchronous>, transform_indices = @transform_5, window_bounds = array<i64: 128, 32>}, {pipeline_mode = #tpu.pipeline_mode<synchronous>, transform_indices = @transform_6, window_bounds = array<i64: 1, 32>}, {transform_indices = @transform_7, window_bounds = array<i64: 32, 32>}]} {
    %c0 = arith.constant 0 : index
    %c0_0 = arith.constant 0 : index
    %0 = vector.load %arg1[%c0, %c0_0] : memref<32x32xbf16, #tpu.memory_space<vmem>>, vector<32x32xbf16>
    %1 = arith.extf %0 : vector<32x32xbf16> to vector<32x32xf32>
    %c0_1 = arith.constant 0 : index
    %c0_2 = arith.constant 0 : index
    %2 = vector.load %arg2[%c0_1, %c0_2] : memref<1x32xf32, #tpu.memory_space<vmem>>, vector<1x32xf32>
    %c0_3 = arith.constant 0 : index
    %c0_4 = arith.constant 0 : index
    %3 = vector.load %arg3[%c0_3, %c0_4] : memref<1x32xf32, #tpu.memory_space<vmem>>, vector<1x32xf32>
    %cst = arith.constant dense<0.000000e+00> : vector<32xf32>
    %4 = vector.multi_reduction <add>, %1, %cst [1] : vector<32x32xf32> to vector<32xf32>
    %5 = vector.shape_cast %4 : vector<32xf32> to vector<32x1xf32>
    %cst_5 = arith.constant 3.200000e+01 : f32
    %6 = vector.broadcast %cst_5 : f32 to vector<32x1xf32>
    %7 = arith.divf %5, %6 : vector<32x1xf32>
    %8 = vector.broadcast %7 : vector<32x1xf32> to vector<32x32xf32>
    %9 = arith.subf %1, %8 : vector<32x32xf32>
    %10 = arith.mulf %9, %9 : vector<32x32xf32>
    %cst_6 = arith.constant dense<0.000000e+00> : vector<32xf32>
    %11 = vector.multi_reduction <add>, %10, %cst_6 [1] : vector<32x32xf32> to vector<32xf32>
    %12 = vector.shape_cast %11 : vector<32xf32> to vector<32x1xf32>
    %cst_7 = arith.constant 3.200000e+01 : f32
    %13 = vector.broadcast %cst_7 : f32 to vector<32x1xf32>
    %14 = arith.divf %12, %13 : vector<32x1xf32>
    %cst_8 = arith.constant 9.99999974E-6 : f32
    %15 = vector.broadcast %cst_8 : f32 to vector<32x1xf32>
    %16 = arith.addf %14, %15 : vector<32x1xf32>
    %17 = math.rsqrt %16 : vector<32x1xf32>
    %18 = vector.broadcast %17 : vector<32x1xf32> to vector<32x32xf32>
    %19 = arith.mulf %9, %18 : vector<32x32xf32>
    %20 = vector.broadcast %2 : vector<1x32xf32> to vector<32x32xf32>
    %21 = arith.mulf %19, %20 : vector<32x32xf32>
    %22 = vector.broadcast %3 : vector<1x32xf32> to vector<32x32xf32>
    %23 = arith.addf %21, %22 : vector<32x32xf32>
    %24 = arith.truncf %23 : vector<32x32xf32> to vector<32x32xbf16>
    %c0_9 = arith.constant 0 : index
    %c0_10 = arith.constant 0 : index
    %25 = vector.load %arg4[%c0_9, %c0_10] : memref<32x128xbf16, #tpu.memory_space<vmem>>, vector<32x128xbf16>
    %cst_11 = arith.constant dense<0.000000e+00> : vector<32x128xf32>
    %26 = tpu.matmul %24, %25, %cst_11 {dimension_numbers = #tpu.dot_dimension_numbers<[1], [0], [0], [1], [0, 0, 1, 1], [], []>} : vector<32x32xbf16>, vector<32x128xbf16>, vector<32x128xf32> -> vector<32x128xf32>
    %c0_12 = arith.constant 0 : index
    %c0_13 = arith.constant 0 : index
    %27 = vector.load %arg5[%c0_12, %c0_13] : memref<1x128xf32, #tpu.memory_space<vmem>>, vector<1x128xf32>
    %28 = vector.broadcast %27 : vector<1x128xf32> to vector<32x128xf32>
    %29 = arith.addf %26, %28 : vector<32x128xf32>
    %cst_14 = arith.constant 1.702000e+00 : f32
    %30 = vector.broadcast %cst_14 : f32 to vector<32x128xf32>
    %31 = arith.mulf %30, %29 : vector<32x128xf32>
    %32 = arith.negf %31 : vector<32x128xf32>
    %33 = math.exp %32 : vector<32x128xf32>
    %cst_15 = arith.constant 1.000000e+00 : f32
    %34 = vector.broadcast %cst_15 : f32 to vector<32x128xf32>
    %35 = arith.addf %34, %33 : vector<32x128xf32>
    %36 = arith.divf %34, %35 : vector<32x128xf32>
    %37 = arith.mulf %29, %36 : vector<32x128xf32>
    %38 = arith.truncf %37 : vector<32x128xf32> to vector<32x128xbf16>
    %c0_16 = arith.constant 0 : index
    %c0_17 = arith.constant 0 : index
    %39 = vector.load %arg6[%c0_16, %c0_17] : memref<128x32xbf16, #tpu.memory_space<vmem>>, vector<128x32xbf16>
    %cst_18 = arith.constant dense<0.000000e+00> : vector<32x32xf32>
    %40 = tpu.matmul %38, %39, %cst_18 {dimension_numbers = #tpu.dot_dimension_numbers<[1], [0], [0], [1], [0, 0, 1, 1], [], []>} : vector<32x128xbf16>, vector<128x32xbf16>, vector<32x32xf32> -> vector<32x32xf32>
    %c0_19 = arith.constant 0 : index
    %c0_20 = arith.constant 0 : index
    %41 = vector.load %arg7[%c0_19, %c0_20] : memref<1x32xf32, #tpu.memory_space<vmem>>, vector<1x32xf32>
    %42 = vector.broadcast %41 : vector<1x32xf32> to vector<32x32xf32>
    %43 = arith.addf %40, %42 : vector<32x32xf32>
    %44 = arith.addf %1, %43 : vector<32x32xf32>
    %45 = arith.truncf %44 : vector<32x32xf32> to vector<32x32xbf16>
    %c0_21 = arith.constant 0 : index
    %c0_22 = arith.constant 0 : index
    %46 = vector.load %arg8[%c0_21, %c0_22] : memref<32x32xbf16, #tpu.memory_space<vmem>>, vector<32x32xbf16>
    tpu.vector_store %arg8[%c0_21, %c0_22], %45 {strides = array<i32>} : memref<32x32xbf16, #tpu.memory_space<vmem>>, vector<32x32xbf16>,
    return
  }
  func.func @transform_0(%arg0: i32) -> (i32, i32) {
    %c0_i32 = arith.constant 0 : i32
    %c0_i32_0 = arith.constant 0 : i32
    return %arg0, %c0_i32 : i32, i32
  }
  func.func @transform_1(%arg0: i32) -> (i32, i32) {
    %c0_i32 = arith.constant 0 : i32
    %c0_i32_0 = arith.constant 0 : i32
    %c0_i32_1 = arith.constant 0 : i32
    return %c0_i32, %c0_i32_0 : i32, i32
  }
  func.func @transform_2(%arg0: i32) -> (i32, i32) {
    %c0_i32 = arith.constant 0 : i32
    %c0_i32_0 = arith.constant 0 : i32
    %c0_i32_1 = arith.constant 0 : i32
    return %c0_i32, %c0_i32_0 : i32, i32
  }
  func.func @transform_3(%arg0: i32) -> (i32, i32) {
    %c0_i32 = arith.constant 0 : i32
    %c0_i32_0 = arith.constant 0 : i32
    %c0_i32_1 = arith.constant 0 : i32
    return %c0_i32, %c0_i32_0 : i32, i32
  }
  func.func @transform_4(%arg0: i32) -> (i32, i32) {
    %c0_i32 = arith.constant 0 : i32
    %c0_i32_0 = arith.constant 0 : i32
    %c0_i32_1 = arith.constant 0 : i32
    return %c0_i32, %c0_i32_0 : i32, i32
  }
  func.func @transform_5(%arg0: i32) -> (i32, i32) {
    %c0_i32 = arith.constant 0 : i32
    %c0_i32_0 = arith.constant 0 : i32
    %c0_i32_1 = arith.constant 0 : i32
    return %c0_i32, %c0_i32_0 : i32, i32
  }
  func.func @transform_6(%arg0: i32) -> (i32, i32) {
    %c0_i32 = arith.constant 0 : i32
    %c0_i32_0 = arith.constant 0 : i32
    %c0_i32_1 = arith.constant 0 : i32
    return %c0_i32, %c0_i32_0 : i32, i32
  }
  func.func @transform_7(%arg0: i32) -> (i32, i32) {
    %c0_i32 = arith.constant 0 : i32
    %c0_i32_0 = arith.constant 0 : i32
    return %arg0, %c0_i32 : i32, i32
  }
}

module attributes {stable_mosaic.version = 11 : i64} {
  func.func @_head_kernel(%arg0: i32, %arg1: memref<16x32xbf16, #tpu.memory_space<vmem>>, %arg2: memref<1x32xf32, #tpu.memory_space<vmem>>, %arg3: memref<1x32xf32, #tpu.memory_space<vmem>>, %arg4: memref<32x32xbf16, #tpu.memory_space<vmem>>, %arg5: memref<16x32xf32, #tpu.memory_space<vmem>>) attributes {dimension_semantics = [#tpu.dimension_semantics<parallel>], iteration_bounds = array<i64: 1>, scalar_prefetch = 0 : i64, scratch_operands = 0 : i64, tpu.core_type = #tpu.core_type<tc>, window_params = [{transform_indices = @transform_0, window_bounds = array<i64: 16, 32>}, {pipeline_mode = #tpu.pipeline_mode<synchronous>, transform_indices = @transform_1, window_bounds = array<i64: 1, 32>}, {pipeline_mode = #tpu.pipeline_mode<synchronous>, transform_indices = @transform_2, window_bounds = array<i64: 1, 32>}, {pipeline_mode = #tpu.pipeline_mode<synchronous>, transform_indices = @transform_3, window_bounds = array<i64: 32, 32>}, {transform_indices = @transform_4, window_bounds = array<i64: 16, 32>}]} {
    %c0 = arith.constant 0 : index
    %c0_0 = arith.constant 0 : index
    %0 = vector.load %arg1[%c0, %c0_0] : memref<16x32xbf16, #tpu.memory_space<vmem>>, vector<16x32xbf16>
    %1 = arith.extf %0 : vector<16x32xbf16> to vector<16x32xf32>
    %c0_1 = arith.constant 0 : index
    %c0_2 = arith.constant 0 : index
    %2 = vector.load %arg2[%c0_1, %c0_2] : memref<1x32xf32, #tpu.memory_space<vmem>>, vector<1x32xf32>
    %c0_3 = arith.constant 0 : index
    %c0_4 = arith.constant 0 : index
    %3 = vector.load %arg3[%c0_3, %c0_4] : memref<1x32xf32, #tpu.memory_space<vmem>>, vector<1x32xf32>
    %cst = arith.constant dense<0.000000e+00> : vector<16xf32>
    %4 = vector.multi_reduction <add>, %1, %cst [1] : vector<16x32xf32> to vector<16xf32>
    %5 = vector.shape_cast %4 : vector<16xf32> to vector<16x1xf32>
    %cst_5 = arith.constant 3.200000e+01 : f32
    %6 = vector.broadcast %cst_5 : f32 to vector<16x1xf32>
    %7 = arith.divf %5, %6 : vector<16x1xf32>
    %8 = vector.broadcast %7 : vector<16x1xf32> to vector<16x32xf32>
    %9 = arith.subf %1, %8 : vector<16x32xf32>
    %10 = arith.mulf %9, %9 : vector<16x32xf32>
    %cst_6 = arith.constant dense<0.000000e+00> : vector<16xf32>
    %11 = vector.multi_reduction <add>, %10, %cst_6 [1] : vector<16x32xf32> to vector<16xf32>
    %12 = vector.shape_cast %11 : vector<16xf32> to vector<16x1xf32>
    %cst_7 = arith.constant 3.200000e+01 : f32
    %13 = vector.broadcast %cst_7 : f32 to vector<16x1xf32>
    %14 = arith.divf %12, %13 : vector<16x1xf32>
    %cst_8 = arith.constant 9.99999974E-6 : f32
    %15 = vector.broadcast %cst_8 : f32 to vector<16x1xf32>
    %16 = arith.addf %14, %15 : vector<16x1xf32>
    %17 = math.rsqrt %16 : vector<16x1xf32>
    %18 = vector.broadcast %17 : vector<16x1xf32> to vector<16x32xf32>
    %19 = arith.mulf %9, %18 : vector<16x32xf32>
    %20 = vector.broadcast %2 : vector<1x32xf32> to vector<16x32xf32>
    %21 = arith.mulf %19, %20 : vector<16x32xf32>
    %22 = vector.broadcast %3 : vector<1x32xf32> to vector<16x32xf32>
    %23 = arith.addf %21, %22 : vector<16x32xf32>
    %24 = arith.truncf %23 : vector<16x32xf32> to vector<16x32xbf16>
    %c0_9 = arith.constant 0 : index
    %c0_10 = arith.constant 0 : index
    %25 = vector.load %arg4[%c0_9, %c0_10] : memref<32x32xbf16, #tpu.memory_space<vmem>>, vector<32x32xbf16>
    %cst_11 = arith.constant dense<0.000000e+00> : vector<16x32xf32>
    %26 = tpu.matmul %24, %25, %cst_11 {dimension_numbers = #tpu.dot_dimension_numbers<[1], [0], [0], [1], [0, 0, 1, 1], [], []>} : vector<16x32xbf16>, vector<32x32xbf16>, vector<16x32xf32> -> vector<16x32xf32>
    %27 = arith.mulf %26, %26 : vector<16x32xf32>
    %cst_12 = arith.constant dense<0.000000e+00> : vector<16xf32>
    %28 = vector.multi_reduction <add>, %27, %cst_12 [1] : vector<16x32xf32> to vector<16xf32>
    %29 = vector.shape_cast %28 : vector<16xf32> to vector<16x1xf32>
    %cst_13 = arith.constant 1.000000e-30 : f32
    %30 = vector.broadcast %cst_13 : f32 to vector<16x1xf32>
    %31 = arith.maximumf %29, %30 : vector<16x1xf32>
    %32 = math.rsqrt %31 : vector<16x1xf32>
    %33 = vector.broadcast %32 : vector<16x1xf32> to vector<16x32xf32>
    %34 = arith.mulf %26, %33 : vector<16x32xf32>
    %c0_14 = arith.constant 0 : index
    %c0_15 = arith.constant 0 : index
    %35 = vector.load %arg5[%c0_14, %c0_15] : memref<16x32xf32, #tpu.memory_space<vmem>>, vector<16x32xf32>
    tpu.vector_store %arg5[%c0_14, %c0_15], %34 {strides = array<i32>} : memref<16x32xf32, #tpu.memory_space<vmem>>, vector<16x32xf32>,
    return
  }
  func.func @transform_0(%arg0: i32) -> (i32, i32) {
    %c0_i32 = arith.constant 0 : i32
    %c0_i32_0 = arith.constant 0 : i32
    return %arg0, %c0_i32 : i32, i32
  }
  func.func @transform_1(%arg0: i32) -> (i32, i32) {
    %c0_i32 = arith.constant 0 : i32
    %c0_i32_0 = arith.constant 0 : i32
    %c0_i32_1 = arith.constant 0 : i32
    return %c0_i32, %c0_i32_0 : i32, i32
  }
  func.func @transform_2(%arg0: i32) -> (i32, i32) {
    %c0_i32 = arith.constant 0 : i32
    %c0_i32_0 = arith.constant 0 : i32
    %c0_i32_1 = arith.constant 0 : i32
    return %c0_i32, %c0_i32_0 : i32, i32
  }
  func.func @transform_3(%arg0: i32) -> (i32, i32) {
    %c0_i32 = arith.constant 0 : i32
    %c0_i32_0 = arith.constant 0 : i32
    %c0_i32_1 = arith.constant 0 : i32
    return %c0_i32, %c0_i32_0 : i32, i32
  }
  func.func @transform_4(%arg0: i32) -> (i32, i32) {
    %c0_i32 = arith.constant 0 : i32
    %c0_i32_0 = arith.constant 0 : i32
    return %arg0, %c0_i32 : i32, i32
  }
}

module attributes {stable_mosaic.version = 11 : i64} {
  func.func @_layernorm_kernel(%arg0: i32, %arg1: memref<32x32xf32, #tpu.memory_space<vmem>>, %arg2: memref<1x32xf32, #tpu.memory_space<vmem>>, %arg3: memref<1x32xf32, #tpu.memory_space<vmem>>, %arg4: memref<32x32xbf16, #tpu.memory_space<vmem>>) attributes {dimension_semantics = [#tpu.dimension_semantics<parallel>], iteration_bounds = array<i64: 1>, scalar_prefetch = 0 : i64, scratch_operands = 0 : i64, tpu.core_type = #tpu.core_type<tc>, window_params = [{transform_indices = @transform_0, window_bounds = array<i64: 32, 32>}, {pipeline_mode = #tpu.pipeline_mode<synchronous>, transform_indices = @transform_1, window_bounds = array<i64: 1, 32>}, {pipeline_mode = #tpu.pipeline_mode<synchronous>, transform_indices = @transform_2, window_bounds = array<i64: 1, 32>}, {transform_indices = @transform_3, window_bounds = array<i64: 32, 32>}]} {
    %c0 = arith.constant 0 : index
    %c0_0 = arith.constant 0 : index
    %0 = vector.load %arg1[%c0, %c0_0] : memref<32x32xf32, #tpu.memory_space<vmem>>, vector<32x32xf32>
    %c0_1 = arith.constant 0 : index
    %c0_2 = arith.constant 0 : index
    %1 = vector.load %arg2[%c0_1, %c0_2] : memref<1x32xf32, #tpu.memory_space<vmem>>, vector<1x32xf32>
    %c0_3 = arith.constant 0 : index
    %c0_4 = arith.constant 0 : index
    %2 = vector.load %arg3[%c0_3, %c0_4] : memref<1x32xf32, #tpu.memory_space<vmem>>, vector<1x32xf32>
    %cst = arith.constant dense<0.000000e+00> : vector<32xf32>
    %3 = vector.multi_reduction <add>, %0, %cst [1] : vector<32x32xf32> to vector<32xf32>
    %4 = vector.shape_cast %3 : vector<32xf32> to vector<32x1xf32>
    %cst_5 = arith.constant 3.200000e+01 : f32
    %5 = vector.broadcast %cst_5 : f32 to vector<32x1xf32>
    %6 = arith.divf %4, %5 : vector<32x1xf32>
    %7 = vector.broadcast %6 : vector<32x1xf32> to vector<32x32xf32>
    %8 = arith.subf %0, %7 : vector<32x32xf32>
    %9 = arith.mulf %8, %8 : vector<32x32xf32>
    %cst_6 = arith.constant dense<0.000000e+00> : vector<32xf32>
    %10 = vector.multi_reduction <add>, %9, %cst_6 [1] : vector<32x32xf32> to vector<32xf32>
    %11 = vector.shape_cast %10 : vector<32xf32> to vector<32x1xf32>
    %cst_7 = arith.constant 3.200000e+01 : f32
    %12 = vector.broadcast %cst_7 : f32 to vector<32x1xf32>
    %13 = arith.divf %11, %12 : vector<32x1xf32>
    %cst_8 = arith.constant 9.99999996E-13 : f32
    %14 = vector.broadcast %cst_8 : f32 to vector<32x1xf32>
    %15 = arith.addf %13, %14 : vector<32x1xf32>
    %16 = math.rsqrt %15 : vector<32x1xf32>
    %17 = vector.broadcast %16 : vector<32x1xf32> to vector<32x32xf32>
    %18 = arith.mulf %8, %17 : vector<32x32xf32>
    %19 = vector.broadcast %1 : vector<1x32xf32> to vector<32x32xf32>
    %20 = arith.mulf %18, %19 : vector<32x32xf32>
    %21 = vector.broadcast %2 : vector<1x32xf32> to vector<32x32xf32>
    %22 = arith.addf %20, %21 : vector<32x32xf32>
    %23 = arith.truncf %22 : vector<32x32xf32> to vector<32x32xbf16>
    %c0_9 = arith.constant 0 : index
    %c0_10 = arith.constant 0 : index
    %24 = vector.load %arg4[%c0_9, %c0_10] : memref<32x32xbf16, #tpu.memory_space<vmem>>, vector<32x32xbf16>
    tpu.vector_store %arg4[%c0_9, %c0_10], %23 {strides = array<i32>} : memref<32x32xbf16, #tpu.memory_space<vmem>>, vector<32x32xbf16>,
    return
  }
  func.func @transform_0(%arg0: i32) -> (i32, i32) {
    %c0_i32 = arith.constant 0 : i32
    %c0_i32_0 = arith.constant 0 : i32
    return %arg0, %c0_i32 : i32, i32
  }
  func.func @transform_1(%arg0: i32) -> (i32, i32) {
    %c0_i32 = arith.constant 0 : i32
    %c0_i32_0 = arith.constant 0 : i32
    %c0_i32_1 = arith.constant 0 : i32
    return %c0_i32, %c0_i32_0 : i32, i32
  }
  func.func @transform_2(%arg0: i32) -> (i32, i32) {
    %c0_i32 = arith.constant 0 : i32
    %c0_i32_0 = arith.constant 0 : i32
    %c0_i32_1 = arith.constant 0 : i32
    return %c0_i32, %c0_i32_0 : i32, i32
  }
  func.func @transform_3(%arg0: i32) -> (i32, i32) {
    %c0_i32 = arith.constant 0 : i32
    %c0_i32_0 = arith.constant 0 : i32
    return %arg0, %c0_i32 : i32, i32
  }
}

module attributes {stable_mosaic.version = 11 : i64} {
  func.func @_attn_block_kernel(%arg0: i32, %arg1: memref<1x16x32xbf16, #tpu.memory_space<vmem>>, %arg2: memref<1x1x16xf32, #tpu.memory_space<vmem>>, %arg3: memref<1x32xf32, #tpu.memory_space<vmem>>, %arg4: memref<1x32xf32, #tpu.memory_space<vmem>>, %arg5: memref<32x96xbf16, #tpu.memory_space<vmem>>, %arg6: memref<1x96xf32, #tpu.memory_space<vmem>>, %arg7: memref<32x32xbf16, #tpu.memory_space<vmem>>, %arg8: memref<1x32xf32, #tpu.memory_space<vmem>>, %arg9: memref<1x16x32xbf16, #tpu.memory_space<vmem>>) attributes {dimension_semantics = [#tpu.dimension_semantics<parallel>], iteration_bounds = array<i64: 2>, scalar_prefetch = 0 : i64, scratch_operands = 0 : i64, tpu.core_type = #tpu.core_type<tc>, window_params = [{transform_indices = @transform_0, window_bounds = array<i64: 1, 16, 32>}, {transform_indices = @transform_1, window_bounds = array<i64: 1, 1, 16>}, {pipeline_mode = #tpu.pipeline_mode<synchronous>, transform_indices = @transform_2, window_bounds = array<i64: 1, 32>}, {pipeline_mode = #tpu.pipeline_mode<synchronous>, transform_indices = @transform_3, window_bounds = array<i64: 1, 32>}, {pipeline_mode = #tpu.pipeline_mode<synchronous>, transform_indices = @transform_4, window_bounds = array<i64: 32, 96>}, {pipeline_mode = #tpu.pipeline_mode<synchronous>, transform_indices = @transform_5, window_bounds = array<i64: 1, 96>}, {pipeline_mode = #tpu.pipeline_mode<synchronous>, transform_indices = @transform_6, window_bounds = array<i64: 32, 32>}, {pipeline_mode = #tpu.pipeline_mode<synchronous>, transform_indices = @transform_7, window_bounds = array<i64: 1, 32>}, {transform_indices = @transform_8, window_bounds = array<i64: 1, 16, 32>}]} {
    %c0 = arith.constant 0 : index
    %c0_0 = arith.constant 0 : index
    %c0_1 = arith.constant 0 : index
    %0 = vector.load %arg1[%c0, %c0_0, %c0_1] : memref<1x16x32xbf16, #tpu.memory_space<vmem>>, vector<1x16x32xbf16>
    %1 = vector.shape_cast %0 : vector<1x16x32xbf16> to vector<16x32xbf16>
    %2 = arith.extf %1 : vector<16x32xbf16> to vector<16x32xf32>
    %3 = arith.truncf %2 : vector<16x32xf32> to vector<16x32xbf16>
    %c0_2 = arith.constant 0 : index
    %c0_3 = arith.constant 0 : index
    %4 = vector.load %arg5[%c0_2, %c0_3] : memref<32x96xbf16, #tpu.memory_space<vmem>>, vector<32x96xbf16>
    %cst = arith.constant dense<0.000000e+00> : vector<16x96xf32>
    %5 = tpu.matmul %3, %4, %cst {dimension_numbers = #tpu.dot_dimension_numbers<[1], [0], [0], [1], [0, 0, 1, 1], [], []>} : vector<16x32xbf16>, vector<32x96xbf16>, vector<16x96xf32> -> vector<16x96xf32>
    %c0_4 = arith.constant 0 : index
    %c0_5 = arith.constant 0 : index
    %6 = vector.load %arg6[%c0_4, %c0_5] : memref<1x96xf32, #tpu.memory_space<vmem>>, vector<1x96xf32>
    %7 = vector.broadcast %6 : vector<1x96xf32> to vector<16x96xf32>
    %8 = arith.addf %5, %7 : vector<16x96xf32>
    %9 = vector.extract_strided_slice %8 {offsets = [0, 0], sizes = [16, 32], strides = [1, 1]} : vector<16x96xf32> to vector<16x32xf32>
    %cst_6 = arith.constant 2.500000e-01 : f32
    %10 = vector.broadcast %cst_6 : f32 to vector<16x32xf32>
    %11 = arith.mulf %9, %10 : vector<16x32xf32>
    %12 = arith.truncf %11 : vector<16x32xf32> to vector<16x32xbf16>
    %13 = vector.extract_strided_slice %8 {offsets = [0, 32], sizes = [16, 32], strides = [1, 1]} : vector<16x96xf32> to vector<16x32xf32>
    %14 = arith.truncf %13 : vector<16x32xf32> to vector<16x32xbf16>
    %15 = vector.extract_strided_slice %8 {offsets = [0, 64], sizes = [16, 32], strides = [1, 1]} : vector<16x96xf32> to vector<16x32xf32>
    %16 = arith.truncf %15 : vector<16x32xf32> to vector<16x32xbf16>
    %17 = vector.extract_strided_slice %12 {offsets = [0, 0], sizes = [16, 16], strides = [1, 1]} : vector<16x32xbf16> to vector<16x16xbf16>
    %18 = vector.extract_strided_slice %14 {offsets = [0, 0], sizes = [16, 16], strides = [1, 1]} : vector<16x32xbf16> to vector<16x16xbf16>
    %cst_7 = arith.constant dense<0.000000e+00> : vector<16x16xf32>
    %19 = tpu.matmul %17, %18, %cst_7 {dimension_numbers = #tpu.dot_dimension_numbers<[1], [1], [0], [0], [0, 0, 1, 0], [], []>} : vector<16x16xbf16>, vector<16x16xbf16>, vector<16x16xf32> -> vector<16x16xf32>
    %c0_8 = arith.constant 0 : index
    %c0_9 = arith.constant 0 : index
    %c0_10 = arith.constant 0 : index
    %20 = vector.load %arg2[%c0_8, %c0_9, %c0_10] : memref<1x1x16xf32, #tpu.memory_space<vmem>>, vector<1x1x16xf32>
    %21 = vector.shape_cast %20 : vector<1x1x16xf32> to vector<1x16xf32>
    %22 = vector.broadcast %21 : vector<1x16xf32> to vector<16x16xf32>
    %23 = arith.addf %19, %22 : vector<16x16xf32>
    %cst_11 = arith.constant dense<0xFF800000> : vector<16xf32>
    %24 = vector.multi_reduction <maximumf>, %23, %cst_11 [1] : vector<16x16xf32> to vector<16xf32>
    %25 = vector.shape_cast %24 : vector<16xf32> to vector<16x1xf32>
    %26 = vector.broadcast %25 : vector<16x1xf32> to vector<16x16xf32>
    %27 = arith.subf %23, %26 : vector<16x16xf32>
    %28 = math.exp %27 : vector<16x16xf32>
    %cst_12 = arith.constant dense<0.000000e+00> : vector<16xf32>
    %29 = vector.multi_reduction <add>, %28, %cst_12 [1] : vector<16x16xf32> to vector<16xf32>
    %30 = vector.shape_cast %29 : vector<16xf32> to vector<16x1xf32>
    %31 = tpu.reciprocal %30 {approx = true} : vector<16x1xf32> -> vector<16x1xf32>
    %32 = vector.broadcast %31 : vector<16x1xf32> to vector<16x16xf32>
    %33 = arith.mulf %28, %32 : vector<16x16xf32>
    %34 = arith.truncf %33 : vector<16x16xf32> to vector<16x16xbf16>
    %35 = vector.extract_strided_slice %16 {offsets = [0, 0], sizes = [16, 16], strides = [1, 1]} : vector<16x32xbf16> to vector<16x16xbf16>
    %cst_13 = arith.constant dense<0.000000e+00> : vector<16x16xf32>
    %36 = tpu.matmul %34, %35, %cst_13 {dimension_numbers = #tpu.dot_dimension_numbers<[1], [0], [0], [1], [0, 0, 1, 1], [], []>} : vector<16x16xbf16>, vector<16x16xbf16>, vector<16x16xf32> -> vector<16x16xf32>
    %37 = arith.truncf %36 : vector<16x16xf32> to vector<16x16xbf16>
    %38 = vector.extract_strided_slice %12 {offsets = [0, 16], sizes = [16, 16], strides = [1, 1]} : vector<16x32xbf16> to vector<16x16xbf16>
    %39 = vector.extract_strided_slice %14 {offsets = [0, 16], sizes = [16, 16], strides = [1, 1]} : vector<16x32xbf16> to vector<16x16xbf16>
    %cst_14 = arith.constant dense<0.000000e+00> : vector<16x16xf32>
    %40 = tpu.matmul %38, %39, %cst_14 {dimension_numbers = #tpu.dot_dimension_numbers<[1], [1], [0], [0], [0, 0, 1, 0], [], []>} : vector<16x16xbf16>, vector<16x16xbf16>, vector<16x16xf32> -> vector<16x16xf32>
    %c0_15 = arith.constant 0 : index
    %c0_16 = arith.constant 0 : index
    %c0_17 = arith.constant 0 : index
    %41 = vector.load %arg2[%c0_15, %c0_16, %c0_17] : memref<1x1x16xf32, #tpu.memory_space<vmem>>, vector<1x1x16xf32>
    %42 = vector.shape_cast %41 : vector<1x1x16xf32> to vector<1x16xf32>
    %43 = vector.broadcast %42 : vector<1x16xf32> to vector<16x16xf32>
    %44 = arith.addf %40, %43 : vector<16x16xf32>
    %cst_18 = arith.constant dense<0xFF800000> : vector<16xf32>
    %45 = vector.multi_reduction <maximumf>, %44, %cst_18 [1] : vector<16x16xf32> to vector<16xf32>
    %46 = vector.shape_cast %45 : vector<16xf32> to vector<16x1xf32>
    %47 = vector.broadcast %46 : vector<16x1xf32> to vector<16x16xf32>
    %48 = arith.subf %44, %47 : vector<16x16xf32>
    %49 = math.exp %48 : vector<16x16xf32>
    %cst_19 = arith.constant dense<0.000000e+00> : vector<16xf32>
    %50 = vector.multi_reduction <add>, %49, %cst_19 [1] : vector<16x16xf32> to vector<16xf32>
    %51 = vector.shape_cast %50 : vector<16xf32> to vector<16x1xf32>
    %52 = tpu.reciprocal %51 {approx = true} : vector<16x1xf32> -> vector<16x1xf32>
    %53 = vector.broadcast %52 : vector<16x1xf32> to vector<16x16xf32>
    %54 = arith.mulf %49, %53 : vector<16x16xf32>
    %55 = arith.truncf %54 : vector<16x16xf32> to vector<16x16xbf16>
    %56 = vector.extract_strided_slice %16 {offsets = [0, 16], sizes = [16, 16], strides = [1, 1]} : vector<16x32xbf16> to vector<16x16xbf16>
    %cst_20 = arith.constant dense<0.000000e+00> : vector<16x16xf32>
    %57 = tpu.matmul %55, %56, %cst_20 {dimension_numbers = #tpu.dot_dimension_numbers<[1], [0], [0], [1], [0, 0, 1, 1], [], []>} : vector<16x16xbf16>, vector<16x16xbf16>, vector<16x16xf32> -> vector<16x16xf32>
    %58 = arith.truncf %57 : vector<16x16xf32> to vector<16x16xbf16>
    %59 = tpu.concatenate %37, %58 in 1 : vector<16x16xbf16>, vector<16x16xbf16> -> vector<16x32xbf16>
    %c0_21 = arith.constant 0 : index
    %c0_22 = arith.constant 0 : index
    %60 = vector.load %arg7[%c0_21, %c0_22] : memref<32x32xbf16, #tpu.memory_space<vmem>>, vector<32x32xbf16>
    %cst_23 = arith.constant dense<0.000000e+00> : vector<16x32xf32>
    %61 = tpu.matmul %59, %60, %cst_23 {dimension_numbers = #tpu.dot_dimension_numbers<[1], [0], [0], [1], [0, 0, 1, 1], [], []>} : vector<16x32xbf16>, vector<32x32xbf16>, vector<16x32xf32> -> vector<16x32xf32>
    %62 = arith.addf %2, %61 : vector<16x32xf32>
    %c0_24 = arith.constant 0 : index
    %c0_25 = arith.constant 0 : index
    %63 = vector.load %arg8[%c0_24, %c0_25] : memref<1x32xf32, #tpu.memory_space<vmem>>, vector<1x32xf32>
    %64 = vector.broadcast %63 : vector<1x32xf32> to vector<16x32xf32>
    %65 = arith.addf %62, %64 : vector<16x32xf32>
    %c0_26 = arith.constant 0 : index
    %c0_27 = arith.constant 0 : index
    %66 = vector.load %arg3[%c0_26, %c0_27] : memref<1x32xf32, #tpu.memory_space<vmem>>, vector<1x32xf32>
    %c0_28 = arith.constant 0 : index
    %c0_29 = arith.constant 0 : index
    %67 = vector.load %arg4[%c0_28, %c0_29] : memref<1x32xf32, #tpu.memory_space<vmem>>, vector<1x32xf32>
    %cst_30 = arith.constant dense<0.000000e+00> : vector<16xf32>
    %68 = vector.multi_reduction <add>, %65, %cst_30 [1] : vector<16x32xf32> to vector<16xf32>
    %69 = vector.shape_cast %68 : vector<16xf32> to vector<16x1xf32>
    %cst_31 = arith.constant 3.200000e+01 : f32
    %70 = vector.broadcast %cst_31 : f32 to vector<16x1xf32>
    %71 = arith.divf %69, %70 : vector<16x1xf32>
    %72 = vector.broadcast %71 : vector<16x1xf32> to vector<16x32xf32>
    %73 = arith.subf %65, %72 : vector<16x32xf32>
    %74 = arith.mulf %73, %73 : vector<16x32xf32>
    %cst_32 = arith.constant dense<0.000000e+00> : vector<16xf32>
    %75 = vector.multi_reduction <add>, %74, %cst_32 [1] : vector<16x32xf32> to vector<16xf32>
    %76 = vector.shape_cast %75 : vector<16xf32> to vector<16x1xf32>
    %cst_33 = arith.constant 3.200000e+01 : f32
    %77 = vector.broadcast %cst_33 : f32 to vector<16x1xf32>
    %78 = arith.divf %76, %77 : vector<16x1xf32>
    %cst_34 = arith.constant 9.99999996E-13 : f32
    %79 = vector.broadcast %cst_34 : f32 to vector<16x1xf32>
    %80 = arith.addf %78, %79 : vector<16x1xf32>
    %81 = math.rsqrt %80 : vector<16x1xf32>
    %82 = vector.broadcast %81 : vector<16x1xf32> to vector<16x32xf32>
    %83 = arith.mulf %73, %82 : vector<16x32xf32>
    %84 = vector.broadcast %66 : vector<1x32xf32> to vector<16x32xf32>
    %85 = arith.mulf %83, %84 : vector<16x32xf32>
    %86 = vector.broadcast %67 : vector<1x32xf32> to vector<16x32xf32>
    %87 = arith.addf %85, %86 : vector<16x32xf32>
    %88 = arith.truncf %87 : vector<16x32xf32> to vector<16x32xbf16>
    %c0_35 = arith.constant 0 : index
    %c0_36 = arith.constant 0 : index
    %c0_37 = arith.constant 0 : index
    %89 = vector.load %arg9[%c0_35, %c0_36, %c0_37] : memref<1x16x32xbf16, #tpu.memory_space<vmem>>, vector<1x16x32xbf16>
    %90 = vector.shape_cast %89 : vector<1x16x32xbf16> to vector<16x32xbf16>
    %91 = vector.shape_cast %88 : vector<16x32xbf16> to vector<1x16x32xbf16>
    tpu.vector_store %arg9[%c0_35, %c0_36, %c0_37], %91 {strides = array<i32>} : memref<1x16x32xbf16, #tpu.memory_space<vmem>>, vector<1x16x32xbf16>,
    return
  }
  func.func @transform_0(%arg0: i32) -> (i32, i32, i32) {
    %c0_i32 = arith.constant 0 : i32
    %c0_i32_0 = arith.constant 0 : i32
    %c0_i32_1 = arith.constant 0 : i32
    return %arg0, %c0_i32, %c0_i32_0 : i32, i32, i32
  }
  func.func @transform_1(%arg0: i32) -> (i32, i32, i32) {
    %c0_i32 = arith.constant 0 : i32
    %c0_i32_0 = arith.constant 0 : i32
    %c0_i32_1 = arith.constant 0 : i32
    return %arg0, %c0_i32, %c0_i32_0 : i32, i32, i32
  }
  func.func @transform_2(%arg0: i32) -> (i32, i32) {
    %c0_i32 = arith.constant 0 : i32
    %c0_i32_0 = arith.constant 0 : i32
    %c0_i32_1 = arith.constant 0 : i32
    return %c0_i32, %c0_i32_0 : i32, i32
  }
  func.func @transform_3(%arg0: i32) -> (i32, i32) {
    %c0_i32 = arith.constant 0 : i32
    %c0_i32_0 = arith.constant 0 : i32
    %c0_i32_1 = arith.constant 0 : i32
    return %c0_i32, %c0_i32_0 : i32, i32
  }
  func.func @transform_4(%arg0: i32) -> (i32, i32) {
    %c0_i32 = arith.constant 0 : i32
    %c0_i32_0 = arith.constant 0 : i32
    %c0_i32_1 = arith.constant 0 : i32
    return %c0_i32, %c0_i32_0 : i32, i32
  }
  func.func @transform_5(%arg0: i32) -> (i32, i32) {
    %c0_i32 = arith.constant 0 : i32
    %c0_i32_0 = arith.constant 0 : i32
    %c0_i32_1 = arith.constant 0 : i32
    return %c0_i32, %c0_i32_0 : i32, i32
  }
  func.func @transform_6(%arg0: i32) -> (i32, i32) {
    %c0_i32 = arith.constant 0 : i32
    %c0_i32_0 = arith.constant 0 : i32
    %c0_i32_1 = arith.constant 0 : i32
    return %c0_i32, %c0_i32_0 : i32, i32
  }
  func.func @transform_7(%arg0: i32) -> (i32, i32) {
    %c0_i32 = arith.constant 0 : i32
    %c0_i32_0 = arith.constant 0 : i32
    %c0_i32_1 = arith.constant 0 : i32
    return %c0_i32, %c0_i32_0 : i32, i32
  }
  func.func @transform_8(%arg0: i32) -> (i32, i32, i32) {
    %c0_i32 = arith.constant 0 : i32
    %c0_i32_0 = arith.constant 0 : i32
    %c0_i32_1 = arith.constant 0 : i32
    return %arg0, %c0_i32, %c0_i32_0 : i32, i32, i32
  }
}

module attributes {stable_mosaic.version = 11 : i64} {
  func.func @_mlp_block_kernel(%arg0: i32, %arg1: memref<32x32xbf16, #tpu.memory_space<vmem>>, %arg2: memref<1x32xf32, #tpu.memory_space<vmem>>, %arg3: memref<1x32xf32, #tpu.memory_space<vmem>>, %arg4: memref<32x64xbf16, #tpu.memory_space<vmem>>, %arg5: memref<1x64xf32, #tpu.memory_space<vmem>>, %arg6: memref<64x32xbf16, #tpu.memory_space<vmem>>, %arg7: memref<1x32xf32, #tpu.memory_space<vmem>>, %arg8: memref<32x32xbf16, #tpu.memory_space<vmem>>) attributes {dimension_semantics = [#tpu.dimension_semantics<parallel>], iteration_bounds = array<i64: 1>, scalar_prefetch = 0 : i64, scratch_operands = 0 : i64, tpu.core_type = #tpu.core_type<tc>, window_params = [{transform_indices = @transform_0, window_bounds = array<i64: 32, 32>}, {pipeline_mode = #tpu.pipeline_mode<synchronous>, transform_indices = @transform_1, window_bounds = array<i64: 1, 32>}, {pipeline_mode = #tpu.pipeline_mode<synchronous>, transform_indices = @transform_2, window_bounds = array<i64: 1, 32>}, {pipeline_mode = #tpu.pipeline_mode<synchronous>, transform_indices = @transform_3, window_bounds = array<i64: 32, 64>}, {pipeline_mode = #tpu.pipeline_mode<synchronous>, transform_indices = @transform_4, window_bounds = array<i64: 1, 64>}, {pipeline_mode = #tpu.pipeline_mode<synchronous>, transform_indices = @transform_5, window_bounds = array<i64: 64, 32>}, {pipeline_mode = #tpu.pipeline_mode<synchronous>, transform_indices = @transform_6, window_bounds = array<i64: 1, 32>}, {transform_indices = @transform_7, window_bounds = array<i64: 32, 32>}]} {
    %c0 = arith.constant 0 : index
    %c0_0 = arith.constant 0 : index
    %0 = vector.load %arg1[%c0, %c0_0] : memref<32x32xbf16, #tpu.memory_space<vmem>>, vector<32x32xbf16>
    %1 = arith.extf %0 : vector<32x32xbf16> to vector<32x32xf32>
    %c0_1 = arith.constant 0 : index
    %c0_2 = arith.constant 0 : index
    %2 = vector.load %arg2[%c0_1, %c0_2] : memref<1x32xf32, #tpu.memory_space<vmem>>, vector<1x32xf32>
    %c0_3 = arith.constant 0 : index
    %c0_4 = arith.constant 0 : index
    %3 = vector.load %arg3[%c0_3, %c0_4] : memref<1x32xf32, #tpu.memory_space<vmem>>, vector<1x32xf32>
    %4 = arith.truncf %1 : vector<32x32xf32> to vector<32x32xbf16>
    %c0_5 = arith.constant 0 : index
    %c0_6 = arith.constant 0 : index
    %5 = vector.load %arg4[%c0_5, %c0_6] : memref<32x64xbf16, #tpu.memory_space<vmem>>, vector<32x64xbf16>
    %cst = arith.constant dense<0.000000e+00> : vector<32x64xf32>
    %6 = tpu.matmul %4, %5, %cst {dimension_numbers = #tpu.dot_dimension_numbers<[1], [0], [0], [1], [0, 0, 1, 1], [], []>} : vector<32x32xbf16>, vector<32x64xbf16>, vector<32x64xf32> -> vector<32x64xf32>
    %c0_7 = arith.constant 0 : index
    %c0_8 = arith.constant 0 : index
    %7 = vector.load %arg5[%c0_7, %c0_8] : memref<1x64xf32, #tpu.memory_space<vmem>>, vector<1x64xf32>
    %8 = vector.broadcast %7 : vector<1x64xf32> to vector<32x64xf32>
    %9 = arith.addf %6, %8 : vector<32x64xf32>
    %10 = arith.mulf %9, %9 : vector<32x64xf32>
    %11 = arith.mulf %9, %10 : vector<32x64xf32>
    %cst_9 = arith.constant 4.471500e-02 : f32
    %12 = vector.broadcast %cst_9 : f32 to vector<32x64xf32>
    %13 = arith.mulf %12, %11 : vector<32x64xf32>
    %14 = arith.addf %9, %13 : vector<32x64xf32>
    %cst_10 = arith.constant 0.797884583 : f32
    %15 = vector.broadcast %cst_10 : f32 to vector<32x64xf32>
    %16 = arith.mulf %15, %14 : vector<32x64xf32>
    %17 = math.tanh %16 : vector<32x64xf32>
    %cst_11 = arith.constant 1.000000e+00 : f32
    %18 = vector.broadcast %cst_11 : f32 to vector<32x64xf32>
    %19 = arith.addf %18, %17 : vector<32x64xf32>
    %cst_12 = arith.constant 5.000000e-01 : f32
    %20 = vector.broadcast %cst_12 : f32 to vector<32x64xf32>
    %21 = arith.mulf %20, %19 : vector<32x64xf32>
    %22 = arith.mulf %9, %21 : vector<32x64xf32>
    %23 = arith.truncf %22 : vector<32x64xf32> to vector<32x64xbf16>
    %c0_13 = arith.constant 0 : index
    %c0_14 = arith.constant 0 : index
    %24 = vector.load %arg6[%c0_13, %c0_14] : memref<64x32xbf16, #tpu.memory_space<vmem>>, vector<64x32xbf16>
    %cst_15 = arith.constant dense<0.000000e+00> : vector<32x32xf32>
    %25 = tpu.matmul %23, %24, %cst_15 {dimension_numbers = #tpu.dot_dimension_numbers<[1], [0], [0], [1], [0, 0, 1, 1], [], []>} : vector<32x64xbf16>, vector<64x32xbf16>, vector<32x32xf32> -> vector<32x32xf32>
    %c0_16 = arith.constant 0 : index
    %c0_17 = arith.constant 0 : index
    %26 = vector.load %arg7[%c0_16, %c0_17] : memref<1x32xf32, #tpu.memory_space<vmem>>, vector<1x32xf32>
    %27 = vector.broadcast %26 : vector<1x32xf32> to vector<32x32xf32>
    %28 = arith.addf %25, %27 : vector<32x32xf32>
    %29 = arith.addf %1, %28 : vector<32x32xf32>
    %cst_18 = arith.constant dense<0.000000e+00> : vector<32xf32>
    %30 = vector.multi_reduction <add>, %29, %cst_18 [1] : vector<32x32xf32> to vector<32xf32>
    %31 = vector.shape_cast %30 : vector<32xf32> to vector<32x1xf32>
    %cst_19 = arith.constant 3.200000e+01 : f32
    %32 = vector.broadcast %cst_19 : f32 to vector<32x1xf32>
    %33 = arith.divf %31, %32 : vector<32x1xf32>
    %34 = vector.broadcast %33 : vector<32x1xf32> to vector<32x32xf32>
    %35 = arith.subf %29, %34 : vector<32x32xf32>
    %36 = arith.mulf %35, %35 : vector<32x32xf32>
    %cst_20 = arith.constant dense<0.000000e+00> : vector<32xf32>
    %37 = vector.multi_reduction <add>, %36, %cst_20 [1] : vector<32x32xf32> to vector<32xf32>
    %38 = vector.shape_cast %37 : vector<32xf32> to vector<32x1xf32>
    %cst_21 = arith.constant 3.200000e+01 : f32
    %39 = vector.broadcast %cst_21 : f32 to vector<32x1xf32>
    %40 = arith.divf %38, %39 : vector<32x1xf32>
    %cst_22 = arith.constant 9.99999996E-13 : f32
    %41 = vector.broadcast %cst_22 : f32 to vector<32x1xf32>
    %42 = arith.addf %40, %41 : vector<32x1xf32>
    %43 = math.rsqrt %42 : vector<32x1xf32>
    %44 = vector.broadcast %43 : vector<32x1xf32> to vector<32x32xf32>
    %45 = arith.mulf %35, %44 : vector<32x32xf32>
    %46 = vector.broadcast %2 : vector<1x32xf32> to vector<32x32xf32>
    %47 = arith.mulf %45, %46 : vector<32x32xf32>
    %48 = vector.broadcast %3 : vector<1x32xf32> to vector<32x32xf32>
    %49 = arith.addf %47, %48 : vector<32x32xf32>
    %50 = arith.truncf %49 : vector<32x32xf32> to vector<32x32xbf16>
    %c0_23 = arith.constant 0 : index
    %c0_24 = arith.constant 0 : index
    %51 = vector.load %arg8[%c0_23, %c0_24] : memref<32x32xbf16, #tpu.memory_space<vmem>>, vector<32x32xbf16>
    tpu.vector_store %arg8[%c0_23, %c0_24], %50 {strides = array<i32>} : memref<32x32xbf16, #tpu.memory_space<vmem>>, vector<32x32xbf16>,
    return
  }
  func.func @transform_0(%arg0: i32) -> (i32, i32) {
    %c0_i32 = arith.constant 0 : i32
    %c0_i32_0 = arith.constant 0 : i32
    return %arg0, %c0_i32 : i32, i32
  }
  func.func @transform_1(%arg0: i32) -> (i32, i32) {
    %c0_i32 = arith.constant 0 : i32
    %c0_i32_0 = arith.constant 0 : i32
    %c0_i32_1 = arith.constant 0 : i32
    return %c0_i32, %c0_i32_0 : i32, i32
  }
  func.func @transform_2(%arg0: i32) -> (i32, i32) {
    %c0_i32 = arith.constant 0 : i32
    %c0_i32_0 = arith.constant 0 : i32
    %c0_i32_1 = arith.constant 0 : i32
    return %c0_i32, %c0_i32_0 : i32, i32
  }
  func.func @transform_3(%arg0: i32) -> (i32, i32) {
    %c0_i32 = arith.constant 0 : i32
    %c0_i32_0 = arith.constant 0 : i32
    %c0_i32_1 = arith.constant 0 : i32
    return %c0_i32, %c0_i32_0 : i32, i32
  }
  func.func @transform_4(%arg0: i32) -> (i32, i32) {
    %c0_i32 = arith.constant 0 : i32
    %c0_i32_0 = arith.constant 0 : i32
    %c0_i32_1 = arith.constant 0 : i32
    return %c0_i32, %c0_i32_0 : i32, i32
  }
  func.func @transform_5(%arg0: i32) -> (i32, i32) {
    %c0_i32 = arith.constant 0 : i32
    %c0_i32_0 = arith.constant 0 : i32
    %c0_i32_1 = arith.constant 0 : i32
    return %c0_i32, %c0_i32_0 : i32, i32
  }
  func.func @transform_6(%arg0: i32) -> (i32, i32) {
    %c0_i32 = arith.constant 0 : i32
    %c0_i32_0 = arith.constant 0 : i32
    %c0_i32_1 = arith.constant 0 : i32
    return %c0_i32, %c0_i32_0 : i32, i32
  }
  func.func @transform_7(%arg0: i32) -> (i32, i32) {
    %c0_i32 = arith.constant 0 : i32
    %c0_i32_0 = arith.constant 0 : i32
    return %arg0, %c0_i32 : i32, i32
  }
}

module attributes {stable_mosaic.version = 11 : i64} {
  func.func @_head_kernel(%arg0: i32, %arg1: memref<16x32xbf16, #tpu.memory_space<vmem>>, %arg2: memref<1x32xf32, #tpu.memory_space<vmem>>, %arg3: memref<1x32xf32, #tpu.memory_space<vmem>>, %arg4: memref<32x32xbf16, #tpu.memory_space<vmem>>, %arg5: memref<16x32xf32, #tpu.memory_space<vmem>>) attributes {dimension_semantics = [#tpu.dimension_semantics<parallel>], iteration_bounds = array<i64: 1>, scalar_prefetch = 0 : i64, scratch_operands = 0 : i64, tpu.core_type = #tpu.core_type<tc>, window_params = [{transform_indices = @transform_0, window_bounds = array<i64: 16, 32>}, {pipeline_mode = #tpu.pipeline_mode<synchronous>, transform_indices = @transform_1, window_bounds = array<i64: 1, 32>}, {pipeline_mode = #tpu.pipeline_mode<synchronous>, transform_indices = @transform_2, window_bounds = array<i64: 1, 32>}, {pipeline_mode = #tpu.pipeline_mode<synchronous>, transform_indices = @transform_3, window_bounds = array<i64: 32, 32>}, {transform_indices = @transform_4, window_bounds = array<i64: 16, 32>}]} {
    %c0 = arith.constant 0 : index
    %c0_0 = arith.constant 0 : index
    %0 = vector.load %arg1[%c0, %c0_0] : memref<16x32xbf16, #tpu.memory_space<vmem>>, vector<16x32xbf16>
    %1 = arith.extf %0 : vector<16x32xbf16> to vector<16x32xf32>
    %2 = arith.truncf %1 : vector<16x32xf32> to vector<16x32xbf16>
    %c0_1 = arith.constant 0 : index
    %c0_2 = arith.constant 0 : index
    %3 = vector.load %arg4[%c0_1, %c0_2] : memref<32x32xbf16, #tpu.memory_space<vmem>>, vector<32x32xbf16>
    %cst = arith.constant dense<0.000000e+00> : vector<16x32xf32>
    %4 = tpu.matmul %2, %3, %cst {dimension_numbers = #tpu.dot_dimension_numbers<[1], [0], [0], [1], [0, 0, 1, 1], [], []>} : vector<16x32xbf16>, vector<32x32xbf16>, vector<16x32xf32> -> vector<16x32xf32>
    %5 = arith.mulf %4, %4 : vector<16x32xf32>
    %cst_3 = arith.constant dense<0.000000e+00> : vector<16xf32>
    %6 = vector.multi_reduction <add>, %5, %cst_3 [1] : vector<16x32xf32> to vector<16xf32>
    %7 = vector.shape_cast %6 : vector<16xf32> to vector<16x1xf32>
    %cst_4 = arith.constant 1.000000e-30 : f32
    %8 = vector.broadcast %cst_4 : f32 to vector<16x1xf32>
    %9 = arith.maximumf %7, %8 : vector<16x1xf32>
    %10 = math.rsqrt %9 : vector<16x1xf32>
    %11 = vector.broadcast %10 : vector<16x1xf32> to vector<16x32xf32>
    %12 = arith.mulf %4, %11 : vector<16x32xf32>
    %c0_5 = arith.constant 0 : index
    %c0_6 = arith.constant 0 : index
    %13 = vector.load %arg5[%c0_5, %c0_6] : memref<16x32xf32, #tpu.memory_space<vmem>>, vector<16x32xf32>
    tpu.vector_store %arg5[%c0_5, %c0_6], %12 {strides = array<i32>} : memref<16x32xf32, #tpu.memory_space<vmem>>, vector<16x32xf32>,
    return
  }
  func.func @transform_0(%arg0: i32) -> (i32, i32) {
    %c0_i32 = arith.constant 0 : i32
    %c0_i32_0 = arith.constant 0 : i32
    return %arg0, %c0_i32 : i32, i32
  }
  func.func @transform_1(%arg0: i32) -> (i32, i32) {
    %c0_i32 = arith.constant 0 : i32
    %c0_i32_0 = arith.constant 0 : i32
    %c0_i32_1 = arith.constant 0 : i32
    return %c0_i32, %c0_i32_0 : i32, i32
  }
  func.func @transform_2(%arg0: i32) -> (i32, i32) {
    %c0_i32 = arith.constant 0 : i32
    %c0_i32_0 = arith.constant 0 : i32
    %c0_i32_1 = arith.constant 0 : i32
    return %c0_i32, %c0_i32_0 : i32, i32
  }
  func.func @transform_3(%arg0: i32) -> (i32, i32) {
    %c0_i32 = arith.constant 0 : i32
    %c0_i32_0 = arith.constant 0 : i32
    %c0_i32_1 = arith.constant 0 : i32
    return %c0_i32, %c0_i32_0 : i32, i32
  }
  func.func @transform_4(%arg0: i32) -> (i32, i32) {
    %c0_i32 = arith.constant 0 : i32
    %c0_i32_0 = arith.constant 0 : i32
    return %arg0, %c0_i32 : i32, i32
  }
}

</mosaic_0001>

<llo_original>
// kernel: _lambda_.14
$region0: #{_lambda_.14}
  #allocation0 [shape = 'u32[]', space=smem, size = 0x4, offset = 0x4, fixed_abs, tag = 'smem constant byte address 0x4 - core index']
  #allocation1 [shape = 'u32[144,128]{1,0:T(1,128)}', space=vmem, size = 0x12000, scoped, tag = 'internal scratch']
  %s0 = inlined_call_operand.vmem [shape: f32[32,32], index: 0, kind: input, shape index: {}]
  %s1 = inlined_call_operand.vmem [shape: f32[1,32], index: 1, kind: input, shape index: {}]
  %s2 = inlined_call_operand.vmem [shape: f32[1,32], index: 2, kind: input, shape index: {}]
  %s3 = inlined_call_operand.vmem [shape: bf16[32,32], index: 3, kind: output, shape index: {}]
  %s4 = sld [smem:[#allocation0]]
  $region22: #{_lambda_.14} parent=0
    _
  %s6 = ssub.s32 1, %s4
  %s7 = scalar_select 0, %s6, %s4
  // Predicated region
  $region2: #{_lambda_.14} parent=0 // pred_check
    _
  $region3: #{_lambda_.14} parent=0 // pred_check_branch
    %9 = sbr.rel (0) target = $region5
  $region4: #{_lambda_.14} parent=0 // pred_region
    _
  $region5: #{_lambda_.14} parent=0 // pred_fallthru
    _
  // Predicated region
  $region6: #{_lambda_.14} parent=0 // pred_check
    _
  $region7: #{_lambda_.14} parent=0 // pred_check_branch
    %11 = sbr.rel (0) target = $region9
  $region8: #{_lambda_.14} parent=0 // pred_region
    _
  $region9: #{_lambda_.14} parent=0 // pred_fallthru
    _
  // Predicated region
  $region10: #{_lambda_.14} parent=0 // pred_check
    _
  $region11: #{_lambda_.14} parent=0 // pred_check_branch
    %13 = sbr.rel (0) target = $region13
  $region12: #{_lambda_.14} parent=0 // pred_region
    _
  $region13: #{_lambda_.14} parent=0 // pred_fallthru
    _
  %v14 = vld [vmem:[%s0] sm:$0xff]
  %v15 = vld [vmem:[%s0 + $0x8] sm:$0xff]
  %v16 = vld [vmem:[%s0 + $0x10] sm:$0xff]
  %v17 = vld [vmem:[%s0 + $0x18] sm:$0xff]
  %v18 = vld [vmem:[%s1] sm:$0x1]
  %v19 = vld [vmem:[%s2] sm:$0x1]
  %vm20 = vcmask 261120
  %v21 = vsel %vm20, %v14, 0.0
  %22 = vadd.xlane.f32.xlu0 %v21
  %v23 = vpop.xlane.xlu0 %22
  %v24 = vsel %vm20, %v15, 0.0
  %25 = vadd.xlane.f32.xlu0 %v24
  %v26 = vpop.xlane.xlu0 %25
  %v27 = vsel %vm20, %v16, 0.0
  %28 = vadd.xlane.f32.xlu0 %v27
  %v29 = vpop.xlane.xlu0 %28
  %v30 = vsel %vm20, %v17, 0.0
  %31 = vadd.xlane.f32.xlu0 %v30
  %v32 = vpop.xlane.xlu0 %31
  %v33 = vrcp.pop 32.0
  %v34 = vmul.f32 %v23, %v33
  %v35 = vmul.f32 %v26, %v33
  %v36 = vmul.f32 %v29, %v33
  %v37 = vmul.f32 %v32, %v33
  %v38 = vsub.f32 %v14, %v34
  %v39 = vsub.f32 %v15, %v35
  %v40 = vsub.f32 %v16, %v36
  %v41 = vsub.f32 %v17, %v37
  %v42 = vmul.f32 %v38, %v38
  %v43 = vmul.f32 %v39, %v39
  %v44 = vmul.f32 %v40, %v40
  %v45 = vmul.f32 %v41, %v41
  %v46 = vsel %vm20, %v42, 0.0
  %47 = vadd.xlane.f32.xlu0 %v46
  %v48 = vpop.xlane.xlu0 %47
  %v49 = vsel %vm20, %v43, 0.0
  %50 = vadd.xlane.f32.xlu0 %v49
  %v51 = vpop.xlane.xlu0 %50
  %v52 = vsel %vm20, %v44, 0.0
  %53 = vadd.xlane.f32.xlu0 %v52
  %v54 = vpop.xlane.xlu0 %53
  %v55 = vsel %vm20, %v45, 0.0
  %56 = vadd.xlane.f32.xlu0 %v55
  %v57 = vpop.xlane.xlu0 %56
  %v58 = vmul.f32 %v48, %v33
  %v59 = vmul.f32 %v51, %v33
  %v60 = vmul.f32 %v54, %v33
  %v61 = vmul.f32 %v57, %v33
  %v62 = vadd.f32 %v58, 1e-05
  %v63 = vadd.f32 %v59, 1e-05
  %v64 = vadd.f32 %v60, 1e-05
  %v65 = vadd.f32 %v61, 1e-05
  %v66 = vrsqrt.pop %v62
  %v67 = vrsqrt.pop %v63
  %v68 = vrsqrt.pop %v64
  %v69 = vrsqrt.pop %v65
  %v70 = vmul.f32 %v38, %v66
  %v71 = vmul.f32 %v39, %v67
  %v72 = vmul.f32 %v40, %v68
  %v73 = vmul.f32 %v41, %v69
  %v75 = vlaneseq
  %v76 = vshrl.u32 %v75, 7
  %v77 = vsub.s32 0, %v76
  %v78 = vrot.slane %v18, %v77
  %v80 = vmul.f32 %v70, %v78
  %v81 = vmul.f32 %v71, %v78
  %v82 = vmul.f32 %v72, %v78
  %v83 = vmul.f32 %v73, %v78
  %v85 = vlaneseq
  %v86 = vshrl.u32 %v85, 7
  %v87 = vsub.s32 0, %v86
  %v88 = vrot.slane %v19, %v87
  %v90 = vadd.f32 %v80, %v88
  %v91 = vadd.f32 %v81, %v88
  %v92 = vadd.f32 %v82, %v88
  %v93 = vadd.f32 %v83, %v88
  %v94 = vpack.c.bf16 %v91, %v90
  %v95 = vpack.c.bf16 %v93, %v92
  %v98 = vunpack.c.l.b16 %v94
  %v99 = vunpack.c.h.b16 %v94
  %v100 = vunpack.c.l.b16 %v95
  %v101 = vunpack.c.h.b16 %v95
  %v102 = vpack.c.b16 %v98, %v98
  %v103 = vpack.c.b16 %v99, %v99
  %v104 = vpack.c.b16 %v100, %v100
  %v105 = vpack.c.b16 %v101, %v101
  %vm110 = vcmask 257024
  %111 = vst.msk [vmem:[%s3] sm:$0xf] %vm110, %v102
  %112 = vst.msk [vmem:[%s3 + $0x4] sm:$0xf] %vm110, %v103
  %113 = vst.msk [vmem:[%s3 + $0x8] sm:$0xf] %vm110, %v104
  %114 = vst.msk [vmem:[%s3 + $0xc] sm:$0xf] %vm110, %v105
  // Predicated region
  $region14: #{_lambda_.14} parent=0 // pred_check
    _
  $region15: #{_lambda_.14} parent=0 // pred_check_branch
    %116 = sbr.rel (0) target = $region17
  $region16: #{_lambda_.14} parent=0 // pred_region
    _
  $region17: #{_lambda_.14} parent=0 // pred_fallthru
    _
  // Predicated region
  $region18: #{_lambda_.14} parent=0 // pred_check
    _
  $region19: #{_lambda_.14} parent=0 // pred_check_branch
    %118 = sbr.rel (0) target = $region21
  $region20: #{_lambda_.14} parent=0 // pred_region
    _
  $region21: #{_lambda_.14} parent=0 // pred_fallthru
    _

// kernel: _lambda_.13
$region0: #{_lambda_.13}
  #allocation0 [shape = 'u32[]', space=smem, size = 0x4, offset = 0x4, fixed_abs, tag = 'smem constant byte address 0x4 - core index']
  #allocation1 [shape = 'u32[144,128]{1,0:T(1,128)}', space=vmem, size = 0x12000, scoped, tag = 'internal scratch']
  %s0 = inlined_call_operand.vmem [shape: f32[16,192], index: 0, kind: input, shape index: {}]
  %s1 = inlined_call_operand.vmem [shape: bf16[192,32], index: 1, kind: input, shape index: {}]
  %s2 = inlined_call_operand.vmem [shape: f32[1,32], index: 2, kind: input, shape index: {}]
  %s3 = inlined_call_operand.vmem [shape: f32[16,32], index: 3, kind: output, shape index: {}]
  %s4 = sld [smem:[#allocation0]]
  $region22: #{_lambda_.13} parent=0
    _
  %s6 = ssub.s32 1, %s4
  %s7 = scalar_select 0, %s6, %s4
  // Predicated region
  $region2: #{_lambda_.13} parent=0 // pred_check
    _
  $region3: #{_lambda_.13} parent=0 // pred_check_branch
    %9 = sbr.rel (0) target = $region5
  $region4: #{_lambda_.13} parent=0 // pred_region
    _
  $region5: #{_lambda_.13} parent=0 // pred_fallthru
    _
  // Predicated region
  $region6: #{_lambda_.13} parent=0 // pred_check
    _
  $region7: #{_lambda_.13} parent=0 // pred_check_branch
    %11 = sbr.rel (0) target = $region9
  $region8: #{_lambda_.13} parent=0 // pred_region
    _
  $region9: #{_lambda_.13} parent=0 // pred_fallthru
    _
  // Predicated region
  $region10: #{_lambda_.13} parent=0 // pred_check
    _
  $region11: #{_lambda_.13} parent=0 // pred_check_branch
    %13 = sbr.rel (0) target = $region13
  $region12: #{_lambda_.13} parent=0 // pred_region
    _
  $region13: #{_lambda_.13} parent=0 // pred_fallthru
    _
  %v15 = vld [vmem:[%s0] sm:$0xff]
  %v16 = vld [vmem:[%s0 + $0x8] sm:$0xff]
  %v17 = vld [vmem:[%s0 + $0x10] sm:$0xff]
  %v18 = vld [vmem:[%s0 + $0x18] sm:$0xff]
  %v19 = vpack.c.bf16 %v17, %v15
  %v20 = vpack.c.bf16 %v18, %v16
  %v21 = vld [vmem:[%s1] sm:$0xf]
  %v22 = vld [vmem:[%s1 + $0x4] sm:$0xf]
  %v23 = vld [vmem:[%s1 + $0x8] sm:$0xf]
  %v24 = vld [vmem:[%s1 + $0xc] sm:$0xf]
  %v25 = vld [vmem:[%s1 + $0x10] sm:$0xf]
  %v26 = vld [vmem:[%s1 + $0x14] sm:$0xf]
  %v27 = vld [vmem:[%s1 + $0x18] sm:$0xf]
  %v28 = vld [vmem:[%s1 + $0x1c] sm:$0xf]
  %v29 = vld [vmem:[%s1 + $0x20] sm:$0xf]
  %v30 = vld [vmem:[%s1 + $0x24] sm:$0xf]
  %v31 = vld [vmem:[%s1 + $0x28] sm:$0xf]
  %v32 = vld [vmem:[%s1 + $0x2c] sm:$0xf]
  %v33 = vld [vmem:[%s1 + $0x30] sm:$0xf]
  %v34 = vld [vmem:[%s1 + $0x34] sm:$0xf]
  %v35 = vld [vmem:[%s1 + $0x38] sm:$0xf]
  %v36 = vld [vmem:[%s1 + $0x3c] sm:$0xf]
  %v37 = vld [vmem:[%s1 + $0x40] sm:$0xf]
  %v38 = vld [vmem:[%s1 + $0x44] sm:$0xf]
  %v39 = vld [vmem:[%s1 + $0x48] sm:$0xf]
  %v40 = vld [vmem:[%s1 + $0x4c] sm:$0xf]
  %v41 = vld [vmem:[%s1 + $0x50] sm:$0xf]
  %v42 = vld [vmem:[%s1 + $0x54] sm:$0xf]
  %v43 = vld [vmem:[%s1 + $0x58] sm:$0xf]
  %v44 = vld [vmem:[%s1 + $0x5c] sm:$0xf]
  %v45 = vld [vmem:[%s2] sm:$0x1]
  %v47 = vlaneseq
  %v48 = vshrl.u32 %v47, 7
  %v49 = vsub.s32 0, %v48
  %v50 = vrot.slane %v45, %v49
  %v76 = vunpack.c.l.b16 %v21
  %v77 = vunpack.c.l.b16 %v22
  %v78 = vunpack.c.l.b16 %v23
  %v79 = vunpack.c.l.b16 %v24
  %v80 = vunpack.c.l.b16 %v25
  %v81 = vunpack.c.l.b16 %v26
  %v82 = vunpack.c.l.b16 %v27
  %v83 = vunpack.c.l.b16 %v28
  %v84 = vunpack.c.l.b16 %v29
  %v85 = vunpack.c.l.b16 %v30
  %v86 = vunpack.c.l.b16 %v31
  %v87 = vunpack.c.l.b16 %v32
  %v88 = vunpack.c.l.b16 %v33
  %v89 = vunpack.c.l.b16 %v34
  %v90 = vunpack.c.l.b16 %v35
  %v91 = vunpack.c.l.b16 %v36
  %v92 = vunpack.c.l.b16 %v37
  %v93 = vunpack.c.l.b16 %v38
  %v94 = vunpack.c.l.b16 %v39
  %v95 = vunpack.c.l.b16 %v40
  %v96 = vunpack.c.l.b16 %v41
  %v97 = vunpack.c.l.b16 %v42
  %v98 = vunpack.c.l.b16 %v43
  %v99 = vunpack.c.l.b16 %v44
  %v100 = vpack.c.b16 %v77, %v76
  %v101 = vpack.c.b16 %v79, %v78
  %v102 = vpack.c.b16 %v81, %v80
  %v103 = vpack.c.b16 %v83, %v82
  %v104 = vpack.c.b16 %v85, %v84
  %v105 = vpack.c.b16 %v87, %v86
  %v106 = vpack.c.b16 %v89, %v88
  %v107 = vpack.c.b16 %v91, %v90
  %v108 = vpack.c.b16 %v93, %v92
  %v109 = vpack.c.b16 %v95, %v94
  %v110 = vpack.c.b16 %v97, %v96
  %v111 = vpack.c.b16 %v99, %v98
  %vm124 = vcmask 523264
  %v126 = vsel %vm124, %v20, 0
  %128 = vmatprep.subr.bf16.mxu0 0
  %129 = vmatpush1.bf16.msra.mxu0 %v100
  %130 = vmatprep.subr.bf16.mxu0 0
  %131 = vmatpush1.bf16.msra.mxu0 %v101
  %132 = vmatprep.subr.bf16.mxu0 0
  %133 = vmatpush1.bf16.msra.mxu0 %v102
  %134 = vmatprep.subr.bf16.mxu0 0
  %135 = vmatpush1.bf16.msra.mxu0 %v103
  %136 = vmatprep.subr.bf16.mxu0 0
  %137 = vmatpush1.bf16.msra.mxu0 %v104
  %138 = vmatprep.subr.bf16.mxu0 0
  %139 = vmatpush1.bf16.msra.mxu0 %v105
  %140 = vmatprep.subr.bf16.mxu0 0
  %141 = vmatpush1.bf16.msra.mxu0 %v106
  %142 = vmatprep.subr.bf16.mxu0 0
  %143 = vmatpush1.bf16.msra.mxu0 %v107
  %144 = vmatprep.subr.bf16.mxu0 0
  %145 = vmatpush1.bf16.msra.mxu0 %v108
  %146 = vmatprep.subr.bf16.mxu0 0
  %147 = vmatpush1.bf16.msra.mxu0 %v109
  %148 = vmatprep.subr.bf16.mxu0 0
  %149 = vmatpush1.bf16.msra.mxu0 %v110
  %150 = vmatprep.subr.bf16.mxu0 0
  %151 = vmatpush1.bf16.msra.mxu0 %v111
  %152 = vmatprep.subr.bf16.mxu0 0
  %153 = vmatpush1.bf16.msra.mxu0 0
  %154 = vmatprep.subr.bf16.mxu0 0
  %155 = vmatpush1.bf16.msra.mxu0 0
  %156 = vmatprep.subr.bf16.mxu0 0
  %157 = vmatpush1.bf16.msra.mxu0 0
  %158 = vmatprep.subr.bf16.mxu0 0
  %159 = vmatpush1.bf16.msra.mxu0 0
  %160 = vmatprep.mubr.bf16.mxu0 %v126
  %161 = vmatmul.mubr.bf16.gmra.mrb[0].mxu0 %v19
  %v162 = vpop.f32.mrb[0].mxu0
  %v163 = vadd.f32 %v50, %v162
  %v164 = vpop.f32.mrb[0].mxu0
  %v165 = vpop.f32.mrb[0].mxu0
  %v166 = vadd.f32 %v50, %v165
  %v167 = vpop.f32.mrb[0].mxu0
  %168 = vdwg.mxu0
  %vm169 = vcmask 261120
  %170 = vst.msk [vmem:[%s3] sm:$0xff] %vm169, %v163
  %171 = vst.msk [vmem:[%s3 + $0x8] sm:$0xff] %vm169, %v166
  // Predicated region
  $region14: #{_lambda_.13} parent=0 // pred_check
    _
  $region15: #{_lambda_.13} parent=0 // pred_check_branch
    %173 = sbr.rel (0) target = $region17
  $region16: #{_lambda_.13} parent=0 // pred_region
    _
  $region17: #{_lambda_.13} parent=0 // pred_fallthru
    _
  // Predicated region
  $region18: #{_lambda_.13} parent=0 // pred_check
    _
  $region19: #{_lambda_.13} parent=0 // pred_check_branch
    %175 = sbr.rel (0) target = $region21
  $region20: #{_lambda_.13} parent=0 // pred_region
    _
  $region21: #{_lambda_.13} parent=0 // pred_fallthru
    _

// kernel: _lambda_.15
$region0: #{_lambda_.15}
  #allocation0 [shape = 'u32[]', space=smem, size = 0x4, offset = 0x4, fixed_abs, tag = 'smem constant byte address 0x4 - core index']
  #allocation1 [shape = 'u32[144,128]{1,0:T(1,128)}', space=vmem, size = 0x12000, scoped, tag = 'internal scratch']
  %s0 = inlined_call_operand.vmem [shape: bf16[2,16,32], index: 0, kind: input, shape index: {}]
  %s1 = inlined_call_operand.vmem [shape: f32[2,1,16], index: 1, kind: input, shape index: {}]
  %s2 = inlined_call_operand.vmem [shape: f32[1,32], index: 2, kind: input, shape index: {}]
  %s3 = inlined_call_operand.vmem [shape: f32[1,32], index: 3, kind: input, shape index: {}, may-alias: {3,7}]
  %s4 = inlined_call_operand.vmem [shape: bf16[32,96], index: 4, kind: input, shape index: {}]
  %s5 = inlined_call_operand.vmem [shape: f32[1,96], index: 5, kind: input, shape index: {}]
  %s6 = inlined_call_operand.vmem [shape: bf16[32,32], index: 6, kind: input, shape index: {}]
  %s7 = inlined_call_operand.vmem [shape: f32[1,32], index: 7, kind: input, shape index: {}, may-alias: {3,7}]
  %s8 = inlined_call_operand.vmem [shape: bf16[2,16,32], index: 8, kind: output, shape index: {}]
  %s9 = sld [smem:[#allocation0]]
  $region65: #{_lambda_.15} parent=0
    _
  %s11 = ssub.s32 1, %s9
  %s12 = scalar_select 0, %s11, %s9
  loop: start=0, step=1, limit=4
  $region2: #{_lambda_.15} parent=0 // loop_pre_header
    _
  $region3: #{_lambda_.15} parent=0 // loop_header
    %s14 = sphi 0, %s18
    %p15 = scmp.ge.s32.totalorder %s14, 4
    %s24 = sphi 0, %s26
    %s27 = sphi 0, %s24
    %s28 = sphi 0, %s27
    %s44 = sphi 0, %s28
    %s50 = sphi 0, %s52
    %s53 = sphi 0, %s50
    %s54 = sphi 0, %s53
    %s70 = sphi 0, %s54
    %s74 = sphi 0, %s74
    %s76 = sphi 0, %s74
    %s77 = sphi 0, %s76
    %s91 = sphi 0, %s77
    %s95 = sphi 0, %s95
    %s97 = sphi 0, %s95
    %s98 = sphi 0, %s97
    %s112 = sphi 0, %s98
    %s116 = sphi 0, %s116
    %s118 = sphi 0, %s116
    %s119 = sphi 0, %s118
    %s133 = sphi 0, %s119
    %s137 = sphi 0, %s137
    %s139 = sphi 0, %s137
    %s140 = sphi 0, %s139
    %s154 = sphi 0, %s140
    %s158 = sphi 0, %s158
    %s160 = sphi 0, %s158
    %s161 = sphi 0, %s160
    %s175 = sphi 0, %s161
    %s179 = sphi 0, %s179
    %s181 = sphi 0, %s179
    %s182 = sphi 0, %s181
    %s196 = sphi 0, %s182
    %s202 = sphi 0, %s204
    %s205 = sphi 0, %s202
    %s206 = sphi 0, %s205
    %s222 = sphi 0, %s206
  $region4: #{_lambda_.15} parent=0 // loop_header_branch
    %17 = sbr.rel (%p15) target = $region8
  $region5: #{_lambda_.15} parent=0 // loop_body
    %s19 = ssub.s32 %s14, 1
    %s20 = ssub.s32 %s14, 2
    %s21 = sadd.s32 %s14, 1
    %s22 = ssub.s32 %s14, %s21
    %p23 = scmp.eq.s32.totalorder %s22, 0
    %s25 = sadd.s32 %s24, 1
    %s26 = scalar_select %p23, %s24, %s25
    %p29 = pneg %p23
    %p30 = scmp.eq.s32.totalorder %s14, 1
    %p31 = por %p29, %p30
    %p32 = scmp.ne.s32.totalorder %s24, %s27
    %p33 = scmp.eq.s32.totalorder %s14, 0
    %p34 = por %p32, %p33
    %p35 = scmp.ne.s32.totalorder %s24, %s27
    %p36 = scmp.eq.s32.totalorder %s19, 1
    %p37 = por %p35, %p36
    %p38 = scmp.ne.s32.totalorder %s27, %s28
    %p39 = scmp.eq.s32.totalorder %s19, 0
    %p40 = por %p38, %p39
    %p41 = scmp.ne.s32.totalorder %s27, %s28
    %p42 = scmp.eq.s32.totalorder %s20, 1
    %p43 = por %p41, %p42
    %p45 = scmp.ne.s32.totalorder %s28, %s44
    %p46 = scmp.eq.s32.totalorder %s20, 0
    %p47 = por %p45, %p46
    %s48 = ssub.s32 %s14, %s21
    %p49 = scmp.eq.s32.totalorder %s48, 0
    %s51 = sadd.s32 %s50, 1
    %s52 = scalar_select %p49, %s50, %s51
    %p55 = pneg %p49
    %p56 = scmp.eq.s32.totalorder %s14, 1
    %p57 = por %p55, %p56
    %p58 = scmp.ne.s32.totalorder %s50, %s53
    %p59 = scmp.eq.s32.totalorder %s14, 0
    %p60 = por %p58, %p59
    %p61 = scmp.ne.s32.totalorder %s50, %s53
    %p62 = scmp.eq.s32.totalorder %s19, 1
    %p63 = por %p61, %p62
    %p64 = scmp.ne.s32.totalorder %s53, %s54
    %p65 = scmp.eq.s32.totalorder %s19, 0
    %p66 = por %p64, %p65
    %p67 = scmp.ne.s32.totalorder %s53, %s54
    %p68 = scmp.eq.s32.totalorder %s20, 1
    %p69 = por %p67, %p68
    %p71 = scmp.ne.s32.totalorder %s54, %s70
    %p72 = scmp.eq.s32.totalorder %s20, 0
    %p73 = por %p71, %p72
    %s75 = sadd.s32 %s74, 1
    %p78 = scmp.eq.s32.totalorder %s14, 1
    %p79 = scmp.ne.s32.totalorder %s74, %s76
    %p80 = scmp.eq.s32.totalorder %s14, 0
    %p81 = por %p79, %p80
    %p82 = scmp.ne.s32.totalorder %s74, %s76
    %p83 = scmp.eq.s32.totalorder %s19, 1
    %p84 = por %p82, %p83
    %p85 = scmp.ne.s32.totalorder %s76, %s77
    %p86 = scmp.eq.s32.totalorder %s19, 0
    %p87 = por %p85, %p86
    %p88 = scmp.ne.s32.totalorder %s76, %s77
    %p89 = scmp.eq.s32.totalorder %s20, 1
    %p90 = por %p88, %p89
    %p92 = scmp.ne.s32.totalorder %s77, %s91
    %p93 = scmp.eq.s32.totalorder %s20, 0
    %p94 = por %p92, %p93
    %s96 = sadd.s32 %s95, 1
    %p99 = scmp.eq.s32.totalorder %s14, 1
    %p100 = scmp.ne.s32.totalorder %s95, %s97
    %p101 = scmp.eq.s32.totalorder %s14, 0
    %p102 = por %p100, %p101
    %p103 = scmp.ne.s32.totalorder %s95, %s97
    %p104 = scmp.eq.s32.totalorder %s19, 1
    %p105 = por %p103, %p104
    %p106 = scmp.ne.s32.totalorder %s97, %s98
    %p107 = scmp.eq.s32.totalorder %s19, 0
    %p108 = por %p106, %p107
    %p109 = scmp.ne.s32.totalorder %s97, %s98
    %p110 = scmp.eq.s32.totalorder %s20, 1
    %p111 = por %p109, %p110
    %p113 = scmp.ne.s32.totalorder %s98, %s112
    %p114 = scmp.eq.s32.totalorder %s20, 0
    %p115 = por %p113, %p114
    %s117 = sadd.s32 %s116, 1
    %p120 = scmp.eq.s32.totalorder %s14, 1
    %p121 = scmp.ne.s32.totalorder %s116, %s118
    %p122 = scmp.eq.s32.totalorder %s14, 0
    %p123 = por %p121, %p122
    %p124 = scmp.ne.s32.totalorder %s116, %s118
    %p125 = scmp.eq.s32.totalorder %s19, 1
    %p126 = por %p124, %p125
    %p127 = scmp.ne.s32.totalorder %s118, %s119
    %p128 = scmp.eq.s32.totalorder %s19, 0
    %p129 = por %p127, %p128
    %p130 = scmp.ne.s32.totalorder %s118, %s119
    %p131 = scmp.eq.s32.totalorder %s20, 1
    %p132 = por %p130, %p131
    %p134 = scmp.ne.s32.totalorder %s119, %s133
    %p135 = scmp.eq.s32.totalorder %s20, 0
    %p136 = por %p134, %p135
    %s138 = sadd.s32 %s137, 1
    %p141 = scmp.eq.s32.totalorder %s14, 1
    %p142 = scmp.ne.s32.totalorder %s137, %s139
    %p143 = scmp.eq.s32.totalorder %s14, 0
    %p144 = por %p142, %p143
    %p145 = scmp.ne.s32.totalorder %s137, %s139
    %p146 = scmp.eq.s32.totalorder %s19, 1
    %p147 = por %p145, %p146
    %p148 = scmp.ne.s32.totalorder %s139, %s140
    %p149 = scmp.eq.s32.totalorder %s19, 0
    %p150 = por %p148, %p149
    %p151 = scmp.ne.s32.totalorder %s139, %s140
    %p152 = scmp.eq.s32.totalorder %s20, 1
    %p153 = por %p151, %p152
    %p155 = scmp.ne.s32.totalorder %s140, %s154
    %p156 = scmp.eq.s32.totalorder %s20, 0
    %p157 = por %p155, %p156
    %s159 = sadd.s32 %s158, 1
    %p162 = scmp.eq.s32.totalorder %s14, 1
    %p163 = scmp.ne.s32.totalorder %s158, %s160
    %p164 = scmp.eq.s32.totalorder %s14, 0
    %p165 = por %p163, %p164
    %p166 = scmp.ne.s32.totalorder %s158, %s160
    %p167 = scmp.eq.s32.totalorder %s19, 1
    %p168 = por %p166, %p167
    %p169 = scmp.ne.s32.totalorder %s160, %s161
    %p170 = scmp.eq.s32.totalorder %s19, 0
    %p171 = por %p169, %p170
    %p172 = scmp.ne.s32.totalorder %s160, %s161
    %p173 = scmp.eq.s32.totalorder %s20, 1
    %p174 = por %p172, %p173
    %p176 = scmp.ne.s32.totalorder %s161, %s175
    %p177 = scmp.eq.s32.totalorder %s20, 0
    %p178 = por %p176, %p177
    %s180 = sadd.s32 %s179, 1
    %p183 = scmp.eq.s32.totalorder %s14, 1
    %p184 = scmp.ne.s32.totalorder %s179, %s181
    %p185 = scmp.eq.s32.totalorder %s14, 0
    %p186 = por %p184, %p185
    %p187 = scmp.ne.s32.totalorder %s179, %s181
    %p188 = scmp.eq.s32.totalorder %s19, 1
    %p189 = por %p187, %p188
    %p190 = scmp.ne.s32.totalorder %s181, %s182
    %p191 = scmp.eq.s32.totalorder %s19, 0
    %p192 = por %p190, %p191
    %p193 = scmp.ne.s32.totalorder %s181, %s182
    %p194 = scmp.eq.s32.totalorder %s20, 1
    %p195 = por %p193, %p194
    %p197 = scmp.ne.s32.totalorder %s182, %s196
    %p198 = scmp.eq.s32.totalorder %s20, 0
    %p199 = por %p197, %p198
    %s200 = ssub.s32 %s14, %s21
    %p201 = scmp.eq.s32.totalorder %s200, 0
    %s203 = sadd.s32 %s202, 1
    %s204 = scalar_select %p201, %s202, %s203
    %p207 = pneg %p201
    %p208 = scmp.eq.s32.totalorder %s14, 1
    %p209 = por %p207, %p208
    %p210 = scmp.ne.s32.totalorder %s202, %s205
    %p211 = scmp.eq.s32.totalorder %s14, 0
    %p212 = por %p210, %p211
    %p213 = scmp.ne.s32.totalorder %s202, %s205
    %p214 = scmp.eq.s32.totalorder %s19, 1
    %p215 = por %p213, %p214
    %p216 = scmp.ne.s32.totalorder %s205, %s206
    %p217 = scmp.eq.s32.totalorder %s19, 0
    %p218 = por %p216, %p217
    %p219 = scmp.ne.s32.totalorder %s205, %s206
    %p220 = scmp.eq.s32.totalorder %s20, 1
    %p221 = por %p219, %p220
    %p223 = scmp.ne.s32.totalorder %s206, %s222
    %p224 = scmp.eq.s32.totalorder %s20, 0
    %p225 = por %p223, %p224
    %p226 = scmp.le.s32.totalorder 1, %s14
    %p227 = scmp.lt.s32.totalorder %s14, 3
    %p228 = pnand %p226, %p227
    %p229 = pneg %p228
    // Predicated region
    $region9: #{_lambda_.15} parent=5 // pred_check
      _
    $region10: #{_lambda_.15} parent=5 // pred_check_branch
      %231 = sbr.rel (%p228) target = $region12
    $region11: #{_lambda_.15} parent=5 // pred_region
      %s232 = ssub.s32 %s14, 1
      // Predicated region
      $region13: #{_lambda_.15} parent=11 // pred_check
        %p233 = pneg %p87
      $region14: #{_lambda_.15} parent=11 // pred_check_branch
        %235 = sbr.rel (%p233) target = $region16
      $region15: #{_lambda_.15} parent=11 // pred_region
        _
      $region16: #{_lambda_.15} parent=11 // pred_fallthru
        _
      // Predicated region
      $region17: #{_lambda_.15} parent=11 // pred_check
        %p236 = pneg %p108
      $region18: #{_lambda_.15} parent=11 // pred_check_branch
        %238 = sbr.rel (%p236) target = $region20
      $region19: #{_lambda_.15} parent=11 // pred_region
        _
      $region20: #{_lambda_.15} parent=11 // pred_fallthru
        _
      // Predicated region
      $region21: #{_lambda_.15} parent=11 // pred_check
        %p239 = pneg %p129
      $region22: #{_lambda_.15} parent=11 // pred_check_branch
        %241 = sbr.rel (%p239) target = $region24
      $region23: #{_lambda_.15} parent=11 // pred_region
        _
      $region24: #{_lambda_.15} parent=11 // pred_fallthru
        _
      // Predicated region
      $region25: #{_lambda_.15} parent=11 // pred_check
        %p242 = pneg %p150
      $region26: #{_lambda_.15} parent=11 // pred_check_branch
        %244 = sbr.rel (%p242) target = $region28
      $region27: #{_lambda_.15} parent=11 // pred_region
        _
      $region28: #{_lambda_.15} parent=11 // pred_fallthru
        _
      // Predicated region
      $region29: #{_lambda_.15} parent=11 // pred_check
        %p245 = pneg %p171
      $region30: #{_lambda_.15} parent=11 // pred_check_branch
        %247 = sbr.rel (%p245) target = $region32
      $region31: #{_lambda_.15} parent=11 // pred_region
        _
      $region32: #{_lambda_.15} parent=11 // pred_fallthru
        _
      // Predicated region
      $region33: #{_lambda_.15} parent=11 // pred_check
        %p248 = pneg %p192
      $region34: #{_lambda_.15} parent=11 // pred_check_branch
        %250 = sbr.rel (%p248) target = $region36
      $region35: #{_lambda_.15} parent=11 // pred_region
        _
      $region36: #{_lambda_.15} parent=11 // pred_fallthru
        _
    $region12: #{_lambda_.15} parent=5 // pred_fallthru
      _
    %p251 = scmp.lt.s32.totalorder %s14, 2
    // Predicated region
    $region37: #{_lambda_.15} parent=5 // pred_check
      %p252 = pneg %p251
    $region38: #{_lambda_.15} parent=5 // pred_check_branch
      %254 = sbr.rel (%p252) target = $region40
    $region39: #{_lambda_.15} parent=5 // pred_region
      // Predicated region
      $region41: #{_lambda_.15} parent=39 // pred_check
        %p255 = pneg %p34
      $region42: #{_lambda_.15} parent=39 // pred_check_branch
        %257 = sbr.rel (%p255) target = $region44
      $region43: #{_lambda_.15} parent=39 // pred_region
        %p258 = scmp.lt.s32.totalorder %s14, 1
        %s259 = scalar_select %p258, %s14, 1
        %s260 = smul.addr %s259, 2
        %s261 = smul.addr %s260, 4
        %s262 = scalar_lea.vmem %s0, %s261
      $region44: #{_lambda_.15} parent=39 // pred_fallthru
        _
      // Predicated region
      $region45: #{_lambda_.15} parent=39 // pred_check
        %p263 = pneg %p60
      $region46: #{_lambda_.15} parent=39 // pred_check_branch
        %265 = sbr.rel (%p263) target = $region48
      $region47: #{_lambda_.15} parent=39 // pred_region
        %p266 = scmp.lt.s32.totalorder %s14, 1
        %s267 = scalar_select %p266, %s14, 1
        %s268 = scalar_lea.vmem %s1, %s267
      $region48: #{_lambda_.15} parent=39 // pred_fallthru
        _
    $region40: #{_lambda_.15} parent=5 // pred_fallthru
      _
    %p269 = scmp.le.s32.totalorder 1, %s14
    %p270 = scmp.lt.s32.totalorder %s14, 3
    %p271 = pnand %p269, %p270
    %p272 = pneg %p271
    // Predicated region
    $region49: #{_lambda_.15} parent=5 // pred_check
      _
    $region50: #{_lambda_.15} parent=5 // pred_check_branch
      %274 = sbr.rel (%p271) target = $region52
    $region51: #{_lambda_.15} parent=5 // pred_region
      %s275 = ssub.s32 %s14, 1
      %p276 = scmp.lt.s32.totalorder %s19, 1
      %s277 = scalar_select %p276, %s19, 1
      %s278 = smul.addr %s277, 2
      %s279 = smul.addr %s278, 4
      %s280 = scalar_lea.vmem %s0, %s279
      %p281 = pneg %p40
      %p282 = pneg %p37
      %p283 = scmp.lt.s32.totalorder %s19, 1
      %s284 = scalar_select %p283, %s19, 1
      %s285 = scalar_lea.vmem %s1, %s284
      %p286 = pneg %p66
      %p287 = pneg %p63
      %p288 = pneg %p87
      %p289 = pneg %p84
      %p290 = pneg %p108
      %p291 = pneg %p105
      %p292 = pneg %p129
      %p293 = pneg %p126
      %p294 = pneg %p150
      %p295 = pneg %p147
      %p296 = pneg %p171
      %p297 = pneg %p168
      %p298 = pneg %p192
      %p299 = pneg %p189
      %p300 = pneg %p218
      %p301 = pneg %p215
      %p302 = scmp.lt.s32.totalorder %s19, 1
      %s303 = scalar_select %p302, %s19, 1
      %s304 = smul.addr %s303, 2
      %s305 = smul.addr %s304, 4
      %s306 = scalar_lea.vmem %s8, %s305
      %p307 = scmp.lt.s32.totalorder %s19, 1
      %s308 = scalar_select %p307, %s19, 1
      %s309 = smul.addr %s308, 2
      %s310 = smul.addr %s309, 4
      %s311 = scalar_lea.vmem %s0, %s310
      %p312 = scmp.lt.s32.totalorder %s19, 1
      %s313 = scalar_select %p312, %s19, 1
      %s314 = scalar_lea.vmem %s1, %s313
      %p315 = scmp.lt.s32.totalorder %s19, 1
      %s316 = scalar_select %p315, %s19, 1
      %s317 = smul.addr %s316, 2
      %s318 = smul.addr %s317, 4
      %s319 = scalar_lea.vmem %s8, %s318
      %v321 = vld [vmem:[%s311] sm:$0xf]
      %v322 = vld [vmem:[%s311 + $0x4] sm:$0xf]
      %v323 = vunpack.c.l.bf16 %v321
      %v324 = vunpack.c.l.bf16 %v322
      %v325 = vld [vmem:[%s2] sm:$0x1]
      %v326 = vld [vmem:[%s3] sm:$0x1]
      %vm327 = vcmask 261120
      %v328 = vsel %vm327, %v323, 0.0
      %329 = vadd.xlane.f32.xlu0 %v328
      %v330 = vpop.xlane.xlu0 %329
      %v331 = vsel %vm327, %v324, 0.0
      %332 = vadd.xlane.f32.xlu0 %v331
      %v333 = vpop.xlane.xlu0 %332
      %v334 = vrcp.pop 32.0
      %v335 = vmul.f32 %v330, %v334
      %v336 = vmul.f32 %v333, %v334
      %v337 = vsub.f32 %v323, %v335
      %v338 = vsub.f32 %v324, %v336
      %v339 = vmul.f32 %v337, %v337
      %v340 = vmul.f32 %v338, %v338
      %v341 = vsel %vm327, %v339, 0.0
      %342 = vadd.xlane.f32.xlu0 %v341
      %v343 = vpop.xlane.xlu0 %342
      %v344 = vsel %vm327, %v340, 0.0
      %345 = vadd.xlane.f32.xlu0 %v344
      %v346 = vpop.xlane.xlu0 %345
      %v347 = vmul.f32 %v343, %v334
      %v348 = vmul.f32 %v346, %v334
      %v349 = vadd.f32 %v347, 1e-05
      %v350 = vadd.f32 %v348, 1e-05
      %v351 = vrsqrt.pop %v349
      %v352 = vrsqrt.pop %v350
      %v353 = vmul.f32 %v337, %v351
      %v354 = vmul.f32 %v338, %v352
      %v356 = vlaneseq
      %v357 = vshrl.u32 %v356, 7
      %v358 = vsub.s32 0, %v357
      %v359 = vrot.slane %v325, %v358
      %v361 = vmul.f32 %v353, %v359
      %v362 = vmul.f32 %v354, %v359
      %v364 = vlaneseq
      %v365 = vshrl.u32 %v364, 7
      %v366 = vsub.s32 0, %v365
      %v367 = vrot.slane %v326, %v366
      %v369 = vadd.f32 %v361, %v367
      %v370 = vadd.f32 %v362, %v367
      %v371 = vpack.c.bf16 %v370, %v369
      %v372 = vld [vmem:[%s4] sm:$0xf]
      %v373 = vld [vmem:[%s4 + $0x4] sm:$0xf]
      %v374 = vld [vmem:[%s4 + $0x8] sm:$0xf]
      %v375 = vld [vmem:[%s4 + $0xc] sm:$0xf]
      %v376 = vld [vmem:[%s5] sm:$0x1]
      %v378 = vlaneseq
      %v379 = vshrl.u32 %v378, 7
      %v380 = vsub.s32 0, %v379
      %v381 = vrot.slane %v376, %v380
      %v387 = vunpack.c.l.b16 %v372
      %v388 = vunpack.c.l.b16 %v373
      %v389 = vunpack.c.l.b16 %v374
      %v390 = vunpack.c.l.b16 %v375
      %v391 = vpack.c.b16 %v388, %v387
      %v392 = vpack.c.b16 %v390, %v389
      %v396 = vsel %vm327, %v371, 0
      %398 = vmatprep.subr.bf16.mxu0 0
      %399 = vmatpush1.bf16.msra.mxu0 %v391
      %400 = vmatprep.subr.bf16.mxu0 0
      %401 = vmatpush1.bf16.msra.mxu0 %v392
      %402 = vmatprep.subr.bf16.mxu0 0
      %403 = vmatpush1.bf16.msra.mxu0 0
      %404 = vmatprep.subr.bf16.mxu0 0
      %405 = vmatpush1.bf16.msra.mxu0 0
      %406 = vmatprep.subr.bf16.mxu0 0
      %407 = vmatpush1.bf16.msra.mxu0 0
      %408 = vmatprep.subr.bf16.mxu0 0
      %409 = vmatpush1.bf16.msra.mxu0 0
      %410 = vmatprep.subr.bf16.mxu0 0
      %411 = vmatpush1.bf16.msra.mxu0 0
      %412 = vmatprep.subr.bf16.mxu0 0
      %413 = vmatpush1.bf16.msra.mxu0 0
      %414 = vmatprep.subr.bf16.mxu0 0
      %415 = vmatpush1.bf16.msra.mxu0 0
      %416 = vmatprep.subr.bf16.mxu0 0
      %417 = vmatpush1.bf16.msra.mxu0 0
      %418 = vmatprep.subr.bf16.mxu0 0
      %419 = vmatpush1.bf16.msra.mxu0 0
      %420 = vmatprep.subr.bf16.mxu0 0
      %421 = vmatpush1.bf16.msra.mxu0 0
      %422 = vmatprep.subr.bf16.mxu0 0
      %423 = vmatpush1.bf16.msra.mxu0 0
      %424 = vmatprep.subr.bf16.mxu0 0
      %425 = vmatpush1.bf16.msra.mxu0 0
      %426 = vmatprep.subr.bf16.mxu0 0
      %427 = vmatpush1.bf16.msra.mxu0 0
      %428 = vmatprep.subr.bf16.mxu0 0
      %429 = vmatpush1.bf16.msra.mxu0 0
      %430 = vmatprep.mubr.bf16.mxu0 0
      %431 = vmatmul.mubr.bf16.gmra.mrb[0].mxu0 %v396
      %v432 = vpop.f32.mrb[0].mxu0
      %v433 = vadd.f32 %v381, %v432
      %v434 = vpop.f32.mrb[0].mxu0
      %v435 = vpop.f32.mrb[0].mxu0
      %v436 = vadd.f32 %v381, %v435
      %v437 = vpop.f32.mrb[0].mxu0
      %438 = vdwg.mxu0
      %v439 = vmul.f32 %v433, 0.25
      %v440 = vmul.f32 %v436, 0.25
      %v441 = vpack.c.bf16 %v440, %v439
      %v442 = vpack.c.bf16 %v436, %v433
      %v443 = vld [vmem:[%s314] sm:$0x1]
      %v445 = vlaneseq
      %v446 = vshrl.u32 %v445, 7
      %v447 = vsub.s32 0, %v446
      %v448 = vrot.slane %v443, %v447
      %451 = vrot.lane.b32.xlu0 %v442, 96
      %v452 = vpop.permute.xlu0 %451
      %vm453 = vcmask 130048
      %v455 = vsel %vm453, %v441, 0
      %v458 = vsel %vm453, %v452, 0
      %460 = vmatprep.subr.bf16.mxu0 0
      %461 = vmatpush1.bf16.xpose.msra.mxu0 %v458
      %462 = vmatprep.subr.bf16.mxu0 0
      %463 = vmatpush1.bf16.xpose.msra.mxu0 0
      %464 = vmatprep.subr.bf16.mxu0 0
      %465 = vmatpush1.bf16.xpose.msra.mxu0 0
      %466 = vmatprep.subr.bf16.mxu0 0
      %467 = vmatpush1.bf16.xpose.msra.mxu0 0
      %468 = vmatprep.subr.bf16.mxu0 0
      %469 = vmatpush1.bf16.xpose.msra.mxu0 0
      %470 = vmatprep.subr.bf16.mxu0 0
      %471 = vmatpush1.bf16.xpose.msra.mxu0 0
      %472 = vmatprep.subr.bf16.mxu0 0
      %473 = vmatpush1.bf16.xpose.msra.mxu0 0
      %474 = vmatprep.subr.bf16.mxu0 0
      %475 = vmatpush1.bf16.xpose.msra.mxu0 0
      %476 = vmatprep.subr.bf16.mxu0 0
      %477 = vmatpush1.bf16.xpose.msra.mxu0 0
      %478 = vmatprep.subr.bf16.mxu0 0
      %479 = vmatpush1.bf16.xpose.msra.mxu0 0
      %480 = vmatprep.subr.bf16.mxu0 0
      %481 = vmatpush1.bf16.xpose.msra.mxu0 0
      %482 = vmatprep.subr.bf16.mxu0 0
      %483 = vmatpush1.bf16.xpose.msra.mxu0 0
      %484 = vmatprep.subr.bf16.mxu0 0
      %485 = vmatpush1.bf16.xpose.msra.mxu0 0
      %486 = vmatprep.subr.bf16.mxu0 0
      %487 = vmatpush1.bf16.xpose.msra.mxu0 0
      %488 = vmatprep.subr.bf16.mxu0 0
      %489 = vmatpush1.bf16.xpose.msra.mxu0 0
      %490 = vmatprep.subr.bf16.mxu0 0
      %491 = vmatpush1.bf16.xpose.msra.mxu0 0
      %492 = vmatprep.mubr.bf16.mxu0 0
      %493 = vmatmul.mubr.bf16.gmra.mrb[0].mxu0 %v455
      %v494 = vpop.f32.mrb[0].mxu0
      %v495 = vadd.f32 %v448, %v494
      %v496 = vpop.f32.mrb[0].mxu0
      %v497 = vpop.f32.mrb[0].mxu0
      %v498 = vadd.f32 %v448, %v497
      %v499 = vpop.f32.mrb[0].mxu0
      %500 = vdwg.mxu0
      %v501 = vsel %vm453, %v495, -inf
      %502 = vmax.xlane.f32.xlu0 %v501
      %v503 = vpop.xlane.xlu0 %502
      %v504 = vsel %vm453, %v498, -inf
      %505 = vmax.xlane.f32.xlu0 %v504
      %v506 = vpop.xlane.xlu0 %505
      %v507 = vsub.f32 %v495, %v503
      %v508 = vsub.f32 %v498, %v506
      %v509 = vmul.f32 %v507, 1.442695
      %v510 = vpow.pop %v509
      %v511 = vmul.f32 %v508, 1.442695
      %v512 = vpow.pop %v511
      %v513 = vsel %vm453, %v510, 0.0
      %514 = vadd.xlane.f32.xlu0 %v513
      %v515 = vpop.xlane.xlu0 %514
      %v516 = vsel %vm453, %v512, 0.0
      %517 = vadd.xlane.f32.xlu0 %v516
      %v518 = vpop.xlane.xlu0 %517
      %v519 = vrcp.pop %v515
      %v520 = vrcp.pop %v518
      %v521 = vmul.f32 %v510, %v519
      %v522 = vmul.f32 %v512, %v520
      %v523 = vpack.c.bf16 %v522, %v521
      %524 = vrot.lane.b32.xlu0 %v442, 64
      %v525 = vpop.permute.xlu0 %524
      %v528 = vsel %vm453, %v523, 0
      %530 = vmatprep.subr.bf16.mxu0 0
      %531 = vmatpush1.bf16.msra.mxu0 %v525
      %532 = vmatprep.subr.bf16.mxu0 0
      %533 = vmatpush1.bf16.msra.mxu0 0
      %534 = vmatprep.subr.bf16.mxu0 0
      %535 = vmatpush1.bf16.msra.mxu0 0
      %536 = vmatprep.subr.bf16.mxu0 0
      %537 = vmatpush1.bf16.msra.mxu0 0
      %538 = vmatprep.subr.bf16.mxu0 0
      %539 = vmatpush1.bf16.msra.mxu0 0
      %540 = vmatprep.subr.bf16.mxu0 0
      %541 = vmatpush1.bf16.msra.mxu0 0
      %542 = vmatprep.subr.bf16.mxu0 0
      %543 = vmatpush1.bf16.msra.mxu0 0
      %544 = vmatprep.subr.bf16.mxu0 0
      %545 = vmatpush1.bf16.msra.mxu0 0
      %546 = vmatprep.subr.bf16.mxu0 0
      %547 = vmatpush1.bf16.msra.mxu0 0
      %548 = vmatprep.subr.bf16.mxu0 0
      %549 = vmatpush1.bf16.msra.mxu0 0
      %550 = vmatprep.subr.bf16.mxu0 0
      %551 = vmatpush1.bf16.msra.mxu0 0
      %552 = vmatprep.subr.bf16.mxu0 0
      %553 = vmatpush1.bf16.msra.mxu0 0
      %554 = vmatprep.subr.bf16.mxu0 0
      %555 = vmatpush1.bf16.msra.mxu0 0
      %556 = vmatprep.subr.bf16.mxu0 0
      %557 = vmatpush1.bf16.msra.mxu0 0
      %558 = vmatprep.subr.bf16.mxu0 0
      %559 = vmatpush1.bf16.msra.mxu0 0
      %560 = vmatprep.subr.bf16.mxu0 0
      %561 = vmatpush1.bf16.msra.mxu0 0
      %562 = vmatprep.mubr.bf16.mxu0 0
      %563 = vmatmul.mubr.bf16.gmra.mrb[0].mxu0 %v528
      %v564 = vpop.f32.mrb[0].mxu0
      %v565 = vadd.f32 0.0, %v564
      %v566 = vpop.f32.mrb[0].mxu0
      %v567 = vpop.f32.mrb[0].mxu0
      %v568 = vadd.f32 0.0, %v567
      %v569 = vpop.f32.mrb[0].mxu0
      %570 = vdwg.mxu0
      %v571 = vpack.c.bf16 %v568, %v565
      %573 = vrot.lane.b32.xlu0 %v441, 112
      %v574 = vpop.permute.xlu0 %573
      %575 = vrot.lane.b32.xlu0 %v442, 80
      %v576 = vpop.permute.xlu0 %575
      %v578 = vsel %vm453, %v574, 0
      %v581 = vsel %vm453, %v576, 0
      %583 = vmatprep.subr.bf16.mxu0 0
      %584 = vmatpush1.bf16.xpose.msra.mxu0 %v581
      %585 = vmatprep.subr.bf16.mxu0 0
      %586 = vmatpush1.bf16.xpose.msra.mxu0 0
      %587 = vmatprep.subr.bf16.mxu0 0
      %588 = vmatpush1.bf16.xpose.msra.mxu0 0
      %589 = vmatprep.subr.bf16.mxu0 0
      %590 = vmatpush1.bf16.xpose.msra.mxu0 0
      %591 = vmatprep.subr.bf16.mxu0 0
      %592 = vmatpush1.bf16.xpose.msra.mxu0 0
      %593 = vmatprep.subr.bf16.mxu0 0
      %594 = vmatpush1.bf16.xpose.msra.mxu0 0
      %595 = vmatprep.subr.bf16.mxu0 0
      %596 = vmatpush1.bf16.xpose.msra.mxu0 0
      %597 = vmatprep.subr.bf16.mxu0 0
      %598 = vmatpush1.bf16.xpose.msra.mxu0 0
      %599 = vmatprep.subr.bf16.mxu0 0
      %600 = vmatpush1.bf16.xpose.msra.mxu0 0
      %601 = vmatprep.subr.bf16.mxu0 0
      %602 = vmatpush1.bf16.xpose.msra.mxu0 0
      %603 = vmatprep.subr.bf16.mxu0 0
      %604 = vmatpush1.bf16.xpose.msra.mxu0 0
      %605 = vmatprep.subr.bf16.mxu0 0
      %606 = vmatpush1.bf16.xpose.msra.mxu0 0
      %607 = vmatprep.subr.bf16.mxu0 0
      %608 = vmatpush1.bf16.xpose.msra.mxu0 0
      %609 = vmatprep.subr.bf16.mxu0 0
      %610 = vmatpush1.bf16.xpose.msra.mxu0 0
      %611 = vmatprep.subr.bf16.mxu0 0
      %612 = vmatpush1.bf16.xpose.msra.mxu0 0
      %613 = vmatprep.subr.bf16.mxu0 0
      %614 = vmatpush1.bf16.xpose.msra.mxu0 0
      %615 = vmatprep.mubr.bf16.mxu0 0
      %616 = vmatmul.mubr.bf16.gmra.mrb[0].mxu0 %v578
      %v617 = vpop.f32.mrb[0].mxu0
      %v618 = vadd.f32 %v448, %v617
      %v619 = vpop.f32.mrb[0].mxu0
      %v620 = vpop.f32.mrb[0].mxu0
      %v621 = vadd.f32 %v448, %v620
      %v622 = vpop.f32.mrb[0].mxu0
      %623 = vdwg.mxu0
      %v624 = vsel %vm453, %v618, -inf
      %625 = vmax.xlane.f32.xlu0 %v624
      %v626 = vpop.xlane.xlu0 %625
      %v627 = vsel %vm453, %v621, -inf
      %628 = vmax.xlane.f32.xlu0 %v627
      %v629 = vpop.xlane.xlu0 %628
      %v630 = vsub.f32 %v618, %v626
      %v631 = vsub.f32 %v621, %v629
      %v632 = vmul.f32 %v630, 1.442695
      %v633 = vpow.pop %v632
      %v634 = vmul.f32 %v631, 1.442695
      %v635 = vpow.pop %v634
      %v636 = vsel %vm453, %v633, 0.0
      %637 = vadd.xlane.f32.xlu0 %v636
      %v638 = vpop.xlane.xlu0 %637
      %v639 = vsel %vm453, %v635, 0.0
      %640 = vadd.xlane.f32.xlu0 %v639
      %v641 = vpop.xlane.xlu0 %640
      %v642 = vrcp.pop %v638
      %v643 = vrcp.pop %v641
      %v644 = vmul.f32 %v633, %v642
      %v645 = vmul.f32 %v635, %v643
      %v646 = vpack.c.bf16 %v645, %v644
      %647 = vrot.lane.b32.xlu0 %v442, 48
      %v648 = vpop.permute.xlu0 %647
      %v651 = vsel %vm453, %v646, 0
      %653 = vmatprep.subr.bf16.mxu0 0
      %654 = vmatpush1.bf16.msra.mxu0 %v648
      %655 = vmatprep.subr.bf16.mxu0 0
      %656 = vmatpush1.bf16.msra.mxu0 0
      %657 = vmatprep.subr.bf16.mxu0 0
      %658 = vmatpush1.bf16.msra.mxu0 0
      %659 = vmatprep.subr.bf16.mxu0 0
      %660 = vmatpush1.bf16.msra.mxu0 0
      %661 = vmatprep.subr.bf16.mxu0 0
      %662 = vmatpush1.bf16.msra.mxu0 0
      %663 = vmatprep.subr.bf16.mxu0 0
      %664 = vmatpush1.bf16.msra.mxu0 0
      %665 = vmatprep.subr.bf16.mxu0 0
      %666 = vmatpush1.bf16.msra.mxu0 0
      %667 = vmatprep.subr.bf16.mxu0 0
      %668 = vmatpush1.bf16.msra.mxu0 0
      %669 = vmatprep.subr.bf16.mxu0 0
      %670 = vmatpush1.bf16.msra.mxu0 0
      %671 = vmatprep.subr.bf16.mxu0 0
      %672 = vmatpush1.bf16.msra.mxu0 0
      %673 = vmatprep.subr.bf16.mxu0 0
      %674 = vmatpush1.bf16.msra.mxu0 0
      %675 = vmatprep.subr.bf16.mxu0 0
      %676 = vmatpush1.bf16.msra.mxu0 0
      %677 = vmatprep.subr.bf16.mxu0 0
      %678 = vmatpush1.bf16.msra.mxu0 0
      %679 = vmatprep.subr.bf16.mxu0 0
      %680 = vmatpush1.bf16.msra.mxu0 0
      %681 = vmatprep.subr.bf16.mxu0 0
      %682 = vmatpush1.bf16.msra.mxu0 0
      %683 = vmatprep.subr.bf16.mxu0 0
      %684 = vmatpush1.bf16.msra.mxu0 0
      %685 = vmatprep.mubr.bf16.mxu0 0
      %686 = vmatmul.mubr.bf16.gmra.mrb[0].mxu0 %v651
      %v687 = vpop.f32.mrb[0].mxu0
      %v688 = vadd.f32 0.0, %v687
      %v689 = vpop.f32.mrb[0].mxu0
      %v690 = vpop.f32.mrb[0].mxu0
      %v691 = vadd.f32 0.0, %v690
      %v692 = vpop.f32.mrb[0].mxu0
      %693 = vdwg.mxu0
      %v694 = vpack.c.bf16 %v691, %v688
      %696 = vrot.lane.b32.xlu0 %v694, 16
      %v697 = vpop.permute.xlu0 %696
      %v700 = vsel %vm453, %v571, %v697
      %v701 = vld [vmem:[%s6] sm:$0xf]
      %v702 = vld [vmem:[%s6 + $0x4] sm:$0xf]
      %v703 = vld [vmem:[%s6 + $0x8] sm:$0xf]
      %v704 = vld [vmem:[%s6 + $0xc] sm:$0xf]
      %v709 = vunpack.c.l.b16 %v701
      %v710 = vunpack.c.l.b16 %v702
      %v711 = vunpack.c.l.b16 %v703
      %v712 = vunpack.c.l.b16 %v704
      %v713 = vpack.c.b16 %v710, %v709
      %v714 = vpack.c.b16 %v712, %v711
      %v717 = vsel %vm327, %v700, 0
      %719 = vmatprep.subr.bf16.mxu0 0
      %720 = vmatpush1.bf16.msra.mxu0 %v713
      %721 = vmatprep.subr.bf16.mxu0 0
      %722 = vmatpush1.bf16.msra.mxu0 %v714
      %723 = vmatprep.subr.bf16.mxu0 0
      %724 = vmatpush1.bf16.msra.mxu0 0
      %725 = vmatprep.subr.bf16.mxu0 0
      %726 = vmatpush1.bf16.msra.mxu0 0
      %727 = vmatprep.subr.bf16.mxu0 0
      %728 = vmatpush1.bf16.msra.mxu0 0
      %729 = vmatprep.subr.bf16.mxu0 0
      %730 = vmatpush1.bf16.msra.mxu0 0
      %731 = vmatprep.subr.bf16.mxu0 0
      %732 = vmatpush1.bf16.msra.mxu0 0
      %733 = vmatprep.subr.bf16.mxu0 0
      %734 = vmatpush1.bf16.msra.mxu0 0
      %735 = vmatprep.subr.bf16.mxu0 0
      %736 = vmatpush1.bf16.msra.mxu0 0
      %737 = vmatprep.subr.bf16.mxu0 0
      %738 = vmatpush1.bf16.msra.mxu0 0
      %739 = vmatprep.subr.bf16.mxu0 0
      %740 = vmatpush1.bf16.msra.mxu0 0
      %741 = vmatprep.subr.bf16.mxu0 0
      %742 = vmatpush1.bf16.msra.mxu0 0
      %743 = vmatprep.subr.bf16.mxu0 0
      %744 = vmatpush1.bf16.msra.mxu0 0
      %745 = vmatprep.subr.bf16.mxu0 0
      %746 = vmatpush1.bf16.msra.mxu0 0
      %747 = vmatprep.subr.bf16.mxu0 0
      %748 = vmatpush1.bf16.msra.mxu0 0
      %749 = vmatprep.subr.bf16.mxu0 0
      %750 = vmatpush1.bf16.msra.mxu0 0
      %751 = vmatprep.mubr.bf16.mxu0 0
      %752 = vmatmul.mubr.bf16.gmra.mrb[0].mxu0 %v717
      %v753 = vpop.f32.mrb[0].mxu0
      %v754 = vadd.f32 0.0, %v753
      %v755 = vpop.f32.mrb[0].mxu0
      %v756 = vpop.f32.mrb[0].mxu0
      %v757 = vadd.f32 0.0, %v756
      %v758 = vpop.f32.mrb[0].mxu0
      %759 = vdwg.mxu0
      %v760 = vadd.f32 %v323, %v754
      %v761 = vadd.f32 %v324, %v757
      %v762 = vld [vmem:[%s7] sm:$0x1]
      %v764 = vlaneseq
      %v765 = vshrl.u32 %v764, 7
      %v766 = vsub.s32 0, %v765
      %v767 = vrot.slane %v762, %v766
      %v769 = vadd.f32 %v760, %v767
      %v770 = vadd.f32 %v761, %v767
      %v771 = vpack.c.bf16 %v770, %v769
      %v773 = vunpack.c.l.b16 %v771
      %v774 = vunpack.c.h.b16 %v771
      %v775 = vpack.c.b16 %v773, %v773
      %v776 = vpack.c.b16 %v774, %v774
      %vm779 = vcmask 257024
      %780 = vst.msk [vmem:[%s319] sm:$0xf] %vm779, %v775
      %781 = vst.msk [vmem:[%s319 + $0x4] sm:$0xf] %vm779, %v776
      %p782 = scmp.lt.s32.totalorder %s19, 1
      %s783 = scalar_select %p782, %s19, 1
      %s784 = smul.addr %s783, 2
      %s785 = smul.addr %s784, 4
      %s786 = scalar_lea.vmem %s8, %s785
      // Predicated region
      $region53: #{_lambda_.15} parent=51 // pred_check
        %p787 = pneg %p215
      $region54: #{_lambda_.15} parent=51 // pred_check_branch
        %789 = sbr.rel (%p787) target = $region56
      $region55: #{_lambda_.15} parent=51 // pred_region
        _
      $region56: #{_lambda_.15} parent=51 // pred_fallthru
        _
    $region52: #{_lambda_.15} parent=5 // pred_fallthru
      _
    %p790 = scmp.le.s32.totalorder 2, %s14
    // Predicated region
    $region57: #{_lambda_.15} parent=5 // pred_check
      %p791 = pneg %p790
    $region58: #{_lambda_.15} parent=5 // pred_check_branch
      %793 = sbr.rel (%p791) target = $region60
    $region59: #{_lambda_.15} parent=5 // pred_region
      %s794 = ssub.s32 %s14, 2
      // Predicated region
      $region61: #{_lambda_.15} parent=59 // pred_check
        %p795 = pneg %p221
      $region62: #{_lambda_.15} parent=59 // pred_check_branch
        %797 = sbr.rel (%p795) target = $region64
      $region63: #{_lambda_.15} parent=59 // pred_region
        %p798 = scmp.lt.s32.totalorder %s20, 1
        %s799 = scalar_select %p798, %s20, 1
        %s800 = smul.addr %s799, 2
        %s801 = smul.addr %s800, 4
        %s802 = scalar_lea.vmem %s8, %s801
      $region64: #{_lambda_.15} parent=59 // pred_fallthru
        _
    $region60: #{_lambda_.15} parent=5 // pred_fallthru
      _
  $region6: #{_lambda_.15} parent=0 // loop_footer
    %s18 = sadd.s32 1, %s14
  $region7: #{_lambda_.15} parent=0 // loop_footer_branch
    %13 = sbr.rel target = $region3
  $region8: #{_lambda_.15} parent=0 // loop_exit
    _

// kernel: _lambda_.16
$region0: #{_lambda_.16}
  #allocation0 [shape = 'u32[]', space=smem, size = 0x4, offset = 0x4, fixed_abs, tag = 'smem constant byte address 0x4 - core index']
  #allocation1 [shape = 'u32[144,128]{1,0:T(1,128)}', space=vmem, size = 0x12000, scoped, tag = 'internal scratch']
  %s0 = inlined_call_operand.vmem [shape: bf16[32,32], index: 0, kind: input, shape index: {}]
  %s1 = inlined_call_operand.vmem [shape: f32[1,32], index: 1, kind: input, shape index: {}]
  %s2 = inlined_call_operand.vmem [shape: f32[1,32], index: 2, kind: input, shape index: {}, may-alias: {2,6}]
  %s3 = inlined_call_operand.vmem [shape: bf16[32,128], index: 3, kind: input, shape index: {}]
  %s4 = inlined_call_operand.vmem [shape: f32[1,128], index: 4, kind: input, shape index: {}]
  %s5 = inlined_call_operand.vmem [shape: bf16[128,32], index: 5, kind: input, shape index: {}]
  %s6 = inlined_call_operand.vmem [shape: f32[1,32], index: 6, kind: input, shape index: {}, may-alias: {2,6}]
  %s7 = inlined_call_operand.vmem [shape: bf16[32,32], index: 7, kind: output, shape index: {}]
  %s8 = sld [smem:[#allocation0]]
  $region38: #{_lambda_.16} parent=0
    _
  %s10 = ssub.s32 1, %s8
  %s11 = scalar_select 0, %s10, %s8
  // Predicated region
  $region2: #{_lambda_.16} parent=0 // pred_check
    _
  $region3: #{_lambda_.16} parent=0 // pred_check_branch
    %13 = sbr.rel (0) target = $region5
  $region4: #{_lambda_.16} parent=0 // pred_region
    _
  $region5: #{_lambda_.16} parent=0 // pred_fallthru
    _
  // Predicated region
  $region6: #{_lambda_.16} parent=0 // pred_check
    _
  $region7: #{_lambda_.16} parent=0 // pred_check_branch
    %15 = sbr.rel (0) target = $region9
  $region8: #{_lambda_.16} parent=0 // pred_region
    _
  $region9: #{_lambda_.16} parent=0 // pred_fallthru
    _
  // Predicated region
  $region10: #{_lambda_.16} parent=0 // pred_check
    _
  $region11: #{_lambda_.16} parent=0 // pred_check_branch
    %17 = sbr.rel (0) target = $region13
  $region12: #{_lambda_.16} parent=0 // pred_region
    _
  $region13: #{_lambda_.16} parent=0 // pred_fallthru
    _
  // Predicated region
  $region14: #{_lambda_.16} parent=0 // pred_check
    _
  $region15: #{_lambda_.16} parent=0 // pred_check_branch
    %19 = sbr.rel (0) target = $region17
  $region16: #{_lambda_.16} parent=0 // pred_region
    _
  $region17: #{_lambda_.16} parent=0 // pred_fallthru
    _
  // Predicated region
  $region18: #{_lambda_.16} parent=0 // pred_check
    _
  $region19: #{_lambda_.16} parent=0 // pred_check_branch
    %21 = sbr.rel (0) target = $region21
  $region20: #{_lambda_.16} parent=0 // pred_region
    _
  $region21: #{_lambda_.16} parent=0 // pred_fallthru
    _
  // Predicated region
  $region22: #{_lambda_.16} parent=0 // pred_check
    _
  $region23: #{_lambda_.16} parent=0 // pred_check_branch
    %23 = sbr.rel (0) target = $region25
  $region24: #{_lambda_.16} parent=0 // pred_region
    _
  $region25: #{_lambda_.16} parent=0 // pred_fallthru
    _
  // Predicated region
  $region26: #{_lambda_.16} parent=0 // pred_check
    _
  $region27: #{_lambda_.16} parent=0 // pred_check_branch
    %25 = sbr.rel (0) target = $region29
  $region28: #{_lambda_.16} parent=0 // pred_region
    _
  $region29: #{_lambda_.16} parent=0 // pred_fallthru
    _
  %v27 = vld [vmem:[%s0] sm:$0xf]
  %v28 = vld [vmem:[%s0 + $0x4] sm:$0xf]
  %v29 = vld [vmem:[%s0 + $0x8] sm:$0xf]
  %v30 = vld [vmem:[%s0 + $0xc] sm:$0xf]
  %v31 = vunpack.c.l.bf16 %v27
  %v32 = vunpack.c.l.bf16 %v28
  %v33 = vunpack.c.l.bf16 %v29
  %v34 = vunpack.c.l.bf16 %v30
  %v35 = vld [vmem:[%s1] sm:$0x1]
  %v36 = vld [vmem:[%s2] sm:$0x1]
  %vm37 = vcmask 261120
  %v38 = vsel %vm37, %v31, 0.0
  %39 = vadd.xlane.f32.xlu0 %v38
  %v40 = vpop.xlane.xlu0 %39
  %v41 = vsel %vm37, %v32, 0.0
  %42 = vadd.xlane.f32.xlu0 %v41
  %v43 = vpop.xlane.xlu0 %42
  %v44 = vsel %vm37, %v33, 0.0
  %45 = vadd.xlane.f32.xlu0 %v44
  %v46 = vpop.xlane.xlu0 %45
  %v47 = vsel %vm37, %v34, 0.0
  %48 = vadd.xlane.f32.xlu0 %v47
  %v49 = vpop.xlane.xlu0 %48
  %v50 = vrcp.pop 32.0
  %v51 = vmul.f32 %v40, %v50
  %v52 = vmul.f32 %v43, %v50
  %v53 = vmul.f32 %v46, %v50
  %v54 = vmul.f32 %v49, %v50
  %v55 = vsub.f32 %v31, %v51
  %v56 = vsub.f32 %v32, %v52
  %v57 = vsub.f32 %v33, %v53
  %v58 = vsub.f32 %v34, %v54
  %v59 = vmul.f32 %v55, %v55
  %v60 = vmul.f32 %v56, %v56
  %v61 = vmul.f32 %v57, %v57
  %v62 = vmul.f32 %v58, %v58
  %v63 = vsel %vm37, %v59, 0.0
  %64 = vadd.xlane.f32.xlu0 %v63
  %v65 = vpop.xlane.xlu0 %64
  %v66 = vsel %vm37, %v60, 0.0
  %67 = vadd.xlane.f32.xlu0 %v66
  %v68 = vpop.xlane.xlu0 %67
  %v69 = vsel %vm37, %v61, 0.0
  %70 = vadd.xlane.f32.xlu0 %v69
  %v71 = vpop.xlane.xlu0 %70
  %v72 = vsel %vm37, %v62, 0.0
  %73 = vadd.xlane.f32.xlu0 %v72
  %v74 = vpop.xlane.xlu0 %73
  %v75 = vmul.f32 %v65, %v50
  %v76 = vmul.f32 %v68, %v50
  %v77 = vmul.f32 %v71, %v50
  %v78 = vmul.f32 %v74, %v50
  %v79 = vadd.f32 %v75, 1e-05
  %v80 = vadd.f32 %v76, 1e-05
  %v81 = vadd.f32 %v77, 1e-05
  %v82 = vadd.f32 %v78, 1e-05
  %v83 = vrsqrt.pop %v79
  %v84 = vrsqrt.pop %v80
  %v85 = vrsqrt.pop %v81
  %v86 = vrsqrt.pop %v82
  %v87 = vmul.f32 %v55, %v83
  %v88 = vmul.f32 %v56, %v84
  %v89 = vmul.f32 %v57, %v85
  %v90 = vmul.f32 %v58, %v86
  %v92 = vlaneseq
  %v93 = vshrl.u32 %v92, 7
  %v94 = vsub.s32 0, %v93
  %v95 = vrot.slane %v35, %v94
  %v97 = vmul.f32 %v87, %v95
  %v98 = vmul.f32 %v88, %v95
  %v99 = vmul.f32 %v89, %v95
  %v100 = vmul.f32 %v90, %v95
  %v102 = vlaneseq
  %v103 = vshrl.u32 %v102, 7
  %v104 = vsub.s32 0, %v103
  %v105 = vrot.slane %v36, %v104
  %v107 = vadd.f32 %v97, %v105
  %v108 = vadd.f32 %v98, %v105
  %v109 = vadd.f32 %v99, %v105
  %v110 = vadd.f32 %v100, %v105
  %v111 = vpack.c.bf16 %v108, %v107
  %v112 = vpack.c.bf16 %v110, %v109
  %v113 = vld [vmem:[%s3] sm:$0xf]
  %v114 = vld [vmem:[%s3 + $0x4] sm:$0xf]
  %v115 = vld [vmem:[%s3 + $0x8] sm:$0xf]
  %v116 = vld [vmem:[%s3 + $0xc] sm:$0xf]
  %v117 = vld [vmem:[%s4] sm:$0x1]
  %v119 = vlaneseq
  %v120 = vshrl.u32 %v119, 7
  %v121 = vsub.s32 0, %v120
  %v122 = vrot.slane %v117, %v121
  %v128 = vunpack.c.l.b16 %v113
  %v129 = vunpack.c.l.b16 %v114
  %v130 = vunpack.c.l.b16 %v115
  %v131 = vunpack.c.l.b16 %v116
  %v132 = vpack.c.b16 %v129, %v128
  %v133 = vpack.c.b16 %v131, %v130
  %v137 = vsel %vm37, %v111, 0
  %v140 = vsel %vm37, %v112, 0
  %142 = vmatprep.subr.bf16.mxu0 0
  %143 = vmatpush1.bf16.msra.mxu0 %v132
  %144 = vmatprep.subr.bf16.mxu0 0
  %145 = vmatpush1.bf16.msra.mxu0 %v133
  %146 = vmatprep.subr.bf16.mxu0 0
  %147 = vmatpush1.bf16.msra.mxu0 0
  %148 = vmatprep.subr.bf16.mxu0 0
  %149 = vmatpush1.bf16.msra.mxu0 0
  %150 = vmatprep.subr.bf16.mxu0 0
  %151 = vmatpush1.bf16.msra.mxu0 0
  %152 = vmatprep.subr.bf16.mxu0 0
  %153 = vmatpush1.bf16.msra.mxu0 0
  %154 = vmatprep.subr.bf16.mxu0 0
  %155 = vmatpush1.bf16.msra.mxu0 0
  %156 = vmatprep.subr.bf16.mxu0 0
  %157 = vmatpush1.bf16.msra.mxu0 0
  %158 = vmatprep.subr.bf16.mxu0 0
  %159 = vmatpush1.bf16.msra.mxu0 0
  %160 = vmatprep.subr.bf16.mxu0 0
  %161 = vmatpush1.bf16.msra.mxu0 0
  %162 = vmatprep.subr.bf16.mxu0 0
  %163 = vmatpush1.bf16.msra.mxu0 0
  %164 = vmatprep.subr.bf16.mxu0 0
  %165 = vmatpush1.bf16.msra.mxu0 0
  %166 = vmatprep.subr.bf16.mxu0 0
  %167 = vmatpush1.bf16.msra.mxu0 0
  %168 = vmatprep.subr.bf16.mxu0 0
  %169 = vmatpush1.bf16.msra.mxu0 0
  %170 = vmatprep.subr.bf16.mxu0 0
  %171 = vmatpush1.bf16.msra.mxu0 0
  %172 = vmatprep.subr.bf16.mxu0 0
  %173 = vmatpush1.bf16.msra.mxu0 0
  %174 = vmatprep.mubr.bf16.mxu0 0
  %175 = vmatmul.mubr.bf16.gmra.mrb[0].mxu0 %v137
  %v176 = vpop.f32.mrb[0].mxu0
  %v177 = vadd.f32 %v122, %v176
  %v178 = vpop.f32.mrb[0].mxu0
  %v179 = vpop.f32.mrb[0].mxu0
  %v180 = vadd.f32 %v122, %v179
  %v181 = vpop.f32.mrb[0].mxu0
  %182 = vmatprep.mubr.bf16.mxu0 0
  %183 = vmatmul.mubr.bf16.gmra.mrb[0].mxu0 %v140
  %v184 = vpop.f32.mrb[0].mxu0
  %v185 = vadd.f32 %v122, %v184
  %v186 = vpop.f32.mrb[0].mxu0
  %v187 = vpop.f32.mrb[0].mxu0
  %v188 = vadd.f32 %v122, %v187
  %v189 = vpop.f32.mrb[0].mxu0
  %190 = vdwg.mxu0
  %v191 = vmul.f32 %v177, 1.702
  %v192 = vmul.f32 %v180, 1.702
  %v193 = vmul.f32 %v185, 1.702
  %v194 = vmul.f32 %v188, 1.702
  %v195 = vxor.u32 %v191, 2147483648
  %v196 = vxor.u32 %v192, 2147483648
  %v197 = vxor.u32 %v193, 2147483648
  %v198 = vxor.u32 %v194, 2147483648
  %v199 = vmul.f32 %v195, 1.442695
  %v200 = vpow.pop %v199
  %v201 = vmul.f32 %v196, 1.442695
  %v202 = vpow.pop %v201
  %v203 = vmul.f32 %v197, 1.442695
  %v204 = vpow.pop %v203
  %v205 = vmul.f32 %v198, 1.442695
  %v206 = vpow.pop %v205
  %v207 = vadd.f32 %v200, 1.0
  %v208 = vadd.f32 %v202, 1.0
  %v209 = vadd.f32 %v204, 1.0
  %v210 = vadd.f32 %v206, 1.0
  %v211 = vrcp.pop %v207
  %v212 = vmul.f32 1.0, %v211
  %v213 = vrcp.pop %v208
  %v214 = vmul.f32 1.0, %v213
  %v215 = vrcp.pop %v209
  %v216 = vmul.f32 1.0, %v215
  %v217 = vrcp.pop %v210
  %v218 = vmul.f32 1.0, %v217
  %v219 = vmul.f32 %v177, %v212
  %v220 = vmul.f32 %v180, %v214
  %v221 = vmul.f32 %v185, %v216
  %v222 = vmul.f32 %v188, %v218
  %v223 = vpack.c.bf16 %v220, %v219
  %v224 = vpack.c.bf16 %v222, %v221
  %v225 = vld [vmem:[%s5] sm:$0xf]
  %v226 = vld [vmem:[%s5 + $0x4] sm:$0xf]
  %v227 = vld [vmem:[%s5 + $0x8] sm:$0xf]
  %v228 = vld [vmem:[%s5 + $0xc] sm:$0xf]
  %v229 = vld [vmem:[%s5 + $0x10] sm:$0xf]
  %v230 = vld [vmem:[%s5 + $0x14] sm:$0xf]
  %v231 = vld [vmem:[%s5 + $0x18] sm:$0xf]
  %v232 = vld [vmem:[%s5 + $0x1c] sm:$0xf]
  %v233 = vld [vmem:[%s5 + $0x20] sm:$0xf]
  %v234 = vld [vmem:[%s5 + $0x24] sm:$0xf]
  %v235 = vld [vmem:[%s5 + $0x28] sm:$0xf]
  %v236 = vld [vmem:[%s5 + $0x2c] sm:$0xf]
  %v237 = vld [vmem:[%s5 + $0x30] sm:$0xf]
  %v238 = vld [vmem:[%s5 + $0x34] sm:$0xf]
  %v239 = vld [vmem:[%s5 + $0x38] sm:$0xf]
  %v240 = vld [vmem:[%s5 + $0x3c] sm:$0xf]
  %v241 = vld [vmem:[%s6] sm:$0x1]
  %v243 = vlaneseq
  %v244 = vshrl.u32 %v243, 7
  %v245 = vsub.s32 0, %v244
  %v246 = vrot.slane %v241, %v245
  %v264 = vunpack.c.l.b16 %v225
  %v265 = vunpack.c.l.b16 %v226
  %v266 = vunpack.c.l.b16 %v227
  %v267 = vunpack.c.l.b16 %v228
  %v268 = vunpack.c.l.b16 %v229
  %v269 = vunpack.c.l.b16 %v230
  %v270 = vunpack.c.l.b16 %v231
  %v271 = vunpack.c.l.b16 %v232
  %v272 = vunpack.c.l.b16 %v233
  %v273 = vunpack.c.l.b16 %v234
  %v274 = vunpack.c.l.b16 %v235
  %v275 = vunpack.c.l.b16 %v236
  %v276 = vunpack.c.l.b16 %v237
  %v277 = vunpack.c.l.b16 %v238
  %v278 = vunpack.c.l.b16 %v239
  %v279 = vunpack.c.l.b16 %v240
  %v280 = vpack.c.b16 %v265, %v264
  %v281 = vpack.c.b16 %v267, %v266
  %v282 = vpack.c.b16 %v269, %v268
  %v283 = vpack.c.b16 %v271, %v270
  %v284 = vpack.c.b16 %v273, %v272
  %v285 = vpack.c.b16 %v275, %v274
  %v286 = vpack.c.b16 %v277, %v276
  %v287 = vpack.c.b16 %v279, %v278
  %296 = vmatprep.subr.bf16.mxu0 0
  %297 = vmatpush1.bf16.msra.mxu0 %v280
  %298 = vmatprep.subr.bf16.mxu0 0
  %299 = vmatpush1.bf16.msra.mxu0 %v281
  %300 = vmatprep.subr.bf16.mxu0 0
  %301 = vmatpush1.bf16.msra.mxu0 %v282
  %302 = vmatprep.subr.bf16.mxu0 0
  %303 = vmatpush1.bf16.msra.mxu0 %v283
  %304 = vmatprep.subr.bf16.mxu0 0
  %305 = vmatpush1.bf16.msra.mxu0 %v284
  %306 = vmatprep.subr.bf16.mxu0 0
  %307 = vmatpush1.bf16.msra.mxu0 %v285
  %308 = vmatprep.subr.bf16.mxu0 0
  %309 = vmatpush1.bf16.msra.mxu0 %v286
  %310 = vmatprep.subr.bf16.mxu0 0
  %311 = vmatpush1.bf16.msra.mxu0 %v287
  %312 = vmatprep.subr.bf16.mxu0 0
  %313 = vmatpush1.bf16.msra.mxu0 0
  %314 = vmatprep.subr.bf16.mxu0 0
  %315 = vmatpush1.bf16.msra.mxu0 0
  %316 = vmatprep.subr.bf16.mxu0 0
  %317 = vmatpush1.bf16.msra.mxu0 0
  %318 = vmatprep.subr.bf16.mxu0 0
  %319 = vmatpush1.bf16.msra.mxu0 0
  %320 = vmatprep.subr.bf16.mxu0 0
  %321 = vmatpush1.bf16.msra.mxu0 0
  %322 = vmatprep.subr.bf16.mxu0 0
  %323 = vmatpush1.bf16.msra.mxu0 0
  %324 = vmatprep.subr.bf16.mxu0 0
  %325 = vmatpush1.bf16.msra.mxu0 0
  %326 = vmatprep.subr.bf16.mxu0 0
  %327 = vmatpush1.bf16.msra.mxu0 0
  %328 = vmatprep.mubr.bf16.mxu0 0
  %329 = vmatmul.mubr.bf16.gmra.mrb[0].mxu0 %v223
  %v330 = vpop.f32.mrb[0].mxu0
  %v331 = vadd.f32 %v246, %v330
  %v332 = vpop.f32.mrb[0].mxu0
  %v333 = vpop.f32.mrb[0].mxu0
  %v334 = vadd.f32 %v246, %v333
  %v335 = vpop.f32.mrb[0].mxu0
  %336 = vmatprep.mubr.bf16.mxu0 0
  %337 = vmatmul.mubr.bf16.gmra.mrb[0].mxu0 %v224
  %v338 = vpop.f32.mrb[0].mxu0
  %v339 = vadd.f32 %v246, %v338
  %v340 = vpop.f32.mrb[0].mxu0
  %v341 = vpop.f32.mrb[0].mxu0
  %v342 = vadd.f32 %v246, %v341
  %v343 = vpop.f32.mrb[0].mxu0
  %344 = vdwg.mxu0
  %v345 = vadd.f32 %v31, %v331
  %v346 = vadd.f32 %v32, %v334
  %v347 = vadd.f32 %v33, %v339
  %v348 = vadd.f32 %v34, %v342
  %v349 = vpack.c.bf16 %v346, %v345
  %v350 = vpack.c.bf16 %v348, %v347
  %v353 = vunpack.c.l.b16 %v349
  %v354 = vunpack.c.h.b16 %v349
  %v355 = vunpack.c.l.b16 %v350
  %v356 = vunpack.c.h.b16 %v350
  %v357 = vpack.c.b16 %v353, %v353
  %v358 = vpack.c.b16 %v354, %v354
  %v359 = vpack.c.b16 %v355, %v355
  %v360 = vpack.c.b16 %v356, %v356
  %vm365 = vcmask 257024
  %366 = vst.msk [vmem:[%s7] sm:$0xf] %vm365, %v357
  %367 = vst.msk [vmem:[%s7 + $0x4] sm:$0xf] %vm365, %v358
  %368 = vst.msk [vmem:[%s7 + $0x8] sm:$0xf] %vm365, %v359
  %369 = vst.msk [vmem:[%s7 + $0xc] sm:$0xf] %vm365, %v360
  // Predicated region
  $region30: #{_lambda_.16} parent=0 // pred_check
    _
  $region31: #{_lambda_.16} parent=0 // pred_check_branch
    %371 = sbr.rel (0) target = $region33
  $region32: #{_lambda_.16} parent=0 // pred_region
    _
  $region33: #{_lambda_.16} parent=0 // pred_fallthru
    _
  // Predicated region
  $region34: #{_lambda_.16} parent=0 // pred_check
    _
  $region35: #{_lambda_.16} parent=0 // pred_check_branch
    %373 = sbr.rel (0) target = $region37
  $region36: #{_lambda_.16} parent=0 // pred_region
    _
  $region37: #{_lambda_.16} parent=0 // pred_fallthru
    _

// kernel: _lambda_.19
$region0: #{_lambda_.19}
  #allocation0 [shape = 'u32[]', space=smem, size = 0x4, offset = 0x4, fixed_abs, tag = 'smem constant byte address 0x4 - core index']
  #allocation1 [shape = 'u32[144,128]{1,0:T(1,128)}', space=vmem, size = 0x12000, scoped, tag = 'internal scratch']
  %s0 = inlined_call_operand.vmem [shape: bf16[16,32], index: 0, kind: input, shape index: {}]
  %s1 = inlined_call_operand.vmem [shape: f32[1,32], index: 1, kind: input, shape index: {}]
  %s2 = inlined_call_operand.vmem [shape: f32[1,32], index: 2, kind: input, shape index: {}]
  %s3 = inlined_call_operand.vmem [shape: bf16[32,32], index: 3, kind: input, shape index: {}]
  %s4 = inlined_call_operand.vmem [shape: f32[16,32], index: 4, kind: output, shape index: {}]
  %s5 = sld [smem:[#allocation0]]
  $region26: #{_lambda_.19} parent=0
    _
  %s7 = ssub.s32 1, %s5
  %s8 = scalar_select 0, %s7, %s5
  // Predicated region
  $region2: #{_lambda_.19} parent=0 // pred_check
    _
  $region3: #{_lambda_.19} parent=0 // pred_check_branch
    %10 = sbr.rel (0) target = $region5
  $region4: #{_lambda_.19} parent=0 // pred_region
    _
  $region5: #{_lambda_.19} parent=0 // pred_fallthru
    _
  // Predicated region
  $region6: #{_lambda_.19} parent=0 // pred_check
    _
  $region7: #{_lambda_.19} parent=0 // pred_check_branch
    %12 = sbr.rel (0) target = $region9
  $region8: #{_lambda_.19} parent=0 // pred_region
    _
  $region9: #{_lambda_.19} parent=0 // pred_fallthru
    _
  // Predicated region
  $region10: #{_lambda_.19} parent=0 // pred_check
    _
  $region11: #{_lambda_.19} parent=0 // pred_check_branch
    %14 = sbr.rel (0) target = $region13
  $region12: #{_lambda_.19} parent=0 // pred_region
    _
  $region13: #{_lambda_.19} parent=0 // pred_fallthru
    _
  // Predicated region
  $region14: #{_lambda_.19} parent=0 // pred_check
    _
  $region15: #{_lambda_.19} parent=0 // pred_check_branch
    %16 = sbr.rel (0) target = $region17
  $region16: #{_lambda_.19} parent=0 // pred_region
    _
  $region17: #{_lambda_.19} parent=0 // pred_fallthru
    _
  %v18 = vld [vmem:[%s0] sm:$0xf]
  %v19 = vld [vmem:[%s0 + $0x4] sm:$0xf]
  %v20 = vunpack.c.l.bf16 %v18
  %v21 = vunpack.c.l.bf16 %v19
  %v22 = vld [vmem:[%s1] sm:$0x1]
  %v23 = vld [vmem:[%s2] sm:$0x1]
  %vm24 = vcmask 261120
  %v25 = vsel %vm24, %v20, 0.0
  %26 = vadd.xlane.f32.xlu0 %v25
  %v27 = vpop.xlane.xlu0 %26
  %v28 = vsel %vm24, %v21, 0.0
  %29 = vadd.xlane.f32.xlu0 %v28
  %v30 = vpop.xlane.xlu0 %29
  %v31 = vrcp.pop 32.0
  %v32 = vmul.f32 %v27, %v31
  %v33 = vmul.f32 %v30, %v31
  %v34 = vsub.f32 %v20, %v32
  %v35 = vsub.f32 %v21, %v33
  %v36 = vmul.f32 %v34, %v34
  %v37 = vmul.f32 %v35, %v35
  %v38 = vsel %vm24, %v36, 0.0
  %39 = vadd.xlane.f32.xlu0 %v38
  %v40 = vpop.xlane.xlu0 %39
  %v41 = vsel %vm24, %v37, 0.0
  %42 = vadd.xlane.f32.xlu0 %v41
  %v43 = vpop.xlane.xlu0 %42
  %v44 = vmul.f32 %v40, %v31
  %v45 = vmul.f32 %v43, %v31
  %v46 = vadd.f32 %v44, 1e-05
  %v47 = vadd.f32 %v45, 1e-05
  %v48 = vrsqrt.pop %v46
  %v49 = vrsqrt.pop %v47
  %v50 = vmul.f32 %v34, %v48
  %v51 = vmul.f32 %v35, %v49
  %v53 = vlaneseq
  %v54 = vshrl.u32 %v53, 7
  %v55 = vsub.s32 0, %v54
  %v56 = vrot.slane %v22, %v55
  %v58 = vmul.f32 %v50, %v56
  %v59 = vmul.f32 %v51, %v56
  %v61 = vlaneseq
  %v62 = vshrl.u32 %v61, 7
  %v63 = vsub.s32 0, %v62
  %v64 = vrot.slane %v23, %v63
  %v66 = vadd.f32 %v58, %v64
  %v67 = vadd.f32 %v59, %v64
  %v68 = vpack.c.bf16 %v67, %v66
  %v69 = vld [vmem:[%s3] sm:$0xf]
  %v70 = vld [vmem:[%s3 + $0x4] sm:$0xf]
  %v71 = vld [vmem:[%s3 + $0x8] sm:$0xf]
  %v72 = vld [vmem:[%s3 + $0xc] sm:$0xf]
  %v77 = vunpack.c.l.b16 %v69
  %v78 = vunpack.c.l.b16 %v70
  %v79 = vunpack.c.l.b16 %v71
  %v80 = vunpack.c.l.b16 %v72
  %v81 = vpack.c.b16 %v78, %v77
  %v82 = vpack.c.b16 %v80, %v79
  %v86 = vsel %vm24, %v68, 0
  %88 = vmatprep.subr.bf16.mxu0 0
  %89 = vmatpush1.bf16.msra.mxu0 %v81
  %90 = vmatprep.subr.bf16.mxu0 0
  %91 = vmatpush1.bf16.msra.mxu0 %v82
  %92 = vmatprep.subr.bf16.mxu0 0
  %93 = vmatpush1.bf16.msra.mxu0 0
  %94 = vmatprep.subr.bf16.mxu0 0
  %95 = vmatpush1.bf16.msra.mxu0 0
  %96 = vmatprep.subr.bf16.mxu0 0
  %97 = vmatpush1.bf16.msra.mxu0 0
  %98 = vmatprep.subr.bf16.mxu0 0
  %99 = vmatpush1.bf16.msra.mxu0 0
  %100 = vmatprep.subr.bf16.mxu0 0
  %101 = vmatpush1.bf16.msra.mxu0 0
  %102 = vmatprep.subr.bf16.mxu0 0
  %103 = vmatpush1.bf16.msra.mxu0 0
  %104 = vmatprep.subr.bf16.mxu0 0
  %105 = vmatpush1.bf16.msra.mxu0 0
  %106 = vmatprep.subr.bf16.mxu0 0
  %107 = vmatpush1.bf16.msra.mxu0 0
  %108 = vmatprep.subr.bf16.mxu0 0
  %109 = vmatpush1.bf16.msra.mxu0 0
  %110 = vmatprep.subr.bf16.mxu0 0
  %111 = vmatpush1.bf16.msra.mxu0 0
  %112 = vmatprep.subr.bf16.mxu0 0
  %113 = vmatpush1.bf16.msra.mxu0 0
  %114 = vmatprep.subr.bf16.mxu0 0
  %115 = vmatpush1.bf16.msra.mxu0 0
  %116 = vmatprep.subr.bf16.mxu0 0
  %117 = vmatpush1.bf16.msra.mxu0 0
  %118 = vmatprep.subr.bf16.mxu0 0
  %119 = vmatpush1.bf16.msra.mxu0 0
  %120 = vmatprep.mubr.bf16.mxu0 0
  %121 = vmatmul.mubr.bf16.gmra.mrb[0].mxu0 %v86
  %v122 = vpop.f32.mrb[0].mxu0
  %v123 = vadd.f32 0.0, %v122
  %v124 = vpop.f32.mrb[0].mxu0
  %v125 = vpop.f32.mrb[0].mxu0
  %v126 = vadd.f32 0.0, %v125
  %v127 = vpop.f32.mrb[0].mxu0
  %128 = vdwg.mxu0
  %v129 = vmul.f32 %v123, %v123
  %v130 = vmul.f32 %v126, %v126
  %v131 = vsel %vm24, %v129, 0.0
  %132 = vadd.xlane.f32.xlu0 %v131
  %v133 = vpop.xlane.xlu0 %132
  %v134 = vsel %vm24, %v130, 0.0
  %135 = vadd.xlane.f32.xlu0 %v134
  %v136 = vpop.xlane.xlu0 %135
  %v137 = vmax.f32 %v133, 1e-30
  %v138 = vmax.f32 %v136, 1e-30
  %v139 = vrsqrt.pop %v137
  %v140 = vrsqrt.pop %v138
  %v141 = vmul.f32 %v123, %v139
  %v142 = vmul.f32 %v126, %v140
  %143 = vst.msk [vmem:[%s4] sm:$0xff] %vm24, %v141
  %144 = vst.msk [vmem:[%s4 + $0x8] sm:$0xff] %vm24, %v142
  // Predicated region
  $region18: #{_lambda_.19} parent=0 // pred_check
    _
  $region19: #{_lambda_.19} parent=0 // pred_check_branch
    %146 = sbr.rel (0) target = $region21
  $region20: #{_lambda_.19} parent=0 // pred_region
    _
  $region21: #{_lambda_.19} parent=0 // pred_fallthru
    _
  // Predicated region
  $region22: #{_lambda_.19} parent=0 // pred_check
    _
  $region23: #{_lambda_.19} parent=0 // pred_check_branch
    %148 = sbr.rel (0) target = $region25
  $region24: #{_lambda_.19} parent=0 // pred_region
    _
  $region25: #{_lambda_.19} parent=0 // pred_fallthru
    _

// kernel: _lambda_.20
$region0: #{_lambda_.20}
  #allocation0 [shape = 'u32[]', space=smem, size = 0x4, offset = 0x4, fixed_abs, tag = 'smem constant byte address 0x4 - core index']
  #allocation1 [shape = 'u32[144,128]{1,0:T(1,128)}', space=vmem, size = 0x12000, scoped, tag = 'internal scratch']
  %s0 = inlined_call_operand.vmem [shape: f32[32,32], index: 0, kind: input, shape index: {}]
  %s1 = inlined_call_operand.vmem [shape: f32[1,32], index: 1, kind: input, shape index: {}]
  %s2 = inlined_call_operand.vmem [shape: f32[1,32], index: 2, kind: input, shape index: {}]
  %s3 = inlined_call_operand.vmem [shape: bf16[32,32], index: 3, kind: output, shape index: {}]
  %s4 = sld [smem:[#allocation0]]
  $region22: #{_lambda_.20} parent=0
    _
  %s6 = ssub.s32 1, %s4
  %s7 = scalar_select 0, %s6, %s4
  // Predicated region
  $region2: #{_lambda_.20} parent=0 // pred_check
    _
  $region3: #{_lambda_.20} parent=0 // pred_check_branch
    %9 = sbr.rel (0) target = $region5
  $region4: #{_lambda_.20} parent=0 // pred_region
    _
  $region5: #{_lambda_.20} parent=0 // pred_fallthru
    _
  // Predicated region
  $region6: #{_lambda_.20} parent=0 // pred_check
    _
  $region7: #{_lambda_.20} parent=0 // pred_check_branch
    %11 = sbr.rel (0) target = $region9
  $region8: #{_lambda_.20} parent=0 // pred_region
    _
  $region9: #{_lambda_.20} parent=0 // pred_fallthru
    _
  // Predicated region
  $region10: #{_lambda_.20} parent=0 // pred_check
    _
  $region11: #{_lambda_.20} parent=0 // pred_check_branch
    %13 = sbr.rel (0) target = $region13
  $region12: #{_lambda_.20} parent=0 // pred_region
    _
  $region13: #{_lambda_.20} parent=0 // pred_fallthru
    _
  %v14 = vld [vmem:[%s0] sm:$0xff]
  %v15 = vld [vmem:[%s0 + $0x8] sm:$0xff]
  %v16 = vld [vmem:[%s0 + $0x10] sm:$0xff]
  %v17 = vld [vmem:[%s0 + $0x18] sm:$0xff]
  %v18 = vld [vmem:[%s1] sm:$0x1]
  %v19 = vld [vmem:[%s2] sm:$0x1]
  %vm20 = vcmask 261120
  %v21 = vsel %vm20, %v14, 0.0
  %22 = vadd.xlane.f32.xlu0 %v21
  %v23 = vpop.xlane.xlu0 %22
  %v24 = vsel %vm20, %v15, 0.0
  %25 = vadd.xlane.f32.xlu0 %v24
  %v26 = vpop.xlane.xlu0 %25
  %v27 = vsel %vm20, %v16, 0.0
  %28 = vadd.xlane.f32.xlu0 %v27
  %v29 = vpop.xlane.xlu0 %28
  %v30 = vsel %vm20, %v17, 0.0
  %31 = vadd.xlane.f32.xlu0 %v30
  %v32 = vpop.xlane.xlu0 %31
  %v33 = vrcp.pop 32.0
  %v34 = vmul.f32 %v23, %v33
  %v35 = vmul.f32 %v26, %v33
  %v36 = vmul.f32 %v29, %v33
  %v37 = vmul.f32 %v32, %v33
  %v38 = vsub.f32 %v14, %v34
  %v39 = vsub.f32 %v15, %v35
  %v40 = vsub.f32 %v16, %v36
  %v41 = vsub.f32 %v17, %v37
  %v42 = vmul.f32 %v38, %v38
  %v43 = vmul.f32 %v39, %v39
  %v44 = vmul.f32 %v40, %v40
  %v45 = vmul.f32 %v41, %v41
  %v46 = vsel %vm20, %v42, 0.0
  %47 = vadd.xlane.f32.xlu0 %v46
  %v48 = vpop.xlane.xlu0 %47
  %v49 = vsel %vm20, %v43, 0.0
  %50 = vadd.xlane.f32.xlu0 %v49
  %v51 = vpop.xlane.xlu0 %50
  %v52 = vsel %vm20, %v44, 0.0
  %53 = vadd.xlane.f32.xlu0 %v52
  %v54 = vpop.xlane.xlu0 %53
  %v55 = vsel %vm20, %v45, 0.0
  %56 = vadd.xlane.f32.xlu0 %v55
  %v57 = vpop.xlane.xlu0 %56
  %v58 = vmul.f32 %v48, %v33
  %v59 = vmul.f32 %v51, %v33
  %v60 = vmul.f32 %v54, %v33
  %v61 = vmul.f32 %v57, %v33
  %v62 = vadd.f32 %v58, 1e-12
  %v63 = vadd.f32 %v59, 1e-12
  %v64 = vadd.f32 %v60, 1e-12
  %v65 = vadd.f32 %v61, 1e-12
  %v66 = vrsqrt.pop %v62
  %v67 = vrsqrt.pop %v63
  %v68 = vrsqrt.pop %v64
  %v69 = vrsqrt.pop %v65
  %v70 = vmul.f32 %v38, %v66
  %v71 = vmul.f32 %v39, %v67
  %v72 = vmul.f32 %v40, %v68
  %v73 = vmul.f32 %v41, %v69
  %v75 = vlaneseq
  %v76 = vshrl.u32 %v75, 7
  %v77 = vsub.s32 0, %v76
  %v78 = vrot.slane %v18, %v77
  %v80 = vmul.f32 %v70, %v78
  %v81 = vmul.f32 %v71, %v78
  %v82 = vmul.f32 %v72, %v78
  %v83 = vmul.f32 %v73, %v78
  %v85 = vlaneseq
  %v86 = vshrl.u32 %v85, 7
  %v87 = vsub.s32 0, %v86
  %v88 = vrot.slane %v19, %v87
  %v90 = vadd.f32 %v80, %v88
  %v91 = vadd.f32 %v81, %v88
  %v92 = vadd.f32 %v82, %v88
  %v93 = vadd.f32 %v83, %v88
  %v94 = vpack.c.bf16 %v91, %v90
  %v95 = vpack.c.bf16 %v93, %v92
  %v98 = vunpack.c.l.b16 %v94
  %v99 = vunpack.c.h.b16 %v94
  %v100 = vunpack.c.l.b16 %v95
  %v101 = vunpack.c.h.b16 %v95
  %v102 = vpack.c.b16 %v98, %v98
  %v103 = vpack.c.b16 %v99, %v99
  %v104 = vpack.c.b16 %v100, %v100
  %v105 = vpack.c.b16 %v101, %v101
  %vm110 = vcmask 257024
  %111 = vst.msk [vmem:[%s3] sm:$0xf] %vm110, %v102
  %112 = vst.msk [vmem:[%s3 + $0x4] sm:$0xf] %vm110, %v103
  %113 = vst.msk [vmem:[%s3 + $0x8] sm:$0xf] %vm110, %v104
  %114 = vst.msk [vmem:[%s3 + $0xc] sm:$0xf] %vm110, %v105
  // Predicated region
  $region14: #{_lambda_.20} parent=0 // pred_check
    _
  $region15: #{_lambda_.20} parent=0 // pred_check_branch
    %116 = sbr.rel (0) target = $region17
  $region16: #{_lambda_.20} parent=0 // pred_region
    _
  $region17: #{_lambda_.20} parent=0 // pred_fallthru
    _
  // Predicated region
  $region18: #{_lambda_.20} parent=0 // pred_check
    _
  $region19: #{_lambda_.20} parent=0 // pred_check_branch
    %118 = sbr.rel (0) target = $region21
  $region20: #{_lambda_.20} parent=0 // pred_region
    _
  $region21: #{_lambda_.20} parent=0 // pred_fallthru
    _

// kernel: _lambda_.22
$region0: #{_lambda_.22}
  #allocation0 [shape = 'u32[]', space=smem, size = 0x4, offset = 0x4, fixed_abs, tag = 'smem constant byte address 0x4 - core index']
  #allocation1 [shape = 'u32[144,128]{1,0:T(1,128)}', space=vmem, size = 0x12000, scoped, tag = 'internal scratch']
  %s0 = inlined_call_operand.vmem [shape: bf16[32,32], index: 0, kind: input, shape index: {}]
  %s1 = inlined_call_operand.vmem [shape: f32[1,32], index: 1, kind: input, shape index: {}]
  %s2 = inlined_call_operand.vmem [shape: f32[1,32], index: 2, kind: input, shape index: {}, may-alias: {2,6}]
  %s3 = inlined_call_operand.vmem [shape: bf16[32,64], index: 3, kind: input, shape index: {}]
  %s4 = inlined_call_operand.vmem [shape: f32[1,64], index: 4, kind: input, shape index: {}]
  %s5 = inlined_call_operand.vmem [shape: bf16[64,32], index: 5, kind: input, shape index: {}]
  %s6 = inlined_call_operand.vmem [shape: f32[1,32], index: 6, kind: input, shape index: {}, may-alias: {2,6}]
  %s7 = inlined_call_operand.vmem [shape: bf16[32,32], index: 7, kind: output, shape index: {}]
  %s8 = sld [smem:[#allocation0]]
  $region38: #{_lambda_.22} parent=0
    _
  %s10 = ssub.s32 1, %s8
  %s11 = scalar_select 0, %s10, %s8
  // Predicated region
  $region2: #{_lambda_.22} parent=0 // pred_check
    _
  $region3: #{_lambda_.22} parent=0 // pred_check_branch
    %13 = sbr.rel (0) target = $region5
  $region4: #{_lambda_.22} parent=0 // pred_region
    _
  $region5: #{_lambda_.22} parent=0 // pred_fallthru
    _
  // Predicated region
  $region6: #{_lambda_.22} parent=0 // pred_check
    _
  $region7: #{_lambda_.22} parent=0 // pred_check_branch
    %15 = sbr.rel (0) target = $region9
  $region8: #{_lambda_.22} parent=0 // pred_region
    _
  $region9: #{_lambda_.22} parent=0 // pred_fallthru
    _
  // Predicated region
  $region10: #{_lambda_.22} parent=0 // pred_check
    _
  $region11: #{_lambda_.22} parent=0 // pred_check_branch
    %17 = sbr.rel (0) target = $region13
  $region12: #{_lambda_.22} parent=0 // pred_region
    _
  $region13: #{_lambda_.22} parent=0 // pred_fallthru
    _
  // Predicated region
  $region14: #{_lambda_.22} parent=0 // pred_check
    _
  $region15: #{_lambda_.22} parent=0 // pred_check_branch
    %19 = sbr.rel (0) target = $region17
  $region16: #{_lambda_.22} parent=0 // pred_region
    _
  $region17: #{_lambda_.22} parent=0 // pred_fallthru
    _
  // Predicated region
  $region18: #{_lambda_.22} parent=0 // pred_check
    _
  $region19: #{_lambda_.22} parent=0 // pred_check_branch
    %21 = sbr.rel (0) target = $region21
  $region20: #{_lambda_.22} parent=0 // pred_region
    _
  $region21: #{_lambda_.22} parent=0 // pred_fallthru
    _
  // Predicated region
  $region22: #{_lambda_.22} parent=0 // pred_check
    _
  $region23: #{_lambda_.22} parent=0 // pred_check_branch
    %23 = sbr.rel (0) target = $region25
  $region24: #{_lambda_.22} parent=0 // pred_region
    _
  $region25: #{_lambda_.22} parent=0 // pred_fallthru
    _
  // Predicated region
  $region26: #{_lambda_.22} parent=0 // pred_check
    _
  $region27: #{_lambda_.22} parent=0 // pred_check_branch
    %25 = sbr.rel (0) target = $region29
  $region28: #{_lambda_.22} parent=0 // pred_region
    _
  $region29: #{_lambda_.22} parent=0 // pred_fallthru
    _
  %v27 = vld [vmem:[%s0] sm:$0xf]
  %v28 = vld [vmem:[%s0 + $0x4] sm:$0xf]
  %v29 = vld [vmem:[%s0 + $0x8] sm:$0xf]
  %v30 = vld [vmem:[%s0 + $0xc] sm:$0xf]
  %v31 = vunpack.c.l.bf16 %v27
  %v32 = vunpack.c.l.bf16 %v28
  %v33 = vunpack.c.l.bf16 %v29
  %v34 = vunpack.c.l.bf16 %v30
  %v35 = vld [vmem:[%s1] sm:$0x1]
  %v36 = vld [vmem:[%s2] sm:$0x1]
  %v37 = vld [vmem:[%s3] sm:$0xf]
  %v38 = vld [vmem:[%s3 + $0x4] sm:$0xf]
  %v39 = vld [vmem:[%s3 + $0x8] sm:$0xf]
  %v40 = vld [vmem:[%s3 + $0xc] sm:$0xf]
  %v41 = vld [vmem:[%s4] sm:$0x1]
  %v43 = vlaneseq
  %v44 = vshrl.u32 %v43, 7
  %v45 = vsub.s32 0, %v44
  %v46 = vrot.slane %v41, %v45
  %v52 = vunpack.c.l.b16 %v27
  %v53 = vunpack.c.l.b16 %v28
  %v54 = vunpack.c.l.b16 %v29
  %v55 = vunpack.c.l.b16 %v30
  %v56 = vpack.c.b16 %v53, %v52
  %v57 = vpack.c.b16 %v55, %v54
  %v62 = vunpack.c.l.b16 %v37
  %v63 = vunpack.c.l.b16 %v38
  %v64 = vunpack.c.l.b16 %v39
  %v65 = vunpack.c.l.b16 %v40
  %v66 = vpack.c.b16 %v63, %v62
  %v67 = vpack.c.b16 %v65, %v64
  %vm70 = vcmask 261120
  %v72 = vsel %vm70, %v56, 0
  %v75 = vsel %vm70, %v57, 0
  %77 = vmatprep.subr.bf16.mxu0 0
  %78 = vmatpush1.bf16.msra.mxu0 %v66
  %79 = vmatprep.subr.bf16.mxu0 0
  %80 = vmatpush1.bf16.msra.mxu0 %v67
  %81 = vmatprep.subr.bf16.mxu0 0
  %82 = vmatpush1.bf16.msra.mxu0 0
  %83 = vmatprep.subr.bf16.mxu0 0
  %84 = vmatpush1.bf16.msra.mxu0 0
  %85 = vmatprep.subr.bf16.mxu0 0
  %86 = vmatpush1.bf16.msra.mxu0 0
  %87 = vmatprep.subr.bf16.mxu0 0
  %88 = vmatpush1.bf16.msra.mxu0 0
  %89 = vmatprep.subr.bf16.mxu0 0
  %90 = vmatpush1.bf16.msra.mxu0 0
  %91 = vmatprep.subr.bf16.mxu0 0
  %92 = vmatpush1.bf16.msra.mxu0 0
  %93 = vmatprep.subr.bf16.mxu0 0
  %94 = vmatpush1.bf16.msra.mxu0 0
  %95 = vmatprep.subr.bf16.mxu0 0
  %96 = vmatpush1.bf16.msra.mxu0 0
  %97 = vmatprep.subr.bf16.mxu0 0
  %98 = vmatpush1.bf16.msra.mxu0 0
  %99 = vmatprep.subr.bf16.mxu0 0
  %100 = vmatpush1.bf16.msra.mxu0 0
  %101 = vmatprep.subr.bf16.mxu0 0
  %102 = vmatpush1.bf16.msra.mxu0 0
  %103 = vmatprep.subr.bf16.mxu0 0
  %104 = vmatpush1.bf16.msra.mxu0 0
  %105 = vmatprep.subr.bf16.mxu0 0
  %106 = vmatpush1.bf16.msra.mxu0 0
  %107 = vmatprep.subr.bf16.mxu0 0
  %108 = vmatpush1.bf16.msra.mxu0 0
  %109 = vmatprep.mubr.bf16.mxu0 0
  %110 = vmatmul.mubr.bf16.gmra.mrb[0].mxu0 %v72
  %v111 = vpop.f32.mrb[0].mxu0
  %v112 = vadd.f32 %v46, %v111
  %v113 = vpop.f32.mrb[0].mxu0
  %v114 = vpop.f32.mrb[0].mxu0
  %v115 = vadd.f32 %v46, %v114
  %v116 = vpop.f32.mrb[0].mxu0
  %117 = vmatprep.mubr.bf16.mxu0 0
  %118 = vmatmul.mubr.bf16.gmra.mrb[0].mxu0 %v75
  %v119 = vpop.f32.mrb[0].mxu0
  %v120 = vadd.f32 %v46, %v119
  %v121 = vpop.f32.mrb[0].mxu0
  %v122 = vpop.f32.mrb[0].mxu0
  %v123 = vadd.f32 %v46, %v122
  %v124 = vpop.f32.mrb[0].mxu0
  %125 = vdwg.mxu0
  %v126 = vmul.f32 %v112, %v112
  %v127 = vmul.f32 %v115, %v115
  %v128 = vmul.f32 %v120, %v120
  %v129 = vmul.f32 %v123, %v123
  %v130 = vmul.f32 %v112, %v126
  %v131 = vmul.f32 %v115, %v127
  %v132 = vmul.f32 %v120, %v128
  %v133 = vmul.f32 %v123, %v129
  %v134 = vmul.f32 %v130, 0.044715
  %v135 = vmul.f32 %v131, 0.044715
  %v136 = vmul.f32 %v132, 0.044715
  %v137 = vmul.f32 %v133, 0.044715
  %v138 = vadd.f32 %v112, %v134
  %v139 = vadd.f32 %v115, %v135
  %v140 = vadd.f32 %v120, %v136
  %v141 = vadd.f32 %v123, %v137
  %v142 = vmul.f32 %v138, 0.7978846
  %v143 = vmul.f32 %v139, 0.7978846
  %v144 = vmul.f32 %v140, 0.7978846
  %v145 = vmul.f32 %v141, 0.7978846
  %v146 = vtanh.pop %v142
  %v147 = vtanh.pop %v143
  %v148 = vtanh.pop %v144
  %v149 = vtanh.pop %v145
  %v150 = vadd.f32 %v146, 1.0
  %v151 = vadd.f32 %v147, 1.0
  %v152 = vadd.f32 %v148, 1.0
  %v153 = vadd.f32 %v149, 1.0
  %v154 = vmul.f32 %v150, 0.5
  %v155 = vmul.f32 %v151, 0.5
  %v156 = vmul.f32 %v152, 0.5
  %v157 = vmul.f32 %v153, 0.5
  %v158 = vmul.f32 %v112, %v154
  %v159 = vmul.f32 %v115, %v155
  %v160 = vmul.f32 %v120, %v156
  %v161 = vmul.f32 %v123, %v157
  %v162 = vpack.c.bf16 %v159, %v158
  %v163 = vpack.c.bf16 %v161, %v160
  %v164 = vld [vmem:[%s5] sm:$0xf]
  %v165 = vld [vmem:[%s5 + $0x4] sm:$0xf]
  %v166 = vld [vmem:[%s5 + $0x8] sm:$0xf]
  %v167 = vld [vmem:[%s5 + $0xc] sm:$0xf]
  %v168 = vld [vmem:[%s5 + $0x10] sm:$0xf]
  %v169 = vld [vmem:[%s5 + $0x14] sm:$0xf]
  %v170 = vld [vmem:[%s5 + $0x18] sm:$0xf]
  %v171 = vld [vmem:[%s5 + $0x1c] sm:$0xf]
  %v172 = vld [vmem:[%s6] sm:$0x1]
  %v174 = vlaneseq
  %v175 = vshrl.u32 %v174, 7
  %v176 = vsub.s32 0, %v175
  %v177 = vrot.slane %v172, %v176
  %v187 = vunpack.c.l.b16 %v164
  %v188 = vunpack.c.l.b16 %v165
  %v189 = vunpack.c.l.b16 %v166
  %v190 = vunpack.c.l.b16 %v167
  %v191 = vunpack.c.l.b16 %v168
  %v192 = vunpack.c.l.b16 %v169
  %v193 = vunpack.c.l.b16 %v170
  %v194 = vunpack.c.l.b16 %v171
  %v195 = vpack.c.b16 %v188, %v187
  %v196 = vpack.c.b16 %v190, %v189
  %v197 = vpack.c.b16 %v192, %v191
  %v198 = vpack.c.b16 %v194, %v193
  %vm203 = vcmask 523264
  %v205 = vsel %vm203, %v162, 0
  %v208 = vsel %vm203, %v163, 0
  %210 = vmatprep.subr.bf16.mxu0 0
  %211 = vmatpush1.bf16.msra.mxu0 %v195
  %212 = vmatprep.subr.bf16.mxu0 0
  %213 = vmatpush1.bf16.msra.mxu0 %v196
  %214 = vmatprep.subr.bf16.mxu0 0
  %215 = vmatpush1.bf16.msra.mxu0 %v197
  %216 = vmatprep.subr.bf16.mxu0 0
  %217 = vmatpush1.bf16.msra.mxu0 %v198
  %218 = vmatprep.subr.bf16.mxu0 0
  %219 = vmatpush1.bf16.msra.mxu0 0
  %220 = vmatprep.subr.bf16.mxu0 0
  %221 = vmatpush1.bf16.msra.mxu0 0
  %222 = vmatprep.subr.bf16.mxu0 0
  %223 = vmatpush1.bf16.msra.mxu0 0
  %224 = vmatprep.subr.bf16.mxu0 0
  %225 = vmatpush1.bf16.msra.mxu0 0
  %226 = vmatprep.subr.bf16.mxu0 0
  %227 = vmatpush1.bf16.msra.mxu0 0
  %228 = vmatprep.subr.bf16.mxu0 0
  %229 = vmatpush1.bf16.msra.mxu0 0
  %230 = vmatprep.subr.bf16.mxu0 0
  %231 = vmatpush1.bf16.msra.mxu0 0
  %232 = vmatprep.subr.bf16.mxu0 0
  %233 = vmatpush1.bf16.msra.mxu0 0
  %234 = vmatprep.subr.bf16.mxu0 0
  %235 = vmatpush1.bf16.msra.mxu0 0
  %236 = vmatprep.subr.bf16.mxu0 0
  %237 = vmatpush1.bf16.msra.mxu0 0
  %238 = vmatprep.subr.bf16.mxu0 0
  %239 = vmatpush1.bf16.msra.mxu0 0
  %240 = vmatprep.subr.bf16.mxu0 0
  %241 = vmatpush1.bf16.msra.mxu0 0
  %242 = vmatprep.mubr.bf16.mxu0 0
  %243 = vmatmul.mubr.bf16.gmra.mrb[0].mxu0 %v205
  %v244 = vpop.f32.mrb[0].mxu0
  %v245 = vadd.f32 %v177, %v244
  %v246 = vpop.f32.mrb[0].mxu0
  %v247 = vpop.f32.mrb[0].mxu0
  %v248 = vadd.f32 %v177, %v247
  %v249 = vpop.f32.mrb[0].mxu0
  %250 = vmatprep.mubr.bf16.mxu0 0
  %251 = vmatmul.mubr.bf16.gmra.mrb[0].mxu0 %v208
  %v252 = vpop.f32.mrb[0].mxu0
  %v253 = vadd.f32 %v177, %v252
  %v254 = vpop.f32.mrb[0].mxu0
  %v255 = vpop.f32.mrb[0].mxu0
  %v256 = vadd.f32 %v177, %v255
  %v257 = vpop.f32.mrb[0].mxu0
  %258 = vdwg.mxu0
  %v259 = vadd.f32 %v31, %v245
  %v260 = vadd.f32 %v32, %v248
  %v261 = vadd.f32 %v33, %v253
  %v262 = vadd.f32 %v34, %v256
  %v263 = vsel %vm70, %v259, 0.0
  %264 = vadd.xlane.f32.xlu0 %v263
  %v265 = vpop.xlane.xlu0 %264
  %v266 = vsel %vm70, %v260, 0.0
  %267 = vadd.xlane.f32.xlu0 %v266
  %v268 = vpop.xlane.xlu0 %267
  %v269 = vsel %vm70, %v261, 0.0
  %270 = vadd.xlane.f32.xlu0 %v269
  %v271 = vpop.xlane.xlu0 %270
  %v272 = vsel %vm70, %v262, 0.0
  %273 = vadd.xlane.f32.xlu0 %v272
  %v274 = vpop.xlane.xlu0 %273
  %v275 = vrcp.pop 32.0
  %v276 = vmul.f32 %v265, %v275
  %v277 = vmul.f32 %v268, %v275
  %v278 = vmul.f32 %v271, %v275
  %v279 = vmul.f32 %v274, %v275
  %v280 = vsub.f32 %v259, %v276
  %v281 = vsub.f32 %v260, %v277
  %v282 = vsub.f32 %v261, %v278
  %v283 = vsub.f32 %v262, %v279
  %v284 = vmul.f32 %v280, %v280
  %v285 = vmul.f32 %v281, %v281
  %v286 = vmul.f32 %v282, %v282
  %v287 = vmul.f32 %v283, %v283
  %v288 = vsel %vm70, %v284, 0.0
  %289 = vadd.xlane.f32.xlu0 %v288
  %v290 = vpop.xlane.xlu0 %289
  %v291 = vsel %vm70, %v285, 0.0
  %292 = vadd.xlane.f32.xlu0 %v291
  %v293 = vpop.xlane.xlu0 %292
  %v294 = vsel %vm70, %v286, 0.0
  %295 = vadd.xlane.f32.xlu0 %v294
  %v296 = vpop.xlane.xlu0 %295
  %v297 = vsel %vm70, %v287, 0.0
  %298 = vadd.xlane.f32.xlu0 %v297
  %v299 = vpop.xlane.xlu0 %298
  %v300 = vmul.f32 %v290, %v275
  %v301 = vmul.f32 %v293, %v275
  %v302 = vmul.f32 %v296, %v275
  %v303 = vmul.f32 %v299, %v275
  %v304 = vadd.f32 %v300, 1e-12
  %v305 = vadd.f32 %v301, 1e-12
  %v306 = vadd.f32 %v302, 1e-12
  %v307 = vadd.f32 %v303, 1e-12
  %v308 = vrsqrt.pop %v304
  %v309 = vrsqrt.pop %v305
  %v310 = vrsqrt.pop %v306
  %v311 = vrsqrt.pop %v307
  %v312 = vmul.f32 %v280, %v308
  %v313 = vmul.f32 %v281, %v309
  %v314 = vmul.f32 %v282, %v310
  %v315 = vmul.f32 %v283, %v311
  %v317 = vlaneseq
  %v318 = vshrl.u32 %v317, 7
  %v319 = vsub.s32 0, %v318
  %v320 = vrot.slane %v35, %v319
  %v322 = vmul.f32 %v312, %v320
  %v323 = vmul.f32 %v313, %v320
  %v324 = vmul.f32 %v314, %v320
  %v325 = vmul.f32 %v315, %v320
  %v327 = vlaneseq
  %v328 = vshrl.u32 %v327, 7
  %v329 = vsub.s32 0, %v328
  %v330 = vrot.slane %v36, %v329
  %v332 = vadd.f32 %v322, %v330
  %v333 = vadd.f32 %v323, %v330
  %v334 = vadd.f32 %v324, %v330
  %v335 = vadd.f32 %v325, %v330
  %v336 = vpack.c.bf16 %v333, %v332
  %v337 = vpack.c.bf16 %v335, %v334
  %v340 = vunpack.c.l.b16 %v336
  %v341 = vunpack.c.h.b16 %v336
  %v342 = vunpack.c.l.b16 %v337
  %v343 = vunpack.c.h.b16 %v337
  %v344 = vpack.c.b16 %v340, %v340
  %v345 = vpack.c.b16 %v341, %v341
  %v346 = vpack.c.b16 %v342, %v342
  %v347 = vpack.c.b16 %v343, %v343
  %vm352 = vcmask 257024
  %353 = vst.msk [vmem:[%s7] sm:$0xf] %vm352, %v344
  %354 = vst.msk [vmem:[%s7 + $0x4] sm:$0xf] %vm352, %v345
  %355 = vst.msk [vmem:[%s7 + $0x8] sm:$0xf] %vm352, %v346
  %356 = vst.msk [vmem:[%s7 + $0xc] sm:$0xf] %vm352, %v347
  // Predicated region
  $region30: #{_lambda_.22} parent=0 // pred_check
    _
  $region31: #{_lambda_.22} parent=0 // pred_check_branch
    %358 = sbr.rel (0) target = $region33
  $region32: #{_lambda_.22} parent=0 // pred_region
    _
  $region33: #{_lambda_.22} parent=0 // pred_fallthru
    _
  // Predicated region
  $region34: #{_lambda_.22} parent=0 // pred_check
    _
  $region35: #{_lambda_.22} parent=0 // pred_check_branch
    %360 = sbr.rel (0) target = $region37
  $region36: #{_lambda_.22} parent=0 // pred_region
    _
  $region37: #{_lambda_.22} parent=0 // pred_fallthru
    _

// kernel: _lambda_.25
$region0: #{_lambda_.25}
  #allocation0 [shape = 'u32[]', space=smem, size = 0x4, offset = 0x4, fixed_abs, tag = 'smem constant byte address 0x4 - core index']
  #allocation1 [shape = 'u32[144,128]{1,0:T(1,128)}', space=vmem, size = 0x12000, scoped, tag = 'internal scratch']
  %s0 = inlined_call_operand.vmem [shape: bf16[16,32], index: 0, kind: input, shape index: {}]
  %s1 = inlined_call_operand.vmem [shape: f32[1,32], index: 1, kind: input, shape index: {}]
  %s2 = inlined_call_operand.vmem [shape: f32[1,32], index: 2, kind: input, shape index: {}]
  %s3 = inlined_call_operand.vmem [shape: bf16[32,32], index: 3, kind: input, shape index: {}]
  %s4 = inlined_call_operand.vmem [shape: f32[16,32], index: 4, kind: output, shape index: {}]
  %s5 = sld [smem:[#allocation0]]
  $region26: #{_lambda_.25} parent=0
    _
  %s7 = ssub.s32 1, %s5
  %s8 = scalar_select 0, %s7, %s5
  // Predicated region
  $region2: #{_lambda_.25} parent=0 // pred_check
    _
  $region3: #{_lambda_.25} parent=0 // pred_check_branch
    %10 = sbr.rel (0) target = $region5
  $region4: #{_lambda_.25} parent=0 // pred_region
    _
  $region5: #{_lambda_.25} parent=0 // pred_fallthru
    _
  // Predicated region
  $region6: #{_lambda_.25} parent=0 // pred_check
    _
  $region7: #{_lambda_.25} parent=0 // pred_check_branch
    %12 = sbr.rel (0) target = $region9
  $region8: #{_lambda_.25} parent=0 // pred_region
    _
  $region9: #{_lambda_.25} parent=0 // pred_fallthru
    _
  // Predicated region
  $region10: #{_lambda_.25} parent=0 // pred_check
    _
  $region11: #{_lambda_.25} parent=0 // pred_check_branch
    %14 = sbr.rel (0) target = $region13
  $region12: #{_lambda_.25} parent=0 // pred_region
    _
  $region13: #{_lambda_.25} parent=0 // pred_fallthru
    _
  // Predicated region
  $region14: #{_lambda_.25} parent=0 // pred_check
    _
  $region15: #{_lambda_.25} parent=0 // pred_check_branch
    %16 = sbr.rel (0) target = $region17
  $region16: #{_lambda_.25} parent=0 // pred_region
    _
  $region17: #{_lambda_.25} parent=0 // pred_fallthru
    _
  %v18 = vld [vmem:[%s0] sm:$0xf]
  %v19 = vld [vmem:[%s0 + $0x4] sm:$0xf]
  %v20 = vld [vmem:[%s3] sm:$0xf]
  %v21 = vld [vmem:[%s3 + $0x4] sm:$0xf]
  %v22 = vld [vmem:[%s3 + $0x8] sm:$0xf]
  %v23 = vld [vmem:[%s3 + $0xc] sm:$0xf]
  %v26 = vunpack.c.l.b16 %v18
  %v27 = vunpack.c.l.b16 %v19
  %v28 = vpack.c.b16 %v27, %v26
  %v33 = vunpack.c.l.b16 %v20
  %v34 = vunpack.c.l.b16 %v21
  %v35 = vunpack.c.l.b16 %v22
  %v36 = vunpack.c.l.b16 %v23
  %v37 = vpack.c.b16 %v34, %v33
  %v38 = vpack.c.b16 %v36, %v35
  %vm41 = vcmask 261120
  %v43 = vsel %vm41, %v28, 0
  %45 = vmatprep.subr.bf16.mxu0 0
  %46 = vmatpush1.bf16.msra.mxu0 %v37
  %47 = vmatprep.subr.bf16.mxu0 0
  %48 = vmatpush1.bf16.msra.mxu0 %v38
  %49 = vmatprep.subr.bf16.mxu0 0
  %50 = vmatpush1.bf16.msra.mxu0 0
  %51 = vmatprep.subr.bf16.mxu0 0
  %52 = vmatpush1.bf16.msra.mxu0 0
  %53 = vmatprep.subr.bf16.mxu0 0
  %54 = vmatpush1.bf16.msra.mxu0 0
  %55 = vmatprep.subr.bf16.mxu0 0
  %56 = vmatpush1.bf16.msra.mxu0 0
  %57 = vmatprep.subr.bf16.mxu0 0
  %58 = vmatpush1.bf16.msra.mxu0 0
  %59 = vmatprep.subr.bf16.mxu0 0
  %60 = vmatpush1.bf16.msra.mxu0 0
  %61 = vmatprep.subr.bf16.mxu0 0
  %62 = vmatpush1.bf16.msra.mxu0 0
  %63 = vmatprep.subr.bf16.mxu0 0
  %64 = vmatpush1.bf16.msra.mxu0 0
  %65 = vmatprep.subr.bf16.mxu0 0
  %66 = vmatpush1.bf16.msra.mxu0 0
  %67 = vmatprep.subr.bf16.mxu0 0
  %68 = vmatpush1.bf16.msra.mxu0 0
  %69 = vmatprep.subr.bf16.mxu0 0
  %70 = vmatpush1.bf16.msra.mxu0 0
  %71 = vmatprep.subr.bf16.mxu0 0
  %72 = vmatpush1.bf16.msra.mxu0 0
  %73 = vmatprep.subr.bf16.mxu0 0
  %74 = vmatpush1.bf16.msra.mxu0 0
  %75 = vmatprep.subr.bf16.mxu0 0
  %76 = vmatpush1.bf16.msra.mxu0 0
  %77 = vmatprep.mubr.bf16.mxu0 0
  %78 = vmatmul.mubr.bf16.gmra.mrb[0].mxu0 %v43
  %v79 = vpop.f32.mrb[0].mxu0
  %v80 = vadd.f32 0.0, %v79
  %v81 = vpop.f32.mrb[0].mxu0
  %v82 = vpop.f32.mrb[0].mxu0
  %v83 = vadd.f32 0.0, %v82
  %v84 = vpop.f32.mrb[0].mxu0
  %85 = vdwg.mxu0
  %v86 = vmul.f32 %v80, %v80
  %v87 = vmul.f32 %v83, %v83
  %v88 = vsel %vm41, %v86, 0.0
  %89 = vadd.xlane.f32.xlu0 %v88
  %v90 = vpop.xlane.xlu0 %89
  %v91 = vsel %vm41, %v87, 0.0
  %92 = vadd.xlane.f32.xlu0 %v91
  %v93 = vpop.xlane.xlu0 %92
  %v94 = vmax.f32 %v90, 1e-30
  %v95 = vmax.f32 %v93, 1e-30
  %v96 = vrsqrt.pop %v94
  %v97 = vrsqrt.pop %v95
  %v98 = vmul.f32 %v80, %v96
  %v99 = vmul.f32 %v83, %v97
  %100 = vst.msk [vmem:[%s4] sm:$0xff] %vm41, %v98
  %101 = vst.msk [vmem:[%s4 + $0x8] sm:$0xff] %vm41, %v99
  // Predicated region
  $region18: #{_lambda_.25} parent=0 // pred_check
    _
  $region19: #{_lambda_.25} parent=0 // pred_check_branch
    %103 = sbr.rel (0) target = $region21
  $region20: #{_lambda_.25} parent=0 // pred_region
    _
  $region21: #{_lambda_.25} parent=0 // pred_fallthru
    _
  // Predicated region
  $region22: #{_lambda_.25} parent=0 // pred_check
    _
  $region23: #{_lambda_.25} parent=0 // pred_check_branch
    %105 = sbr.rel (0) target = $region25
  $region24: #{_lambda_.25} parent=0 // pred_region
    _
  $region25: #{_lambda_.25} parent=0 // pred_fallthru
    _

// kernel: _lambda_.21
$region0: #{_lambda_.21}
  #allocation0 [shape = 'u32[]', space=smem, size = 0x4, offset = 0x4, fixed_abs, tag = 'smem constant byte address 0x4 - core index']
  #allocation1 [shape = 'u32[144,128]{1,0:T(1,128)}', space=vmem, size = 0x12000, scoped, tag = 'internal scratch']
  %s0 = inlined_call_operand.vmem [shape: bf16[2,16,32], index: 0, kind: input, shape index: {}]
  %s1 = inlined_call_operand.vmem [shape: f32[2,1,16], index: 1, kind: input, shape index: {}]
  %s2 = inlined_call_operand.vmem [shape: f32[1,32], index: 2, kind: input, shape index: {}]
  %s3 = inlined_call_operand.vmem [shape: f32[1,32], index: 3, kind: input, shape index: {}, may-alias: {3,7}]
  %s4 = inlined_call_operand.vmem [shape: bf16[32,96], index: 4, kind: input, shape index: {}]
  %s5 = inlined_call_operand.vmem [shape: f32[1,96], index: 5, kind: input, shape index: {}]
  %s6 = inlined_call_operand.vmem [shape: bf16[32,32], index: 6, kind: input, shape index: {}]
  %s7 = inlined_call_operand.vmem [shape: f32[1,32], index: 7, kind: input, shape index: {}, may-alias: {3,7}]
  %s8 = inlined_call_operand.vmem [shape: bf16[2,16,32], index: 8, kind: output, shape index: {}]
  %s9 = sld [smem:[#allocation0]]
  $region65: #{_lambda_.21} parent=0
    _
  %s11 = ssub.s32 1, %s9
  %s12 = scalar_select 0, %s11, %s9
  loop: start=0, step=1, limit=4
  $region2: #{_lambda_.21} parent=0 // loop_pre_header
    _
  $region3: #{_lambda_.21} parent=0 // loop_header
    %s14 = sphi 0, %s18
    %p15 = scmp.ge.s32.totalorder %s14, 4
    %s24 = sphi 0, %s26
    %s27 = sphi 0, %s24
    %s28 = sphi 0, %s27
    %s44 = sphi 0, %s28
    %s50 = sphi 0, %s52
    %s53 = sphi 0, %s50
    %s54 = sphi 0, %s53
    %s70 = sphi 0, %s54
    %s74 = sphi 0, %s74
    %s76 = sphi 0, %s74
    %s77 = sphi 0, %s76
    %s91 = sphi 0, %s77
    %s95 = sphi 0, %s95
    %s97 = sphi 0, %s95
    %s98 = sphi 0, %s97
    %s112 = sphi 0, %s98
    %s116 = sphi 0, %s116
    %s118 = sphi 0, %s116
    %s119 = sphi 0, %s118
    %s133 = sphi 0, %s119
    %s137 = sphi 0, %s137
    %s139 = sphi 0, %s137
    %s140 = sphi 0, %s139
    %s154 = sphi 0, %s140
    %s158 = sphi 0, %s158
    %s160 = sphi 0, %s158
    %s161 = sphi 0, %s160
    %s175 = sphi 0, %s161
    %s179 = sphi 0, %s179
    %s181 = sphi 0, %s179
    %s182 = sphi 0, %s181
    %s196 = sphi 0, %s182
    %s202 = sphi 0, %s204
    %s205 = sphi 0, %s202
    %s206 = sphi 0, %s205
    %s222 = sphi 0, %s206
  $region4: #{_lambda_.21} parent=0 // loop_header_branch
    %17 = sbr.rel (%p15) target = $region8
  $region5: #{_lambda_.21} parent=0 // loop_body
    %s19 = ssub.s32 %s14, 1
    %s20 = ssub.s32 %s14, 2
    %s21 = sadd.s32 %s14, 1
    %s22 = ssub.s32 %s14, %s21
    %p23 = scmp.eq.s32.totalorder %s22, 0
    %s25 = sadd.s32 %s24, 1
    %s26 = scalar_select %p23, %s24, %s25
    %p29 = pneg %p23
    %p30 = scmp.eq.s32.totalorder %s14, 1
    %p31 = por %p29, %p30
    %p32 = scmp.ne.s32.totalorder %s24, %s27
    %p33 = scmp.eq.s32.totalorder %s14, 0
    %p34 = por %p32, %p33
    %p35 = scmp.ne.s32.totalorder %s24, %s27
    %p36 = scmp.eq.s32.totalorder %s19, 1
    %p37 = por %p35, %p36
    %p38 = scmp.ne.s32.totalorder %s27, %s28
    %p39 = scmp.eq.s32.totalorder %s19, 0
    %p40 = por %p38, %p39
    %p41 = scmp.ne.s32.totalorder %s27, %s28
    %p42 = scmp.eq.s32.totalorder %s20, 1
    %p43 = por %p41, %p42
    %p45 = scmp.ne.s32.totalorder %s28, %s44
    %p46 = scmp.eq.s32.totalorder %s20, 0
    %p47 = por %p45, %p46
    %s48 = ssub.s32 %s14, %s21
    %p49 = scmp.eq.s32.totalorder %s48, 0
    %s51 = sadd.s32 %s50, 1
    %s52 = scalar_select %p49, %s50, %s51
    %p55 = pneg %p49
    %p56 = scmp.eq.s32.totalorder %s14, 1
    %p57 = por %p55, %p56
    %p58 = scmp.ne.s32.totalorder %s50, %s53
    %p59 = scmp.eq.s32.totalorder %s14, 0
    %p60 = por %p58, %p59
    %p61 = scmp.ne.s32.totalorder %s50, %s53
    %p62 = scmp.eq.s32.totalorder %s19, 1
    %p63 = por %p61, %p62
    %p64 = scmp.ne.s32.totalorder %s53, %s54
    %p65 = scmp.eq.s32.totalorder %s19, 0
    %p66 = por %p64, %p65
    %p67 = scmp.ne.s32.totalorder %s53, %s54
    %p68 = scmp.eq.s32.totalorder %s20, 1
    %p69 = por %p67, %p68
    %p71 = scmp.ne.s32.totalorder %s54, %s70
    %p72 = scmp.eq.s32.totalorder %s20, 0
    %p73 = por %p71, %p72
    %s75 = sadd.s32 %s74, 1
    %p78 = scmp.eq.s32.totalorder %s14, 1
    %p79 = scmp.ne.s32.totalorder %s74, %s76
    %p80 = scmp.eq.s32.totalorder %s14, 0
    %p81 = por %p79, %p80
    %p82 = scmp.ne.s32.totalorder %s74, %s76
    %p83 = scmp.eq.s32.totalorder %s19, 1
    %p84 = por %p82, %p83
    %p85 = scmp.ne.s32.totalorder %s76, %s77
    %p86 = scmp.eq.s32.totalorder %s19, 0
    %p87 = por %p85, %p86
    %p88 = scmp.ne.s32.totalorder %s76, %s77
    %p89 = scmp.eq.s32.totalorder %s20, 1
    %p90 = por %p88, %p89
    %p92 = scmp.ne.s32.totalorder %s77, %s91
    %p93 = scmp.eq.s32.totalorder %s20, 0
    %p94 = por %p92, %p93
    %s96 = sadd.s32 %s95, 1
    %p99 = scmp.eq.s32.totalorder %s14, 1
    %p100 = scmp.ne.s32.totalorder %s95, %s97
    %p101 = scmp.eq.s32.totalorder %s14, 0
    %p102 = por %p100, %p101
    %p103 = scmp.ne.s32.totalorder %s95, %s97
    %p104 = scmp.eq.s32.totalorder %s19, 1
    %p105 = por %p103, %p104
    %p106 = scmp.ne.s32.totalorder %s97, %s98
    %p107 = scmp.eq.s32.totalorder %s19, 0
    %p108 = por %p106, %p107
    %p109 = scmp.ne.s32.totalorder %s97, %s98
    %p110 = scmp.eq.s32.totalorder %s20, 1
    %p111 = por %p109, %p110
    %p113 = scmp.ne.s32.totalorder %s98, %s112
    %p114 = scmp.eq.s32.totalorder %s20, 0
    %p115 = por %p113, %p114
    %s117 = sadd.s32 %s116, 1
    %p120 = scmp.eq.s32.totalorder %s14, 1
    %p121 = scmp.ne.s32.totalorder %s116, %s118
    %p122 = scmp.eq.s32.totalorder %s14, 0
    %p123 = por %p121, %p122
    %p124 = scmp.ne.s32.totalorder %s116, %s118
    %p125 = scmp.eq.s32.totalorder %s19, 1
    %p126 = por %p124, %p125
    %p127 = scmp.ne.s32.totalorder %s118, %s119
    %p128 = scmp.eq.s32.totalorder %s19, 0
    %p129 = por %p127, %p128
    %p130 = scmp.ne.s32.totalorder %s118, %s119
    %p131 = scmp.eq.s32.totalorder %s20, 1
    %p132 = por %p130, %p131
    %p134 = scmp.ne.s32.totalorder %s119, %s133
    %p135 = scmp.eq.s32.totalorder %s20, 0
    %p136 = por %p134, %p135
    %s138 = sadd.s32 %s137, 1
    %p141 = scmp.eq.s32.totalorder %s14, 1
    %p142 = scmp.ne.s32.totalorder %s137, %s139
    %p143 = scmp.eq.s32.totalorder %s14, 0
    %p144 = por %p142, %p143
    %p145 = scmp.ne.s32.totalorder %s137, %s139
    %p146 = scmp.eq.s32.totalorder %s19, 1
    %p147 = por %p145, %p146
    %p148 = scmp.ne.s32.totalorder %s139, %s140
    %p149 = scmp.eq.s32.totalorder %s19, 0
    %p150 = por %p148, %p149
    %p151 = scmp.ne.s32.totalorder %s139, %s140
    %p152 = scmp.eq.s32.totalorder %s20, 1
    %p153 = por %p151, %p152
    %p155 = scmp.ne.s32.totalorder %s140, %s154
    %p156 = scmp.eq.s32.totalorder %s20, 0
    %p157 = por %p155, %p156
    %s159 = sadd.s32 %s158, 1
    %p162 = scmp.eq.s32.totalorder %s14, 1
    %p163 = scmp.ne.s32.totalorder %s158, %s160
    %p164 = scmp.eq.s32.totalorder %s14, 0
    %p165 = por %p163, %p164
    %p166 = scmp.ne.s32.totalorder %s158, %s160
    %p167 = scmp.eq.s32.totalorder %s19, 1
    %p168 = por %p166, %p167
    %p169 = scmp.ne.s32.totalorder %s160, %s161
    %p170 = scmp.eq.s32.totalorder %s19, 0
    %p171 = por %p169, %p170
    %p172 = scmp.ne.s32.totalorder %s160, %s161
    %p173 = scmp.eq.s32.totalorder %s20, 1
    %p174 = por %p172, %p173
    %p176 = scmp.ne.s32.totalorder %s161, %s175
    %p177 = scmp.eq.s32.totalorder %s20, 0
    %p178 = por %p176, %p177
    %s180 = sadd.s32 %s179, 1
    %p183 = scmp.eq.s32.totalorder %s14, 1
    %p184 = scmp.ne.s32.totalorder %s179, %s181
    %p185 = scmp.eq.s32.totalorder %s14, 0
    %p186 = por %p184, %p185
    %p187 = scmp.ne.s32.totalorder %s179, %s181
    %p188 = scmp.eq.s32.totalorder %s19, 1
    %p189 = por %p187, %p188
    %p190 = scmp.ne.s32.totalorder %s181, %s182
    %p191 = scmp.eq.s32.totalorder %s19, 0
    %p192 = por %p190, %p191
    %p193 = scmp.ne.s32.totalorder %s181, %s182
    %p194 = scmp.eq.s32.totalorder %s20, 1
    %p195 = por %p193, %p194
    %p197 = scmp.ne.s32.totalorder %s182, %s196
    %p198 = scmp.eq.s32.totalorder %s20, 0
    %p199 = por %p197, %p198
    %s200 = ssub.s32 %s14, %s21
    %p201 = scmp.eq.s32.totalorder %s200, 0
    %s203 = sadd.s32 %s202, 1
    %s204 = scalar_select %p201, %s202, %s203
    %p207 = pneg %p201
    %p208 = scmp.eq.s32.totalorder %s14, 1
    %p209 = por %p207, %p208
    %p210 = scmp.ne.s32.totalorder %s202, %s205
    %p211 = scmp.eq.s32.totalorder %s14, 0
    %p212 = por %p210, %p211
    %p213 = scmp.ne.s32.totalorder %s202, %s205
    %p214 = scmp.eq.s32.totalorder %s19, 1
    %p215 = por %p213, %p214
    %p216 = scmp.ne.s32.totalorder %s205, %s206
    %p217 = scmp.eq.s32.totalorder %s19, 0
    %p218 = por %p216, %p217
    %p219 = scmp.ne.s32.totalorder %s205, %s206
    %p220 = scmp.eq.s32.totalorder %s20, 1
    %p221 = por %p219, %p220
    %p223 = scmp.ne.s32.totalorder %s206, %s222
    %p224 = scmp.eq.s32.totalorder %s20, 0
    %p225 = por %p223, %p224
    %p226 = scmp.le.s32.totalorder 1, %s14
    %p227 = scmp.lt.s32.totalorder %s14, 3
    %p228 = pnand %p226, %p227
    %p229 = pneg %p228
    // Predicated region
    $region9: #{_lambda_.21} parent=5 // pred_check
      _
    $region10: #{_lambda_.21} parent=5 // pred_check_branch
      %231 = sbr.rel (%p228) target = $region12
    $region11: #{_lambda_.21} parent=5 // pred_region
      %s232 = ssub.s32 %s14, 1
      // Predicated region
      $region13: #{_lambda_.21} parent=11 // pred_check
        %p233 = pneg %p87
      $region14: #{_lambda_.21} parent=11 // pred_check_branch
        %235 = sbr.rel (%p233) target = $region16
      $region15: #{_lambda_.21} parent=11 // pred_region
        _
      $region16: #{_lambda_.21} parent=11 // pred_fallthru
        _
      // Predicated region
      $region17: #{_lambda_.21} parent=11 // pred_check
        %p236 = pneg %p108
      $region18: #{_lambda_.21} parent=11 // pred_check_branch
        %238 = sbr.rel (%p236) target = $region20
      $region19: #{_lambda_.21} parent=11 // pred_region
        _
      $region20: #{_lambda_.21} parent=11 // pred_fallthru
        _
      // Predicated region
      $region21: #{_lambda_.21} parent=11 // pred_check
        %p239 = pneg %p129
      $region22: #{_lambda_.21} parent=11 // pred_check_branch
        %241 = sbr.rel (%p239) target = $region24
      $region23: #{_lambda_.21} parent=11 // pred_region
        _
      $region24: #{_lambda_.21} parent=11 // pred_fallthru
        _
      // Predicated region
      $region25: #{_lambda_.21} parent=11 // pred_check
        %p242 = pneg %p150
      $region26: #{_lambda_.21} parent=11 // pred_check_branch
        %244 = sbr.rel (%p242) target = $region28
      $region27: #{_lambda_.21} parent=11 // pred_region
        _
      $region28: #{_lambda_.21} parent=11 // pred_fallthru
        _
      // Predicated region
      $region29: #{_lambda_.21} parent=11 // pred_check
        %p245 = pneg %p171
      $region30: #{_lambda_.21} parent=11 // pred_check_branch
        %247 = sbr.rel (%p245) target = $region32
      $region31: #{_lambda_.21} parent=11 // pred_region
        _
      $region32: #{_lambda_.21} parent=11 // pred_fallthru
        _
      // Predicated region
      $region33: #{_lambda_.21} parent=11 // pred_check
        %p248 = pneg %p192
      $region34: #{_lambda_.21} parent=11 // pred_check_branch
        %250 = sbr.rel (%p248) target = $region36
      $region35: #{_lambda_.21} parent=11 // pred_region
        _
      $region36: #{_lambda_.21} parent=11 // pred_fallthru
        _
    $region12: #{_lambda_.21} parent=5 // pred_fallthru
      _
    %p251 = scmp.lt.s32.totalorder %s14, 2
    // Predicated region
    $region37: #{_lambda_.21} parent=5 // pred_check
      %p252 = pneg %p251
    $region38: #{_lambda_.21} parent=5 // pred_check_branch
      %254 = sbr.rel (%p252) target = $region40
    $region39: #{_lambda_.21} parent=5 // pred_region
      // Predicated region
      $region41: #{_lambda_.21} parent=39 // pred_check
        %p255 = pneg %p34
      $region42: #{_lambda_.21} parent=39 // pred_check_branch
        %257 = sbr.rel (%p255) target = $region44
      $region43: #{_lambda_.21} parent=39 // pred_region
        %p258 = scmp.lt.s32.totalorder %s14, 1
        %s259 = scalar_select %p258, %s14, 1
        %s260 = smul.addr %s259, 2
        %s261 = smul.addr %s260, 4
        %s262 = scalar_lea.vmem %s0, %s261
      $region44: #{_lambda_.21} parent=39 // pred_fallthru
        _
      // Predicated region
      $region45: #{_lambda_.21} parent=39 // pred_check
        %p263 = pneg %p60
      $region46: #{_lambda_.21} parent=39 // pred_check_branch
        %265 = sbr.rel (%p263) target = $region48
      $region47: #{_lambda_.21} parent=39 // pred_region
        %p266 = scmp.lt.s32.totalorder %s14, 1
        %s267 = scalar_select %p266, %s14, 1
        %s268 = scalar_lea.vmem %s1, %s267
      $region48: #{_lambda_.21} parent=39 // pred_fallthru
        _
    $region40: #{_lambda_.21} parent=5 // pred_fallthru
      _
    %p269 = scmp.le.s32.totalorder 1, %s14
    %p270 = scmp.lt.s32.totalorder %s14, 3
    %p271 = pnand %p269, %p270
    %p272 = pneg %p271
    // Predicated region
    $region49: #{_lambda_.21} parent=5 // pred_check
      _
    $region50: #{_lambda_.21} parent=5 // pred_check_branch
      %274 = sbr.rel (%p271) target = $region52
    $region51: #{_lambda_.21} parent=5 // pred_region
      %s275 = ssub.s32 %s14, 1
      %p276 = scmp.lt.s32.totalorder %s19, 1
      %s277 = scalar_select %p276, %s19, 1
      %s278 = smul.addr %s277, 2
      %s279 = smul.addr %s278, 4
      %s280 = scalar_lea.vmem %s0, %s279
      %p281 = pneg %p40
      %p282 = pneg %p37
      %p283 = scmp.lt.s32.totalorder %s19, 1
      %s284 = scalar_select %p283, %s19, 1
      %s285 = scalar_lea.vmem %s1, %s284
      %p286 = pneg %p66
      %p287 = pneg %p63
      %p288 = pneg %p87
      %p289 = pneg %p84
      %p290 = pneg %p108
      %p291 = pneg %p105
      %p292 = pneg %p129
      %p293 = pneg %p126
      %p294 = pneg %p150
      %p295 = pneg %p147
      %p296 = pneg %p171
      %p297 = pneg %p168
      %p298 = pneg %p192
      %p299 = pneg %p189
      %p300 = pneg %p218
      %p301 = pneg %p215
      %p302 = scmp.lt.s32.totalorder %s19, 1
      %s303 = scalar_select %p302, %s19, 1
      %s304 = smul.addr %s303, 2
      %s305 = smul.addr %s304, 4
      %s306 = scalar_lea.vmem %s8, %s305
      %p307 = scmp.lt.s32.totalorder %s19, 1
      %s308 = scalar_select %p307, %s19, 1
      %s309 = smul.addr %s308, 2
      %s310 = smul.addr %s309, 4
      %s311 = scalar_lea.vmem %s0, %s310
      %p312 = scmp.lt.s32.totalorder %s19, 1
      %s313 = scalar_select %p312, %s19, 1
      %s314 = scalar_lea.vmem %s1, %s313
      %p315 = scmp.lt.s32.totalorder %s19, 1
      %s316 = scalar_select %p315, %s19, 1
      %s317 = smul.addr %s316, 2
      %s318 = smul.addr %s317, 4
      %s319 = scalar_lea.vmem %s8, %s318
      %v321 = vld [vmem:[%s311] sm:$0xf]
      %v322 = vld [vmem:[%s311 + $0x4] sm:$0xf]
      %v323 = vunpack.c.l.bf16 %v321
      %v324 = vunpack.c.l.bf16 %v322
      %v325 = vld [vmem:[%s4] sm:$0xf]
      %v326 = vld [vmem:[%s4 + $0x4] sm:$0xf]
      %v327 = vld [vmem:[%s4 + $0x8] sm:$0xf]
      %v328 = vld [vmem:[%s4 + $0xc] sm:$0xf]
      %v329 = vld [vmem:[%s5] sm:$0x1]
      %v331 = vlaneseq
      %v332 = vshrl.u32 %v331, 7
      %v333 = vsub.s32 0, %v332
      %v334 = vrot.slane %v329, %v333
      %v338 = vunpack.c.l.b16 %v321
      %v339 = vunpack.c.l.b16 %v322
      %v340 = vpack.c.b16 %v339, %v338
      %v345 = vunpack.c.l.b16 %v325
      %v346 = vunpack.c.l.b16 %v326
      %v347 = vunpack.c.l.b16 %v327
      %v348 = vunpack.c.l.b16 %v328
      %v349 = vpack.c.b16 %v346, %v345
      %v350 = vpack.c.b16 %v348, %v347
      %vm353 = vcmask 261120
      %v355 = vsel %vm353, %v340, 0
      %357 = vmatprep.subr.bf16.mxu0 0
      %358 = vmatpush1.bf16.msra.mxu0 %v349
      %359 = vmatprep.subr.bf16.mxu0 0
      %360 = vmatpush1.bf16.msra.mxu0 %v350
      %361 = vmatprep.subr.bf16.mxu0 0
      %362 = vmatpush1.bf16.msra.mxu0 0
      %363 = vmatprep.subr.bf16.mxu0 0
      %364 = vmatpush1.bf16.msra.mxu0 0
      %365 = vmatprep.subr.bf16.mxu0 0
      %366 = vmatpush1.bf16.msra.mxu0 0
      %367 = vmatprep.subr.bf16.mxu0 0
      %368 = vmatpush1.bf16.msra.mxu0 0
      %369 = vmatprep.subr.bf16.mxu0 0
      %370 = vmatpush1.bf16.msra.mxu0 0
      %371 = vmatprep.subr.bf16.mxu0 0
      %372 = vmatpush1.bf16.msra.mxu0 0
      %373 = vmatprep.subr.bf16.mxu0 0
      %374 = vmatpush1.bf16.msra.mxu0 0
      %375 = vmatprep.subr.bf16.mxu0 0
      %376 = vmatpush1.bf16.msra.mxu0 0
      %377 = vmatprep.subr.bf16.mxu0 0
      %378 = vmatpush1.bf16.msra.mxu0 0
      %379 = vmatprep.subr.bf16.mxu0 0
      %380 = vmatpush1.bf16.msra.mxu0 0
      %381 = vmatprep.subr.bf16.mxu0 0
      %382 = vmatpush1.bf16.msra.mxu0 0
      %383 = vmatprep.subr.bf16.mxu0 0
      %384 = vmatpush1.bf16.msra.mxu0 0
      %385 = vmatprep.subr.bf16.mxu0 0
      %386 = vmatpush1.bf16.msra.mxu0 0
      %387 = vmatprep.subr.bf16.mxu0 0
      %388 = vmatpush1.bf16.msra.mxu0 0
      %389 = vmatprep.mubr.bf16.mxu0 0
      %390 = vmatmul.mubr.bf16.gmra.mrb[0].mxu0 %v355
      %v391 = vpop.f32.mrb[0].mxu0
      %v392 = vadd.f32 %v334, %v391
      %v393 = vpop.f32.mrb[0].mxu0
      %v394 = vpop.f32.mrb[0].mxu0
      %v395 = vadd.f32 %v334, %v394
      %v396 = vpop.f32.mrb[0].mxu0
      %397 = vdwg.mxu0
      %v398 = vmul.f32 %v392, 0.25
      %v399 = vmul.f32 %v395, 0.25
      %v400 = vpack.c.bf16 %v399, %v398
      %v401 = vpack.c.bf16 %v395, %v392
      %v402 = vld [vmem:[%s314] sm:$0x1]
      %v404 = vlaneseq
      %v405 = vshrl.u32 %v404, 7
      %v406 = vsub.s32 0, %v405
      %v407 = vrot.slane %v402, %v406
      %410 = vrot.lane.b32.xlu0 %v401, 96
      %v411 = vpop.permute.xlu0 %410
      %vm412 = vcmask 130048
      %v414 = vsel %vm412, %v400, 0
      %v417 = vsel %vm412, %v411, 0
      %419 = vmatprep.subr.bf16.mxu0 0
      %420 = vmatpush1.bf16.xpose.msra.mxu0 %v417
      %421 = vmatprep.subr.bf16.mxu0 0
      %422 = vmatpush1.bf16.xpose.msra.mxu0 0
      %423 = vmatprep.subr.bf16.mxu0 0
      %424 = vmatpush1.bf16.xpose.msra.mxu0 0
      %425 = vmatprep.subr.bf16.mxu0 0
      %426 = vmatpush1.bf16.xpose.msra.mxu0 0
      %427 = vmatprep.subr.bf16.mxu0 0
      %428 = vmatpush1.bf16.xpose.msra.mxu0 0
      %429 = vmatprep.subr.bf16.mxu0 0
      %430 = vmatpush1.bf16.xpose.msra.mxu0 0
      %431 = vmatprep.subr.bf16.mxu0 0
      %432 = vmatpush1.bf16.xpose.msra.mxu0 0
      %433 = vmatprep.subr.bf16.mxu0 0
      %434 = vmatpush1.bf16.xpose.msra.mxu0 0
      %435 = vmatprep.subr.bf16.mxu0 0
      %436 = vmatpush1.bf16.xpose.msra.mxu0 0
      %437 = vmatprep.subr.bf16.mxu0 0
      %438 = vmatpush1.bf16.xpose.msra.mxu0 0
      %439 = vmatprep.subr.bf16.mxu0 0
      %440 = vmatpush1.bf16.xpose.msra.mxu0 0
      %441 = vmatprep.subr.bf16.mxu0 0
      %442 = vmatpush1.bf16.xpose.msra.mxu0 0
      %443 = vmatprep.subr.bf16.mxu0 0
      %444 = vmatpush1.bf16.xpose.msra.mxu0 0
      %445 = vmatprep.subr.bf16.mxu0 0
      %446 = vmatpush1.bf16.xpose.msra.mxu0 0
      %447 = vmatprep.subr.bf16.mxu0 0
      %448 = vmatpush1.bf16.xpose.msra.mxu0 0
      %449 = vmatprep.subr.bf16.mxu0 0
      %450 = vmatpush1.bf16.xpose.msra.mxu0 0
      %451 = vmatprep.mubr.bf16.mxu0 0
      %452 = vmatmul.mubr.bf16.gmra.mrb[0].mxu0 %v414
      %v453 = vpop.f32.mrb[0].mxu0
      %v454 = vadd.f32 %v407, %v453
      %v455 = vpop.f32.mrb[0].mxu0
      %v456 = vpop.f32.mrb[0].mxu0
      %v457 = vadd.f32 %v407, %v456
      %v458 = vpop.f32.mrb[0].mxu0
      %459 = vdwg.mxu0
      %v460 = vsel %vm412, %v454, -inf
      %461 = vmax.xlane.f32.xlu0 %v460
      %v462 = vpop.xlane.xlu0 %461
      %v463 = vsel %vm412, %v457, -inf
      %464 = vmax.xlane.f32.xlu0 %v463
      %v465 = vpop.xlane.xlu0 %464
      %v466 = vsub.f32 %v454, %v462
      %v467 = vsub.f32 %v457, %v465
      %v468 = vmul.f32 %v466, 1.442695
      %v469 = vpow.pop %v468
      %v470 = vmul.f32 %v467, 1.442695
      %v471 = vpow.pop %v470
      %v472 = vsel %vm412, %v469, 0.0
      %473 = vadd.xlane.f32.xlu0 %v472
      %v474 = vpop.xlane.xlu0 %473
      %v475 = vsel %vm412, %v471, 0.0
      %476 = vadd.xlane.f32.xlu0 %v475
      %v477 = vpop.xlane.xlu0 %476
      %v478 = vrcp.pop %v474
      %v479 = vrcp.pop %v477
      %v480 = vmul.f32 %v469, %v478
      %v481 = vmul.f32 %v471, %v479
      %v482 = vpack.c.bf16 %v481, %v480
      %483 = vrot.lane.b32.xlu0 %v401, 64
      %v484 = vpop.permute.xlu0 %483
      %v487 = vsel %vm412, %v482, 0
      %489 = vmatprep.subr.bf16.mxu0 0
      %490 = vmatpush1.bf16.msra.mxu0 %v484
      %491 = vmatprep.subr.bf16.mxu0 0
      %492 = vmatpush1.bf16.msra.mxu0 0
      %493 = vmatprep.subr.bf16.mxu0 0
      %494 = vmatpush1.bf16.msra.mxu0 0
      %495 = vmatprep.subr.bf16.mxu0 0
      %496 = vmatpush1.bf16.msra.mxu0 0
      %497 = vmatprep.subr.bf16.mxu0 0
      %498 = vmatpush1.bf16.msra.mxu0 0
      %499 = vmatprep.subr.bf16.mxu0 0
      %500 = vmatpush1.bf16.msra.mxu0 0
      %501 = vmatprep.subr.bf16.mxu0 0
      %502 = vmatpush1.bf16.msra.mxu0 0
      %503 = vmatprep.subr.bf16.mxu0 0
      %504 = vmatpush1.bf16.msra.mxu0 0
      %505 = vmatprep.subr.bf16.mxu0 0
      %506 = vmatpush1.bf16.msra.mxu0 0
      %507 = vmatprep.subr.bf16.mxu0 0
      %508 = vmatpush1.bf16.msra.mxu0 0
      %509 = vmatprep.subr.bf16.mxu0 0
      %510 = vmatpush1.bf16.msra.mxu0 0
      %511 = vmatprep.subr.bf16.mxu0 0
      %512 = vmatpush1.bf16.msra.mxu0 0
      %513 = vmatprep.subr.bf16.mxu0 0
      %514 = vmatpush1.bf16.msra.mxu0 0
      %515 = vmatprep.subr.bf16.mxu0 0
      %516 = vmatpush1.bf16.msra.mxu0 0
      %517 = vmatprep.subr.bf16.mxu0 0
      %518 = vmatpush1.bf16.msra.mxu0 0
      %519 = vmatprep.subr.bf16.mxu0 0
      %520 = vmatpush1.bf16.msra.mxu0 0
      %521 = vmatprep.mubr.bf16.mxu0 0
      %522 = vmatmul.mubr.bf16.gmra.mrb[0].mxu0 %v487
      %v523 = vpop.f32.mrb[0].mxu0
      %v524 = vadd.f32 0.0, %v523
      %v525 = vpop.f32.mrb[0].mxu0
      %v526 = vpop.f32.mrb[0].mxu0
      %v527 = vadd.f32 0.0, %v526
      %v528 = vpop.f32.mrb[0].mxu0
      %529 = vdwg.mxu0
      %v530 = vpack.c.bf16 %v527, %v524
      %532 = vrot.lane.b32.xlu0 %v400, 112
      %v533 = vpop.permute.xlu0 %532
      %534 = vrot.lane.b32.xlu0 %v401, 80
      %v535 = vpop.permute.xlu0 %534
      %v537 = vsel %vm412, %v533, 0
      %v540 = vsel %vm412, %v535, 0
      %542 = vmatprep.subr.bf16.mxu0 0
      %543 = vmatpush1.bf16.xpose.msra.mxu0 %v540
      %544 = vmatprep.subr.bf16.mxu0 0
      %545 = vmatpush1.bf16.xpose.msra.mxu0 0
      %546 = vmatprep.subr.bf16.mxu0 0
      %547 = vmatpush1.bf16.xpose.msra.mxu0 0
      %548 = vmatprep.subr.bf16.mxu0 0
      %549 = vmatpush1.bf16.xpose.msra.mxu0 0
      %550 = vmatprep.subr.bf16.mxu0 0
      %551 = vmatpush1.bf16.xpose.msra.mxu0 0
      %552 = vmatprep.subr.bf16.mxu0 0
      %553 = vmatpush1.bf16.xpose.msra.mxu0 0
      %554 = vmatprep.subr.bf16.mxu0 0
      %555 = vmatpush1.bf16.xpose.msra.mxu0 0
      %556 = vmatprep.subr.bf16.mxu0 0
      %557 = vmatpush1.bf16.xpose.msra.mxu0 0
      %558 = vmatprep.subr.bf16.mxu0 0
      %559 = vmatpush1.bf16.xpose.msra.mxu0 0
      %560 = vmatprep.subr.bf16.mxu0 0
      %561 = vmatpush1.bf16.xpose.msra.mxu0 0
      %562 = vmatprep.subr.bf16.mxu0 0
      %563 = vmatpush1.bf16.xpose.msra.mxu0 0
      %564 = vmatprep.subr.bf16.mxu0 0
      %565 = vmatpush1.bf16.xpose.msra.mxu0 0
      %566 = vmatprep.subr.bf16.mxu0 0
      %567 = vmatpush1.bf16.xpose.msra.mxu0 0
      %568 = vmatprep.subr.bf16.mxu0 0
      %569 = vmatpush1.bf16.xpose.msra.mxu0 0
      %570 = vmatprep.subr.bf16.mxu0 0
      %571 = vmatpush1.bf16.xpose.msra.mxu0 0
      %572 = vmatprep.subr.bf16.mxu0 0
      %573 = vmatpush1.bf16.xpose.msra.mxu0 0
      %574 = vmatprep.mubr.bf16.mxu0 0
      %575 = vmatmul.mubr.bf16.gmra.mrb[0].mxu0 %v537
      %v576 = vpop.f32.mrb[0].mxu0
      %v577 = vadd.f32 %v407, %v576
      %v578 = vpop.f32.mrb[0].mxu0
      %v579 = vpop.f32.mrb[0].mxu0
      %v580 = vadd.f32 %v407, %v579
      %v581 = vpop.f32.mrb[0].mxu0
      %582 = vdwg.mxu0
      %v583 = vsel %vm412, %v577, -inf
      %584 = vmax.xlane.f32.xlu0 %v583
      %v585 = vpop.xlane.xlu0 %584
      %v586 = vsel %vm412, %v580, -inf
      %587 = vmax.xlane.f32.xlu0 %v586
      %v588 = vpop.xlane.xlu0 %587
      %v589 = vsub.f32 %v577, %v585
      %v590 = vsub.f32 %v580, %v588
      %v591 = vmul.f32 %v589, 1.442695
      %v592 = vpow.pop %v591
      %v593 = vmul.f32 %v590, 1.442695
      %v594 = vpow.pop %v593
      %v595 = vsel %vm412, %v592, 0.0
      %596 = vadd.xlane.f32.xlu0 %v595
      %v597 = vpop.xlane.xlu0 %596
      %v598 = vsel %vm412, %v594, 0.0
      %599 = vadd.xlane.f32.xlu0 %v598
      %v600 = vpop.xlane.xlu0 %599
      %v601 = vrcp.pop %v597
      %v602 = vrcp.pop %v600
      %v603 = vmul.f32 %v592, %v601
      %v604 = vmul.f32 %v594, %v602
      %v605 = vpack.c.bf16 %v604, %v603
      %606 = vrot.lane.b32.xlu0 %v401, 48
      %v607 = vpop.permute.xlu0 %606
      %v610 = vsel %vm412, %v605, 0
      %612 = vmatprep.subr.bf16.mxu0 0
      %613 = vmatpush1.bf16.msra.mxu0 %v607
      %614 = vmatprep.subr.bf16.mxu0 0
      %615 = vmatpush1.bf16.msra.mxu0 0
      %616 = vmatprep.subr.bf16.mxu0 0
      %617 = vmatpush1.bf16.msra.mxu0 0
      %618 = vmatprep.subr.bf16.mxu0 0
      %619 = vmatpush1.bf16.msra.mxu0 0
      %620 = vmatprep.subr.bf16.mxu0 0
      %621 = vmatpush1.bf16.msra.mxu0 0
      %622 = vmatprep.subr.bf16.mxu0 0
      %623 = vmatpush1.bf16.msra.mxu0 0
      %624 = vmatprep.subr.bf16.mxu0 0
      %625 = vmatpush1.bf16.msra.mxu0 0
      %626 = vmatprep.subr.bf16.mxu0 0
      %627 = vmatpush1.bf16.msra.mxu0 0
      %628 = vmatprep.subr.bf16.mxu0 0
      %629 = vmatpush1.bf16.msra.mxu0 0
      %630 = vmatprep.subr.bf16.mxu0 0
      %631 = vmatpush1.bf16.msra.mxu0 0
      %632 = vmatprep.subr.bf16.mxu0 0
      %633 = vmatpush1.bf16.msra.mxu0 0
      %634 = vmatprep.subr.bf16.mxu0 0
      %635 = vmatpush1.bf16.msra.mxu0 0
      %636 = vmatprep.subr.bf16.mxu0 0
      %637 = vmatpush1.bf16.msra.mxu0 0
      %638 = vmatprep.subr.bf16.mxu0 0
      %639 = vmatpush1.bf16.msra.mxu0 0
      %640 = vmatprep.subr.bf16.mxu0 0
      %641 = vmatpush1.bf16.msra.mxu0 0
      %642 = vmatprep.subr.bf16.mxu0 0
      %643 = vmatpush1.bf16.msra.mxu0 0
      %644 = vmatprep.mubr.bf16.mxu0 0
      %645 = vmatmul.mubr.bf16.gmra.mrb[0].mxu0 %v610
      %v646 = vpop.f32.mrb[0].mxu0
      %v647 = vadd.f32 0.0, %v646
      %v648 = vpop.f32.mrb[0].mxu0
      %v649 = vpop.f32.mrb[0].mxu0
      %v650 = vadd.f32 0.0, %v649
      %v651 = vpop.f32.mrb[0].mxu0
      %652 = vdwg.mxu0
      %v653 = vpack.c.bf16 %v650, %v647
      %655 = vrot.lane.b32.xlu0 %v653, 16
      %v656 = vpop.permute.xlu0 %655
      %v659 = vsel %vm412, %v530, %v656
      %v660 = vld [vmem:[%s6] sm:$0xf]
      %v661 = vld [vmem:[%s6 + $0x4] sm:$0xf]
      %v662 = vld [vmem:[%s6 + $0x8] sm:$0xf]
      %v663 = vld [vmem:[%s6 + $0xc] sm:$0xf]
      %v668 = vunpack.c.l.b16 %v660
      %v669 = vunpack.c.l.b16 %v661
      %v670 = vunpack.c.l.b16 %v662
      %v671 = vunpack.c.l.b16 %v663
      %v672 = vpack.c.b16 %v669, %v668
      %v673 = vpack.c.b16 %v671, %v670
      %v676 = vsel %vm353, %v659, 0
      %678 = vmatprep.subr.bf16.mxu0 0
      %679 = vmatpush1.bf16.msra.mxu0 %v672
      %680 = vmatprep.subr.bf16.mxu0 0
      %681 = vmatpush1.bf16.msra.mxu0 %v673
      %682 = vmatprep.subr.bf16.mxu0 0
      %683 = vmatpush1.bf16.msra.mxu0 0
      %684 = vmatprep.subr.bf16.mxu0 0
      %685 = vmatpush1.bf16.msra.mxu0 0
      %686 = vmatprep.subr.bf16.mxu0 0
      %687 = vmatpush1.bf16.msra.mxu0 0
      %688 = vmatprep.subr.bf16.mxu0 0
      %689 = vmatpush1.bf16.msra.mxu0 0
      %690 = vmatprep.subr.bf16.mxu0 0
      %691 = vmatpush1.bf16.msra.mxu0 0
      %692 = vmatprep.subr.bf16.mxu0 0
      %693 = vmatpush1.bf16.msra.mxu0 0
      %694 = vmatprep.subr.bf16.mxu0 0
      %695 = vmatpush1.bf16.msra.mxu0 0
      %696 = vmatprep.subr.bf16.mxu0 0
      %697 = vmatpush1.bf16.msra.mxu0 0
      %698 = vmatprep.subr.bf16.mxu0 0
      %699 = vmatpush1.bf16.msra.mxu0 0
      %700 = vmatprep.subr.bf16.mxu0 0
      %701 = vmatpush1.bf16.msra.mxu0 0
      %702 = vmatprep.subr.bf16.mxu0 0
      %703 = vmatpush1.bf16.msra.mxu0 0
      %704 = vmatprep.subr.bf16.mxu0 0
      %705 = vmatpush1.bf16.msra.mxu0 0
      %706 = vmatprep.subr.bf16.mxu0 0
      %707 = vmatpush1.bf16.msra.mxu0 0
      %708 = vmatprep.subr.bf16.mxu0 0
      %709 = vmatpush1.bf16.msra.mxu0 0
      %710 = vmatprep.mubr.bf16.mxu0 0
      %711 = vmatmul.mubr.bf16.gmra.mrb[0].mxu0 %v676
      %v712 = vpop.f32.mrb[0].mxu0
      %v713 = vadd.f32 0.0, %v712
      %v714 = vpop.f32.mrb[0].mxu0
      %v715 = vpop.f32.mrb[0].mxu0
      %v716 = vadd.f32 0.0, %v715
      %v717 = vpop.f32.mrb[0].mxu0
      %718 = vdwg.mxu0
      %v719 = vadd.f32 %v323, %v713
      %v720 = vadd.f32 %v324, %v716
      %v721 = vld [vmem:[%s7] sm:$0x1]
      %v723 = vlaneseq
      %v724 = vshrl.u32 %v723, 7
      %v725 = vsub.s32 0, %v724
      %v726 = vrot.slane %v721, %v725
      %v728 = vadd.f32 %v719, %v726
      %v729 = vadd.f32 %v720, %v726
      %v730 = vld [vmem:[%s2] sm:$0x1]
      %v731 = vld [vmem:[%s3] sm:$0x1]
      %v732 = vsel %vm353, %v728, 0.0
      %733 = vadd.xlane.f32.xlu0 %v732
      %v734 = vpop.xlane.xlu0 %733
      %v735 = vsel %vm353, %v729, 0.0
      %736 = vadd.xlane.f32.xlu0 %v735
      %v737 = vpop.xlane.xlu0 %736
      %v738 = vrcp.pop 32.0
      %v739 = vmul.f32 %v734, %v738
      %v740 = vmul.f32 %v737, %v738
      %v741 = vsub.f32 %v728, %v739
      %v742 = vsub.f32 %v729, %v740
      %v743 = vmul.f32 %v741, %v741
      %v744 = vmul.f32 %v742, %v742
      %v745 = vsel %vm353, %v743, 0.0
      %746 = vadd.xlane.f32.xlu0 %v745
      %v747 = vpop.xlane.xlu0 %746
      %v748 = vsel %vm353, %v744, 0.0
      %749 = vadd.xlane.f32.xlu0 %v748
      %v750 = vpop.xlane.xlu0 %749
      %v751 = vmul.f32 %v747, %v738
      %v752 = vmul.f32 %v750, %v738
      %v753 = vadd.f32 %v751, 1e-12
      %v754 = vadd.f32 %v752, 1e-12
      %v755 = vrsqrt.pop %v753
      %v756 = vrsqrt.pop %v754
      %v757 = vmul.f32 %v741, %v755
      %v758 = vmul.f32 %v742, %v756
      %v760 = vlaneseq
      %v761 = vshrl.u32 %v760, 7
      %v762 = vsub.s32 0, %v761
      %v763 = vrot.slane %v730, %v762
      %v765 = vmul.f32 %v757, %v763
      %v766 = vmul.f32 %v758, %v763
      %v768 = vlaneseq
      %v769 = vshrl.u32 %v768, 7
      %v770 = vsub.s32 0, %v769
      %v771 = vrot.slane %v731, %v770
      %v773 = vadd.f32 %v765, %v771
      %v774 = vadd.f32 %v766, %v771
      %v775 = vpack.c.bf16 %v774, %v773
      %v777 = vunpack.c.l.b16 %v775
      %v778 = vunpack.c.h.b16 %v775
      %v779 = vpack.c.b16 %v777, %v777
      %v780 = vpack.c.b16 %v778, %v778
      %vm783 = vcmask 257024
      %784 = vst.msk [vmem:[%s319] sm:$0xf] %vm783, %v779
      %785 = vst.msk [vmem:[%s319 + $0x4] sm:$0xf] %vm783, %v780
      %p786 = scmp.lt.s32.totalorder %s19, 1
      %s787 = scalar_select %p786, %s19, 1
      %s788 = smul.addr %s787, 2
      %s789 = smul.addr %s788, 4
      %s790 = scalar_lea.vmem %s8, %s789
      // Predicated region
      $region53: #{_lambda_.21} parent=51 // pred_check
        %p791 = pneg %p215
      $region54: #{_lambda_.21} parent=51 // pred_check_branch
        %793 = sbr.rel (%p791) target = $region56
      $region55: #{_lambda_.21} parent=51 // pred_region
        _
      $region56: #{_lambda_.21} parent=51 // pred_fallthru
        _
    $region52: #{_lambda_.21} parent=5 // pred_fallthru
      _
    %p794 = scmp.le.s32.totalorder 2, %s14
    // Predicated region
    $region57: #{_lambda_.21} parent=5 // pred_check
      %p795 = pneg %p794
    $region58: #{_lambda_.21} parent=5 // pred_check_branch
      %797 = sbr.rel (%p795) target = $region60
    $region59: #{_lambda_.21} parent=5 // pred_region
      %s798 = ssub.s32 %s14, 2
      // Predicated region
      $region61: #{_lambda_.21} parent=59 // pred_check
        %p799 = pneg %p221
      $region62: #{_lambda_.21} parent=59 // pred_check_branch
        %801 = sbr.rel (%p799) target = $region64
      $region63: #{_lambda_.21} parent=59 // pred_region
        %p802 = scmp.lt.s32.totalorder %s20, 1
        %s803 = scalar_select %p802, %s20, 1
        %s804 = smul.addr %s803, 2
        %s805 = smul.addr %s804, 4
        %s806 = scalar_lea.vmem %s8, %s805
      $region64: #{_lambda_.21} parent=59 // pred_fallthru
        _
    $region60: #{_lambda_.21} parent=5 // pred_fallthru
      _
  $region6: #{_lambda_.21} parent=0 // loop_footer
    %s18 = sadd.s32 1, %s14
  $region7: #{_lambda_.21} parent=0 // loop_footer_branch
    %13 = sbr.rel target = $region3
  $region8: #{_lambda_.21} parent=0 // loop_exit
    _

</llo_original>
